<compile_context>
chip_gen: v7x
topology: tpu7x:2x2x1
jax: 0.10.0
libtpu: 0.0.40
codegen_flags: <defaults>
</compile_context>

<pallas_src>
import functools
import math

import jax
import jax.numpy as jnp
from jax.experimental import pallas as pl
from jax.experimental.pallas import tpu as pltpu
from jax.scipy.special import erf as _erf_exact


_SQRT_HALF = 1.0 / math.sqrt(2.0)


# ----------------------------------------------------------------------------
# VMEM budgeting
# ----------------------------------------------------------------------------

def _tpu_vmem_capacity():
    try:
        info = pltpu.get_tpu_info()
        cap = getattr(info, "vmem_capacity_bytes", None)
        if cap:
            return int(cap)
    except Exception:
        pass
    return 64 << 20          # conservative fallback (v7x per-core VMEM)


_VMEM_CAP = _tpu_vmem_capacity()
_VMEM_LIMIT = int(min(_VMEM_CAP * 3 // 4, 100 << 20))   # explicit scoped limit
_TILE_BUDGET = _VMEM_LIMIT * 3 // 4                     # headroom for compiler temps


def _round_up(x, m):
    return ((x + m - 1) // m) * m


def _pick_row_tile(rows, per_row_f32, resident_f32, *, align=256, min_blocks=4):
    """Largest MXU-aligned row tile whose working set fits the VMEM budget.

    per_row_f32   : f32 elements streamed per row (double-buffered by the pipeline)
    resident_f32  : f32 elements of blocks whose index is constant (weights, biases);
                    accounted double-buffered.
    """
    avail = _TILE_BUDGET - 2 * 4 * resident_f32
    per_row_bytes = 2 * 4 * max(per_row_f32, 1)
    tile = max(align, (max(avail, 0) // per_row_bytes) // align * align)
    # Keep >= min_blocks grid points when rows are large (megacore + pipelining).
    if rows > min_blocks * align:
        tile = min(tile, max(align, _round_up(-(-rows // min_blocks), align)))
    if rows <= tile:
        return rows          # single full-extent block (always a legal block)
    return tile              # multiple of `align`; ragged tail handled by pl.cdiv


def _pick_ff_tile(d, dff):
    """Dff tile for the fused FFN; must divide Dff exactly (accumulation axis)."""
    budget = _TILE_BUDGET // 2
    for t in (dff, 2048, 1024, 512, 256, 128):
        if t <= dff and dff % t == 0 and 2 * (2 * d * t + t) * 4 <= budget:
            return t
    return dff


def _attn_seq_tile(s, h, w):
    """Seq tile for flash attention; must divide S exactly (softmax key axis)."""
    d = h * w
    last = s
    for t in [s] + [c for c in (1024, 512, 256, 128) if c < s and s % c == 0]:
        blocks = 2 * 4 * t * d * 4                       # q,k,v,out double-buffered
        temps = (3 * h * t * t + h * t * (w + 2)) * 4    # scores/probs + m/l/acc
        if blocks + temps <= _TILE_BUDGET:
            return t
        last = t
    return last


def _cparams(*sems):
    return pltpu.CompilerParams(dimension_semantics=tuple(sems),
                                vmem_limit_bytes=_VMEM_LIMIT)


# ----------------------------------------------------------------------------
# In-kernel helpers
# ----------------------------------------------------------------------------

def _erf_approx(x):
    """Abramowitz & Stegun 7.1.26 rational erf approximation (max err ~1.5e-7)."""
    p = 0.3275911
    a1, a2, a3, a4, a5 = (0.254829592, -0.284496736, 1.421413741,
                          -1.453152027, 1.061405429)
    sgn = jnp.where(x >= 0.0, 1.0, -1.0)
    z = x * sgn
    t = 1.0 / (1.0 + p * z)
    poly = ((((a5 * t + a4) * t + a3) * t + a2) * t + a1) * t
    return sgn * (1.0 - poly * jnp.exp(-z * z))


def _gelu(x):
    # Hugging Face / BERT gelu: x * 0.5 * (1 + erf(x / sqrt(2)))
    return x * 0.5 * (1.0 + _erf_approx(x * _SQRT_HALF))


def _layernorm(z, gamma, beta, eps):
    u = jnp.mean(z, axis=-1, keepdims=True)
    zc = z - u
    s = jnp.mean(zc * zc, axis=-1, keepdims=True)
    inv = jax.lax.rsqrt(s + eps)                 # TF-style: eps inside the sqrt
    return zc * (inv * gamma) + beta             # gamma folded into the scale


# ----------------------------------------------------------------------------
# Kernels
# ----------------------------------------------------------------------------

def _linear_kernel(x_ref, w_ref, b_ref, o_ref):
    y = jnp.dot(x_ref[...], w_ref[...], preferred_element_type=jnp.float32)
    o_ref[...] = (y + b_ref[...]).astype(o_ref.dtype)


def _linear_add_ln_kernel(x_ref, w_ref, b_ref, res_ref, g_ref, be_ref, o_ref,
                          *, eps):
    y = jnp.dot(x_ref[...], w_ref[...], preferred_element_type=jnp.float32)
    z = res_ref[...] + y + b_ref[...]            # residual + Linear(x)  (drop=id)
    o_ref[...] = _layernorm(z, g_ref[...], be_ref[...], eps).astype(o_ref.dtype)


def _add_ln_kernel(a_ref, b_ref, g_ref, be_ref, o_ref, *, eps):
    z = a_ref[...] + b_ref[...]
    o_ref[...] = _layernorm(z, g_ref[...], be_ref[...], eps).astype(o_ref.dtype)


def _ffn_ln_kernel(x_ref, w1_ref, b1_ref, w2_ref, b2_ref, g_ref, be_ref,
                   o_ref, acc_ref, *, eps):
    # Grid: (row tiles, Dff tiles).  The fc2 partial product accumulates in f32
    # VMEM scratch across the Dff axis; residual + LayerNorm run in the epilogue.
    j = pl.program_id(1)

    @pl.when(j == 0)
    def _():
        acc_ref[...] = jnp.zeros_like(acc_ref)

    u = jnp.dot(x_ref[...], w1_ref[...], preferred_element_type=jnp.float32)
    u = _gelu(u + b1_ref[...])
    acc_ref[...] += jnp.dot(u, w2_ref[...], preferred_element_type=jnp.float32)

    @pl.when(j == pl.num_programs(1) - 1)
    def _():
        z = x_ref[...] + acc_ref[...] + b2_ref[...]
        o_ref[...] = _layernorm(z, g_ref[...], be_ref[...], eps).astype(o_ref.dtype)


def _attention_kernel(q_ref, k_ref, v_ref, bias_ref, o_ref, m_sc, l_sc, acc_sc,
                      *, sm_scale, n_heads, head_w):
    # Blocks: q = (tq, H, W), k/v = (tk, H, W) read straight from the packed QKV
    # buffer; bias = (1, tk); output = (tq, H*W) lane-dense.  Grid (B, qi, ki),
    # ki innermost / 'arbitrary'; running m/l/acc scratch implements online softmax.
    ki = pl.program_id(2)

    @pl.when(ki == 0)
    def _():
        m_sc[...] = jnp.full_like(m_sc, -jnp.inf)
        l_sc[...] = jnp.zeros_like(l_sc)
        acc_sc[...] = jnp.zeros_like(acc_sc)

    bias = bias_ref[...]                                     # (1, tk)
    for h in range(n_heads):                                 # static unroll
        q = q_ref[:, h, :]                                   # (tq, W)
        k = k_ref[:, h, :]                                   # (tk, W)
        v = v_ref[:, h, :]                                   # (tk, W)
        s = jax.lax.dot_general(q, k, (((1,), (1,)), ((), ())),
                                preferred_element_type=jnp.float32)
        s = s * sm_scale + bias                              # (tq, tk)
        m_prev = m_sc[h]                                     # (tq, 1)
        m_new = jnp.maximum(m_prev, jnp.max(s, axis=-1, keepdims=True))
        alpha = jnp.exp(m_prev - m_new)
        p = jnp.exp(s - m_new)
        l_sc[h] = alpha * l_sc[h] + jnp.sum(p, axis=-1, keepdims=True)
        acc_sc[h] = alpha * acc_sc[h] + jax.lax.dot_general(
            p, v, (((1,), (0,)), ((), ())), preferred_element_type=jnp.float32)
        m_sc[h] = m_new

    @pl.when(ki == pl.num_programs(2) - 1)
    def _():
        for h in range(n_heads):
            inv_l = pl.reciprocal(l_sc[h], approx=True)      # EUP slot
            o_ref[:, h * head_w:(h + 1) * head_w] = (
                acc_sc[h] * inv_l).astype(o_ref.dtype)


# ----------------------------------------------------------------------------
# pallas_call wrappers
# ----------------------------------------------------------------------------

def linear(x2d, w, b):
    rows, k = x2d.shape
    n = w.shape[1]
    tm = _pick_row_tile(rows, per_row_f32=k + n, resident_f32=(k + 1) * n)
    return pl.pallas_call(
        _linear_kernel,
        out_shape=jax.ShapeDtypeStruct((rows, n), x2d.dtype),
        grid_spec=pltpu.PrefetchScalarGridSpec(
            num_scalar_prefetch=0,
            grid=(pl.cdiv(rows, tm),),
            in_specs=[
                pl.BlockSpec((tm, k), lambda i: (i, 0)),
                pl.BlockSpec((k, n), lambda i: (0, 0)),      # weight stays resident
                pl.BlockSpec((1, n), lambda i: (0, 0)),
            ],
            out_specs=pl.BlockSpec((tm, n), lambda i: (i, 0)),
        ),
        compiler_params=_cparams("parallel"),
    )(x2d, w, b.reshape(1, n))


def linear_add_layernorm(x2d, w, b, res2d, gamma, beta, *, eps=1e-12):
    rows, k = x2d.shape
    n = w.shape[1]
    tm = _pick_row_tile(rows, per_row_f32=k + 2 * n, resident_f32=(k + 3) * n)
    kernel = functools.partial(_linear_add_ln_kernel, eps=eps)
    return pl.pallas_call(
        kernel,
        out_shape=jax.ShapeDtypeStruct((rows, n), x2d.dtype),
        grid_spec=pltpu.PrefetchScalarGridSpec(
            num_scalar_prefetch=0,
            grid=(pl.cdiv(rows, tm),),
            in_specs=[
                pl.BlockSpec((tm, k), lambda i: (i, 0)),
                pl.BlockSpec((k, n), lambda i: (0, 0)),
                pl.BlockSpec((1, n), lambda i: (0, 0)),
                pl.BlockSpec((tm, n), lambda i: (i, 0)),
                pl.BlockSpec((1, n), lambda i: (0, 0)),
                pl.BlockSpec((1, n), lambda i: (0, 0)),
            ],
            out_specs=pl.BlockSpec((tm, n), lambda i: (i, 0)),
        ),
        compiler_params=_cparams("parallel"),
    )(x2d, w, b.reshape(1, n), res2d, gamma.reshape(1, n), beta.reshape(1, n))


def add_layernorm(a2d, b2d, gamma, beta, *, eps=1e-12):
    rows, n = a2d.shape
    tm = _pick_row_tile(rows, per_row_f32=3 * n, resident_f32=2 * n)
    kernel = functools.partial(_add_ln_kernel, eps=eps)
    return pl.pallas_call(
        kernel,
        out_shape=jax.ShapeDtypeStruct((rows, n), a2d.dtype),
        grid_spec=pltpu.PrefetchScalarGridSpec(
            num_scalar_prefetch=0,
            grid=(pl.cdiv(rows, tm),),
            in_specs=[
                pl.BlockSpec((tm, n), lambda i: (i, 0)),
                pl.BlockSpec((tm, n), lambda i: (i, 0)),
                pl.BlockSpec((1, n), lambda i: (0, 0)),
                pl.BlockSpec((1, n), lambda i: (0, 0)),
            ],
            out_specs=pl.BlockSpec((tm, n), lambda i: (i, 0)),
        ),
        compiler_params=_cparams("parallel"),
    )(a2d, b2d, gamma.reshape(1, n), beta.reshape(1, n))


def ffn_layernorm(x2d, w1, b1, w2, b2, gamma, beta, *, eps=1e-12):
    rows, d = x2d.shape
    dff = w1.shape[1]
    tf = _pick_ff_tile(d, dff)
    tm = _pick_row_tile(rows, per_row_f32=3 * d + tf,
                        resident_f32=2 * d * tf + tf + 3 * d)
    kernel = functools.partial(_ffn_ln_kernel, eps=eps)
    return pl.pallas_call(
        kernel,
        out_shape=jax.ShapeDtypeStruct((rows, d), x2d.dtype),
        grid_spec=pltpu.PrefetchScalarGridSpec(
            num_scalar_prefetch=0,
            grid=(pl.cdiv(rows, tm), dff // tf),
            in_specs=[
                pl.BlockSpec((tm, d), lambda i, j: (i, 0)),
                pl.BlockSpec((d, tf), lambda i, j: (0, j)),   # fc1 weight streamed
                pl.BlockSpec((1, tf), lambda i, j: (0, j)),
                pl.BlockSpec((tf, d), lambda i, j: (j, 0)),   # fc2 weight streamed
                pl.BlockSpec((1, d), lambda i, j: (0, 0)),
                pl.BlockSpec((1, d), lambda i, j: (0, 0)),
                pl.BlockSpec((1, d), lambda i, j: (0, 0)),
            ],
            out_specs=pl.BlockSpec((tm, d), lambda i, j: (i, 0)),
            scratch_shapes=[pltpu.VMEM((tm, d), jnp.float32)],
        ),
        compiler_params=_cparams("parallel", "arbitrary"),
    )(x2d, w1, b1.reshape(1, dff), w2, b2.reshape(1, d),
      gamma.reshape(1, d), beta.reshape(1, d))


def attention(qkv_5d, mask_bias):
    # qkv_5d: (B, S, 3, H, W) view of the fused QKV projection output (no copies).
    # mask_bias: (B, 1, S) with -10000 at masked keys.  Output: (B, S, H*W).
    B, S, _, H, W = qkv_5d.shape
    D = H * W
    t = _attn_seq_tile(S, H, W)
    tq = tk = t
    kernel = functools.partial(_attention_kernel, sm_scale=1.0 / math.sqrt(W),
                               n_heads=H, head_w=W)
    return pl.pallas_call(
        kernel,
        out_shape=jax.ShapeDtypeStruct((B, S, D), qkv_5d.dtype),
        grid_spec=pltpu.PrefetchScalarGridSpec(
            num_scalar_prefetch=0,
            grid=(B, S // tq, S // tk),
            in_specs=[
                pl.BlockSpec((None, tq, None, H, W),
                             lambda b, qi, ki: (b, qi, 0, 0, 0)),   # Q slab
                pl.BlockSpec((None, tk, None, H, W),
                             lambda b, qi, ki: (b, ki, 1, 0, 0)),   # K slab
                pl.BlockSpec((None, tk, None, H, W),
                             lambda b, qi, ki: (b, ki, 2, 0, 0)),   # V slab
                pl.BlockSpec((None, 1, tk), lambda b, qi, ki: (b, 0, ki)),
            ],
            out_specs=pl.BlockSpec((None, tq, D), lambda b, qi, ki: (b, qi, 0)),
            scratch_shapes=[
                pltpu.VMEM((H, tq, 1), jnp.float32),   # running max
                pltpu.VMEM((H, tq, 1), jnp.float32),   # running denom
                pltpu.VMEM((H, tq, W), jnp.float32),   # running context
            ],
        ),
        compiler_params=_cparams("parallel", "parallel", "arbitrary"),
    )(qkv_5d, qkv_5d, qkv_5d, mask_bias)


# ----------------------------------------------------------------------------
# Transformer forward (Pallas path)
# ----------------------------------------------------------------------------

def transformer_forward(params, ids, mask, *, n_heads):
    B, S = ids.shape
    D = params["tok_embed"].shape[1]
    H = n_heads
    W = D // H

    # Embeddings: tok + pos, fused add + LayerNorm (dropout = identity).
    # TODO(synk): the gathers stay as XLA ops; a scalar-prefetch DMA gather kernel
    # adds nothing at these vocab/seq sizes.
    tok_e = jnp.take(params["tok_embed"], ids, axis=0)              # (B, S, D)
    pos_e = jnp.broadcast_to(params["pos_embed"][:S][None], (B, S, D))
    h2d = add_layernorm(tok_e.reshape(B * S, D), pos_e.reshape(B * S, D),
                        params["embed_gamma"], params["embed_beta"])

    mask_bias = (-10000.0 * (1.0 - mask.astype(jnp.float32))).reshape(B, 1, S)

    for p in params["blocks"]:
        x2d = h2d
        # Fused QKV projection: one matmul; the reshape to (B,S,3,H,W) is a view.
        qkv = linear(x2d, p["w_qkv"], p["b_qkv"])                   # (B*S, 3D)
        ctx = attention(qkv.reshape(B, S, 3, H, W), mask_bias)      # (B, S, D)
        # Output projection + residual + LayerNorm fused in one kernel.
        h1 = linear_add_layernorm(ctx.reshape(B * S, D), p["w_proj"], p["b_proj"],
                                  x2d, p["gamma1"], p["beta1"])
        # FFN fully fused: fc1 + GELU + fc2 + residual + LayerNorm, Dff streamed.
        h2d = ffn_layernorm(h1, p["w_fc1"], p["b_fc1"], p["w_fc2"], p["b_fc2"],
                            p["gamma2"], p["beta2"])
    return h2d.reshape(B, S, D)


# ----------------------------------------------------------------------------
# Pure-JAX reference (exact erf), mirrors the PyTorch module
# ----------------------------------------------------------------------------

def reference_forward(params, ids, mask, *, n_heads, eps=1e-12):
    def ln(x, g, b):
        u = jnp.mean(x, axis=-1, keepdims=True)
        s = jnp.mean((x - u) ** 2, axis=-1, keepdims=True)
        return g * (x - u) / jnp.sqrt(s + eps) + b

    def gelu_exact(x):
        return x * 0.5 * (1.0 + _erf_exact(x / math.sqrt(2.0)))

    B, S = ids.shape
    D = params["tok_embed"].shape[1]
    H = n_heads
    W = D // H

    tok_e = params["tok_embed"][ids]
    pos_e = params["pos_embed"][:S][None]
    h = ln(tok_e + pos_e, params["embed_gamma"], params["embed_beta"])
    maskf = mask.astype(jnp.float32)[:, None, None, :]

    for p in params["blocks"]:
        x = h
        qkv = x @ p["w_qkv"] + p["b_qkv"]
        q, k, v = jnp.split(qkv, 3, axis=-1)
        heads = lambda t: jnp.transpose(t.reshape(B, S, H, W), (0, 2, 1, 3))
        q, k, v = heads(q), heads(k), heads(v)
        scores = jnp.einsum("bhqw,bhkw->bhqk", q, k) / math.sqrt(W)
        scores = scores - 10000.0 * (1.0 - maskf)
        probs = jax.nn.softmax(scores, axis=-1)
        ctx = jnp.einsum("bhqk,bhkw->bhqw", probs, v)
        ctx = jnp.transpose(ctx, (0, 2, 1, 3)).reshape(B, S, D)
        h1 = ln(x + ctx @ p["w_proj"] + p["b_proj"], p["gamma1"], p["beta1"])
        ff = gelu_exact(h1 @ p["w_fc1"] + p["b_fc1"]) @ p["w_fc2"] + p["b_fc2"]
        h = ln(h1 + ff, p["gamma2"], p["beta2"])
    return h


# ----------------------------------------------------------------------------
# Demo
# ----------------------------------------------------------------------------

if __name__ == "__main__":
    batch, seq = 2, 8
    dim, n_heads, dim_ff, n_layers = 32, 4, 128, 2
    word_tot, max_len = 64, 16

    keys = iter(jax.random.split(jax.random.PRNGKey(0), 48))

    def nrm(shape, scale=0.02):
        return scale * jax.random.normal(next(keys), shape, dtype=jnp.float32)

    params = {
        "tok_embed": nrm((word_tot, dim)),
        "pos_embed": nrm((max_len, dim)),
        "embed_gamma": 1.0 + nrm((dim,)),
        "embed_beta": nrm((dim,)),
        "blocks": [],
    }
    for _ in range(n_layers):
        params["blocks"].append({
            "w_qkv": nrm((dim, 3 * dim)), "b_qkv": nrm((3 * dim,)),
            "w_proj": nrm((dim, dim)), "b_proj": nrm((dim,)),
            "gamma1": 1.0 + nrm((dim,)), "beta1": nrm((dim,)),
            "w_fc1": nrm((dim, dim_ff)), "b_fc1": nrm((dim_ff,)),
            "w_fc2": nrm((dim_ff, dim)), "b_fc2": nrm((dim,)),
            "gamma2": 1.0 + nrm((dim,)), "beta2": nrm((dim,)),
        })

    ids = jax.random.randint(next(keys), (batch, seq), 0, word_tot, dtype=jnp.int32)
    mask = jnp.ones((batch, seq), jnp.float32).at[1, 6:].set(0.0)  # pad tail of b=1

    fwd = jax.jit(functools.partial(transformer_forward, n_heads=n_heads))
    out = jax.block_until_ready(fwd(params, ids, mask))

    ref = reference_forward(params, ids, mask, n_heads=n_heads)
    assert out.shape == (batch, seq, dim)
    max_err = float(jnp.max(jnp.abs(out - ref)))
    # Default (MXU-native) matmul precision + approx softmax reciprocal; tolerance
    # sized accordingly (observed error is ~1e-3 at these shapes).
    assert max_err < 2e-2, f"mismatch vs reference, max abs err={max_err}"

    print("KERNEL_OK")
</pallas_src>

<mosaic_0001>
module attributes {stable_mosaic.version = 11 : i64} {
  func.func @_linear_kernel(%arg0: i32, %arg1: memref<16x32xf32, #tpu.memory_space<vmem>>, %arg2: memref<32x96xf32, #tpu.memory_space<vmem>>, %arg3: memref<1x96xf32, #tpu.memory_space<vmem>>, %arg4: memref<16x96xf32, #tpu.memory_space<vmem>>) attributes {dimension_semantics = [#tpu.dimension_semantics<parallel>], iteration_bounds = array<i64: 1>, scalar_prefetch = 0 : i64, scratch_operands = 0 : i64, tpu.core_type = #tpu.core_type<tc>, window_params = [{transform_indices = @transform_0, window_bounds = array<i64: 16, 32>}, {pipeline_mode = #tpu.pipeline_mode<synchronous>, transform_indices = @transform_1, window_bounds = array<i64: 32, 96>}, {pipeline_mode = #tpu.pipeline_mode<synchronous>, transform_indices = @transform_2, window_bounds = array<i64: 1, 96>}, {transform_indices = @transform_3, window_bounds = array<i64: 16, 96>}]} {
    %c0 = arith.constant 0 : index
    %c0_0 = arith.constant 0 : index
    %0 = vector.load %arg1[%c0, %c0_0] : memref<16x32xf32, #tpu.memory_space<vmem>>, vector<16x32xf32>
    %c0_1 = arith.constant 0 : index
    %c0_2 = arith.constant 0 : index
    %1 = vector.load %arg2[%c0_1, %c0_2] : memref<32x96xf32, #tpu.memory_space<vmem>>, vector<32x96xf32>
    %cst = arith.constant dense<0.000000e+00> : vector<16x96xf32>
    %2 = tpu.matmul %0, %1, %cst {dimension_numbers = #tpu.dot_dimension_numbers<[1], [0], [0], [1], [0, 0, 1, 1], [], []>} : vector<16x32xf32>, vector<32x96xf32>, vector<16x96xf32> -> vector<16x96xf32>
    %c0_3 = arith.constant 0 : index
    %c0_4 = arith.constant 0 : index
    %3 = vector.load %arg3[%c0_3, %c0_4] : memref<1x96xf32, #tpu.memory_space<vmem>>, vector<1x96xf32>
    %4 = vector.broadcast %3 : vector<1x96xf32> to vector<16x96xf32>
    %5 = arith.addf %2, %4 : vector<16x96xf32>
    %c0_5 = arith.constant 0 : index
    %c0_6 = arith.constant 0 : index
    %6 = vector.load %arg4[%c0_5, %c0_6] : memref<16x96xf32, #tpu.memory_space<vmem>>, vector<16x96xf32>
    tpu.vector_store %arg4[%c0_5, %c0_6], %5 {strides = array<i32>} : memref<16x96xf32, #tpu.memory_space<vmem>>, vector<16x96xf32>,
    return
  }
  func.func @transform_0(%arg0: i32) -> (i32, i32) {
    %c0_i32 = arith.constant 0 : i32
    %c0_i32_0 = arith.constant 0 : i32
    return %arg0, %c0_i32 : i32, i32
  }
  func.func @transform_1(%arg0: i32) -> (i32, i32) {
    %c0_i32 = arith.constant 0 : i32
    %c0_i32_0 = arith.constant 0 : i32
    %c0_i32_1 = arith.constant 0 : i32
    return %c0_i32, %c0_i32_0 : i32, i32
  }
  func.func @transform_2(%arg0: i32) -> (i32, i32) {
    %c0_i32 = arith.constant 0 : i32
    %c0_i32_0 = arith.constant 0 : i32
    %c0_i32_1 = arith.constant 0 : i32
    return %c0_i32, %c0_i32_0 : i32, i32
  }
  func.func @transform_3(%arg0: i32) -> (i32, i32) {
    %c0_i32 = arith.constant 0 : i32
    %c0_i32_0 = arith.constant 0 : i32
    return %arg0, %c0_i32 : i32, i32
  }
}

module attributes {stable_mosaic.version = 11 : i64} {
  func.func @_add_ln_kernel(%arg0: i32, %arg1: memref<16x32xf32, #tpu.memory_space<vmem>>, %arg2: memref<16x32xf32, #tpu.memory_space<vmem>>, %arg3: memref<1x32xf32, #tpu.memory_space<vmem>>, %arg4: memref<1x32xf32, #tpu.memory_space<vmem>>, %arg5: memref<16x32xf32, #tpu.memory_space<vmem>>) attributes {dimension_semantics = [#tpu.dimension_semantics<parallel>], iteration_bounds = array<i64: 1>, scalar_prefetch = 0 : i64, scratch_operands = 0 : i64, tpu.core_type = #tpu.core_type<tc>, window_params = [{transform_indices = @transform_0, window_bounds = array<i64: 16, 32>}, {transform_indices = @transform_1, window_bounds = array<i64: 16, 32>}, {pipeline_mode = #tpu.pipeline_mode<synchronous>, transform_indices = @transform_2, window_bounds = array<i64: 1, 32>}, {pipeline_mode = #tpu.pipeline_mode<synchronous>, transform_indices = @transform_3, window_bounds = array<i64: 1, 32>}, {transform_indices = @transform_4, window_bounds = array<i64: 16, 32>}]} {
    %c0 = arith.constant 0 : index
    %c0_0 = arith.constant 0 : index
    %0 = vector.load %arg1[%c0, %c0_0] : memref<16x32xf32, #tpu.memory_space<vmem>>, vector<16x32xf32>
    %c0_1 = arith.constant 0 : index
    %c0_2 = arith.constant 0 : index
    %1 = vector.load %arg2[%c0_1, %c0_2] : memref<16x32xf32, #tpu.memory_space<vmem>>, vector<16x32xf32>
    %2 = arith.addf %0, %1 : vector<16x32xf32>
    %c0_3 = arith.constant 0 : index
    %c0_4 = arith.constant 0 : index
    %3 = vector.load %arg3[%c0_3, %c0_4] : memref<1x32xf32, #tpu.memory_space<vmem>>, vector<1x32xf32>
    %c0_5 = arith.constant 0 : index
    %c0_6 = arith.constant 0 : index
    %4 = vector.load %arg4[%c0_5, %c0_6] : memref<1x32xf32, #tpu.memory_space<vmem>>, vector<1x32xf32>
    %cst = arith.constant dense<0.000000e+00> : vector<16xf32>
    %5 = vector.multi_reduction <add>, %2, %cst [1] : vector<16x32xf32> to vector<16xf32>
    %6 = vector.shape_cast %5 : vector<16xf32> to vector<16x1xf32>
    %cst_7 = arith.constant 3.200000e+01 : f32
    %7 = vector.broadcast %cst_7 : f32 to vector<16x1xf32>
    %8 = arith.divf %6, %7 : vector<16x1xf32>
    %9 = vector.broadcast %8 : vector<16x1xf32> to vector<16x32xf32>
    %10 = arith.subf %2, %9 : vector<16x32xf32>
    %11 = arith.mulf %10, %10 : vector<16x32xf32>
    %cst_8 = arith.constant dense<0.000000e+00> : vector<16xf32>
    %12 = vector.multi_reduction <add>, %11, %cst_8 [1] : vector<16x32xf32> to vector<16xf32>
    %13 = vector.shape_cast %12 : vector<16xf32> to vector<16x1xf32>
    %cst_9 = arith.constant 3.200000e+01 : f32
    %14 = vector.broadcast %cst_9 : f32 to vector<16x1xf32>
    %15 = arith.divf %13, %14 : vector<16x1xf32>
    %cst_10 = arith.constant 9.99999996E-13 : f32
    %16 = vector.broadcast %cst_10 : f32 to vector<16x1xf32>
    %17 = arith.addf %15, %16 : vector<16x1xf32>
    %18 = math.rsqrt %17 : vector<16x1xf32>
    %19 = vector.broadcast %18 : vector<16x1xf32> to vector<16x32xf32>
    %20 = vector.broadcast %3 : vector<1x32xf32> to vector<16x32xf32>
    %21 = arith.mulf %19, %20 : vector<16x32xf32>
    %22 = arith.mulf %10, %21 : vector<16x32xf32>
    %23 = vector.broadcast %4 : vector<1x32xf32> to vector<16x32xf32>
    %24 = arith.addf %22, %23 : vector<16x32xf32>
    %c0_11 = arith.constant 0 : index
    %c0_12 = arith.constant 0 : index
    %25 = vector.load %arg5[%c0_11, %c0_12] : memref<16x32xf32, #tpu.memory_space<vmem>>, vector<16x32xf32>
    tpu.vector_store %arg5[%c0_11, %c0_12], %24 {strides = array<i32>} : memref<16x32xf32, #tpu.memory_space<vmem>>, vector<16x32xf32>,
    return
  }
  func.func @transform_0(%arg0: i32) -> (i32, i32) {
    %c0_i32 = arith.constant 0 : i32
    %c0_i32_0 = arith.constant 0 : i32
    return %arg0, %c0_i32 : i32, i32
  }
  func.func @transform_1(%arg0: i32) -> (i32, i32) {
    %c0_i32 = arith.constant 0 : i32
    %c0_i32_0 = arith.constant 0 : i32
    return %arg0, %c0_i32 : i32, i32
  }
  func.func @transform_2(%arg0: i32) -> (i32, i32) {
    %c0_i32 = arith.constant 0 : i32
    %c0_i32_0 = arith.constant 0 : i32
    %c0_i32_1 = arith.constant 0 : i32
    return %c0_i32, %c0_i32_0 : i32, i32
  }
  func.func @transform_3(%arg0: i32) -> (i32, i32) {
    %c0_i32 = arith.constant 0 : i32
    %c0_i32_0 = arith.constant 0 : i32
    %c0_i32_1 = arith.constant 0 : i32
    return %c0_i32, %c0_i32_0 : i32, i32
  }
  func.func @transform_4(%arg0: i32) -> (i32, i32) {
    %c0_i32 = arith.constant 0 : i32
    %c0_i32_0 = arith.constant 0 : i32
    return %arg0, %c0_i32 : i32, i32
  }
}

module attributes {stable_mosaic.version = 11 : i64} {
  func.func @_linear_add_ln_kernel(%arg0: i32, %arg1: memref<16x32xf32, #tpu.memory_space<vmem>>, %arg2: memref<32x32xf32, #tpu.memory_space<vmem>>, %arg3: memref<1x32xf32, #tpu.memory_space<vmem>>, %arg4: memref<16x32xf32, #tpu.memory_space<vmem>>, %arg5: memref<1x32xf32, #tpu.memory_space<vmem>>, %arg6: memref<1x32xf32, #tpu.memory_space<vmem>>, %arg7: memref<16x32xf32, #tpu.memory_space<vmem>>) attributes {dimension_semantics = [#tpu.dimension_semantics<parallel>], iteration_bounds = array<i64: 1>, scalar_prefetch = 0 : i64, scratch_operands = 0 : i64, tpu.core_type = #tpu.core_type<tc>, window_params = [{transform_indices = @transform_0, window_bounds = array<i64: 16, 32>}, {pipeline_mode = #tpu.pipeline_mode<synchronous>, transform_indices = @transform_1, window_bounds = array<i64: 32, 32>}, {pipeline_mode = #tpu.pipeline_mode<synchronous>, transform_indices = @transform_2, window_bounds = array<i64: 1, 32>}, {transform_indices = @transform_3, window_bounds = array<i64: 16, 32>}, {pipeline_mode = #tpu.pipeline_mode<synchronous>, transform_indices = @transform_4, window_bounds = array<i64: 1, 32>}, {pipeline_mode = #tpu.pipeline_mode<synchronous>, transform_indices = @transform_5, window_bounds = array<i64: 1, 32>}, {transform_indices = @transform_6, window_bounds = array<i64: 16, 32>}]} {
    %c0 = arith.constant 0 : index
    %c0_0 = arith.constant 0 : index
    %0 = vector.load %arg1[%c0, %c0_0] : memref<16x32xf32, #tpu.memory_space<vmem>>, vector<16x32xf32>
    %c0_1 = arith.constant 0 : index
    %c0_2 = arith.constant 0 : index
    %1 = vector.load %arg2[%c0_1, %c0_2] : memref<32x32xf32, #tpu.memory_space<vmem>>, vector<32x32xf32>
    %cst = arith.constant dense<0.000000e+00> : vector<16x32xf32>
    %2 = tpu.matmul %0, %1, %cst {dimension_numbers = #tpu.dot_dimension_numbers<[1], [0], [0], [1], [0, 0, 1, 1], [], []>} : vector<16x32xf32>, vector<32x32xf32>, vector<16x32xf32> -> vector<16x32xf32>
    %c0_3 = arith.constant 0 : index
    %c0_4 = arith.constant 0 : index
    %3 = vector.load %arg4[%c0_3, %c0_4] : memref<16x32xf32, #tpu.memory_space<vmem>>, vector<16x32xf32>
    %4 = arith.addf %3, %2 : vector<16x32xf32>
    %c0_5 = arith.constant 0 : index
    %c0_6 = arith.constant 0 : index
    %5 = vector.load %arg3[%c0_5, %c0_6] : memref<1x32xf32, #tpu.memory_space<vmem>>, vector<1x32xf32>
    %6 = vector.broadcast %5 : vector<1x32xf32> to vector<16x32xf32>
    %7 = arith.addf %4, %6 : vector<16x32xf32>
    %c0_7 = arith.constant 0 : index
    %c0_8 = arith.constant 0 : index
    %8 = vector.load %arg5[%c0_7, %c0_8] : memref<1x32xf32, #tpu.memory_space<vmem>>, vector<1x32xf32>
    %c0_9 = arith.constant 0 : index
    %c0_10 = arith.constant 0 : index
    %9 = vector.load %arg6[%c0_9, %c0_10] : memref<1x32xf32, #tpu.memory_space<vmem>>, vector<1x32xf32>
    %cst_11 = arith.constant dense<0.000000e+00> : vector<16xf32>
    %10 = vector.multi_reduction <add>, %7, %cst_11 [1] : vector<16x32xf32> to vector<16xf32>
    %11 = vector.shape_cast %10 : vector<16xf32> to vector<16x1xf32>
    %cst_12 = arith.constant 3.200000e+01 : f32
    %12 = vector.broadcast %cst_12 : f32 to vector<16x1xf32>
    %13 = arith.divf %11, %12 : vector<16x1xf32>
    %14 = vector.broadcast %13 : vector<16x1xf32> to vector<16x32xf32>
    %15 = arith.subf %7, %14 : vector<16x32xf32>
    %16 = arith.mulf %15, %15 : vector<16x32xf32>
    %cst_13 = arith.constant dense<0.000000e+00> : vector<16xf32>
    %17 = vector.multi_reduction <add>, %16, %cst_13 [1] : vector<16x32xf32> to vector<16xf32>
    %18 = vector.shape_cast %17 : vector<16xf32> to vector<16x1xf32>
    %cst_14 = arith.constant 3.200000e+01 : f32
    %19 = vector.broadcast %cst_14 : f32 to vector<16x1xf32>
    %20 = arith.divf %18, %19 : vector<16x1xf32>
    %cst_15 = arith.constant 9.99999996E-13 : f32
    %21 = vector.broadcast %cst_15 : f32 to vector<16x1xf32>
    %22 = arith.addf %20, %21 : vector<16x1xf32>
    %23 = math.rsqrt %22 : vector<16x1xf32>
    %24 = vector.broadcast %23 : vector<16x1xf32> to vector<16x32xf32>
    %25 = vector.broadcast %8 : vector<1x32xf32> to vector<16x32xf32>
    %26 = arith.mulf %24, %25 : vector<16x32xf32>
    %27 = arith.mulf %15, %26 : vector<16x32xf32>
    %28 = vector.broadcast %9 : vector<1x32xf32> to vector<16x32xf32>
    %29 = arith.addf %27, %28 : vector<16x32xf32>
    %c0_16 = arith.constant 0 : index
    %c0_17 = arith.constant 0 : index
    %30 = vector.load %arg7[%c0_16, %c0_17] : memref<16x32xf32, #tpu.memory_space<vmem>>, vector<16x32xf32>
    tpu.vector_store %arg7[%c0_16, %c0_17], %29 {strides = array<i32>} : memref<16x32xf32, #tpu.memory_space<vmem>>, vector<16x32xf32>,
    return
  }
  func.func @transform_0(%arg0: i32) -> (i32, i32) {
    %c0_i32 = arith.constant 0 : i32
    %c0_i32_0 = arith.constant 0 : i32
    return %arg0, %c0_i32 : i32, i32
  }
  func.func @transform_1(%arg0: i32) -> (i32, i32) {
    %c0_i32 = arith.constant 0 : i32
    %c0_i32_0 = arith.constant 0 : i32
    %c0_i32_1 = arith.constant 0 : i32
    return %c0_i32, %c0_i32_0 : i32, i32
  }
  func.func @transform_2(%arg0: i32) -> (i32, i32) {
    %c0_i32 = arith.constant 0 : i32
    %c0_i32_0 = arith.constant 0 : i32
    %c0_i32_1 = arith.constant 0 : i32
    return %c0_i32, %c0_i32_0 : i32, i32
  }
  func.func @transform_3(%arg0: i32) -> (i32, i32) {
    %c0_i32 = arith.constant 0 : i32
    %c0_i32_0 = arith.constant 0 : i32
    return %arg0, %c0_i32 : i32, i32
  }
  func.func @transform_4(%arg0: i32) -> (i32, i32) {
    %c0_i32 = arith.constant 0 : i32
    %c0_i32_0 = arith.constant 0 : i32
    %c0_i32_1 = arith.constant 0 : i32
    return %c0_i32, %c0_i32_0 : i32, i32
  }
  func.func @transform_5(%arg0: i32) -> (i32, i32) {
    %c0_i32 = arith.constant 0 : i32
    %c0_i32_0 = arith.constant 0 : i32
    %c0_i32_1 = arith.constant 0 : i32
    return %c0_i32, %c0_i32_0 : i32, i32
  }
  func.func @transform_6(%arg0: i32) -> (i32, i32) {
    %c0_i32 = arith.constant 0 : i32
    %c0_i32_0 = arith.constant 0 : i32
    return %arg0, %c0_i32 : i32, i32
  }
}

module attributes {stable_mosaic.version = 11 : i64} {
  func.func @_attention_kernel(%arg0: i32, %arg1: i32, %arg2: i32, %arg3: memref<1x8x1x4x8xf32, #tpu.memory_space<vmem>>, %arg4: memref<1x8x1x4x8xf32, #tpu.memory_space<vmem>>, %arg5: memref<1x8x1x4x8xf32, #tpu.memory_space<vmem>>, %arg6: memref<1x1x8xf32, #tpu.memory_space<vmem>>, %arg7: memref<1x8x32xf32, #tpu.memory_space<vmem>>, %arg8: memref<4x8x1xf32, #tpu.memory_space<vmem>>, %arg9: memref<4x8x1xf32, #tpu.memory_space<vmem>>, %arg10: memref<4x8x8xf32, #tpu.memory_space<vmem>>) attributes {dimension_semantics = [#tpu.dimension_semantics<parallel>, #tpu.dimension_semantics<parallel>, #tpu.dimension_semantics<arbitrary>], iteration_bounds = array<i64: 2, 1, 1>, scalar_prefetch = 0 : i64, scratch_operands = 3 : i64, tpu.core_type = #tpu.core_type<tc>, window_params = [{transform_indices = @transform_0, window_bounds = array<i64: 1, 8, 1, 4, 8>}, {transform_indices = @transform_1, window_bounds = array<i64: 1, 8, 1, 4, 8>}, {transform_indices = @transform_2, window_bounds = array<i64: 1, 8, 1, 4, 8>}, {transform_indices = @transform_3, window_bounds = array<i64: 1, 1, 8>}, {transform_indices = @transform_4, window_bounds = array<i64: 1, 8, 32>}]} {
    %c0_i32 = arith.constant 0 : i32
    %0 = arith.cmpi eq, %arg2, %c0_i32 : i32
    %1 = arith.extui %0 : i1 to i32
    %c0_i32_0 = arith.constant 0 : i32
    %2 = arith.cmpi ne, %1, %c0_i32_0 : i32
    scf.if %2 {
      %cst_153 = arith.constant 0xFF800000 : f32
      %176 = vector.broadcast %cst_153 : f32 to vector<4x8x1xf32>
      %c0_154 = arith.constant 0 : index
      %c0_155 = arith.constant 0 : index
      %c0_156 = arith.constant 0 : index
      %177 = vector.load %arg8[%c0_154, %c0_155, %c0_156] : memref<4x8x1xf32, #tpu.memory_space<vmem>>, vector<4x8x1xf32>
      tpu.vector_store %arg8[%c0_154, %c0_155, %c0_156], %176 {strides = array<i32>} : memref<4x8x1xf32, #tpu.memory_space<vmem>>, vector<4x8x1xf32>,
      %cst_157 = arith.constant 0.000000e+00 : f32
      %178 = vector.broadcast %cst_157 : f32 to vector<4x8x1xf32>
      %c0_158 = arith.constant 0 : index
      %c0_159 = arith.constant 0 : index
      %c0_160 = arith.constant 0 : index
      %179 = vector.load %arg9[%c0_158, %c0_159, %c0_160] : memref<4x8x1xf32, #tpu.memory_space<vmem>>, vector<4x8x1xf32>
      tpu.vector_store %arg9[%c0_158, %c0_159, %c0_160], %178 {strides = array<i32>} : memref<4x8x1xf32, #tpu.memory_space<vmem>>, vector<4x8x1xf32>,
      %cst_161 = arith.constant 0.000000e+00 : f32
      %180 = vector.broadcast %cst_161 : f32 to vector<4x8x8xf32>
      %c0_162 = arith.constant 0 : index
      %c0_163 = arith.constant 0 : index
      %c0_164 = arith.constant 0 : index
      %181 = vector.load %arg10[%c0_162, %c0_163, %c0_164] : memref<4x8x8xf32, #tpu.memory_space<vmem>>, vector<4x8x8xf32>
      tpu.vector_store %arg10[%c0_162, %c0_163, %c0_164], %180 {strides = array<i32>} : memref<4x8x8xf32, #tpu.memory_space<vmem>>, vector<4x8x8xf32>,
    } else {
    }
    %c0 = arith.constant 0 : index
    %c0_1 = arith.constant 0 : index
    %c0_2 = arith.constant 0 : index
    %3 = vector.load %arg6[%c0, %c0_1, %c0_2] : memref<1x1x8xf32, #tpu.memory_space<vmem>>, vector<1x1x8xf32>
    %4 = vector.shape_cast %3 : vector<1x1x8xf32> to vector<1x8xf32>
    %c0_3 = arith.constant 0 : index
    %c0_4 = arith.constant 0 : index
    %c0_5 = arith.constant 0 : index
    %c0_6 = arith.constant 0 : index
    %c0_7 = arith.constant 0 : index
    %5 = vector.load %arg3[%c0_3, %c0_4, %c0_5, %c0_6, %c0_7] : memref<1x8x1x4x8xf32, #tpu.memory_space<vmem>>, vector<1x8x1x1x8xf32>
    %6 = vector.shape_cast %5 : vector<1x8x1x1x8xf32> to vector<8x8xf32>
    %c0_8 = arith.constant 0 : index
    %c0_9 = arith.constant 0 : index
    %c0_10 = arith.constant 0 : index
    %c0_11 = arith.constant 0 : index
    %c0_12 = arith.constant 0 : index
    %7 = vector.load %arg4[%c0_8, %c0_9, %c0_10, %c0_11, %c0_12] : memref<1x8x1x4x8xf32, #tpu.memory_space<vmem>>, vector<1x8x1x1x8xf32>
    %8 = vector.shape_cast %7 : vector<1x8x1x1x8xf32> to vector<8x8xf32>
    %c0_13 = arith.constant 0 : index
    %c0_14 = arith.constant 0 : index
    %c0_15 = arith.constant 0 : index
    %c0_16 = arith.constant 0 : index
    %c0_17 = arith.constant 0 : index
    %9 = vector.load %arg5[%c0_13, %c0_14, %c0_15, %c0_16, %c0_17] : memref<1x8x1x4x8xf32, #tpu.memory_space<vmem>>, vector<1x8x1x1x8xf32>
    %10 = vector.shape_cast %9 : vector<1x8x1x1x8xf32> to vector<8x8xf32>
    %cst = arith.constant dense<0.000000e+00> : vector<8x8xf32>
    %11 = tpu.matmul %6, %8, %cst {dimension_numbers = #tpu.dot_dimension_numbers<[1], [1], [0], [0], [0, 0, 1, 0], [], []>} : vector<8x8xf32>, vector<8x8xf32>, vector<8x8xf32> -> vector<8x8xf32>
    %cst_18 = arith.constant 0.353553385 : f32
    %12 = vector.broadcast %cst_18 : f32 to vector<8x8xf32>
    %13 = arith.mulf %11, %12 : vector<8x8xf32>
    %14 = vector.broadcast %4 : vector<1x8xf32> to vector<8x8xf32>
    %15 = arith.addf %13, %14 : vector<8x8xf32>
    %c0_19 = arith.constant 0 : index
    %c0_20 = arith.constant 0 : index
    %c0_21 = arith.constant 0 : index
    %16 = vector.load %arg8[%c0_19, %c0_20, %c0_21] : memref<4x8x1xf32, #tpu.memory_space<vmem>>, vector<1x8x1xf32>
    %17 = vector.shape_cast %16 : vector<1x8x1xf32> to vector<8x1xf32>
    %cst_22 = arith.constant dense<0xFF800000> : vector<8xf32>
    %18 = vector.multi_reduction <maximumf>, %15, %cst_22 [1] : vector<8x8xf32> to vector<8xf32>
    %19 = vector.shape_cast %18 : vector<8xf32> to vector<8x1xf32>
    %20 = arith.maximumf %17, %19 : vector<8x1xf32>
    %21 = arith.subf %17, %20 : vector<8x1xf32>
    %22 = math.exp %21 : vector<8x1xf32>
    %23 = vector.broadcast %20 : vector<8x1xf32> to vector<8x8xf32>
    %24 = arith.subf %15, %23 : vector<8x8xf32>
    %25 = math.exp %24 : vector<8x8xf32>
    %c0_23 = arith.constant 0 : index
    %c0_24 = arith.constant 0 : index
    %c0_25 = arith.constant 0 : index
    %26 = vector.load %arg9[%c0_23, %c0_24, %c0_25] : memref<4x8x1xf32, #tpu.memory_space<vmem>>, vector<1x8x1xf32>
    %27 = vector.shape_cast %26 : vector<1x8x1xf32> to vector<8x1xf32>
    %28 = arith.mulf %22, %27 : vector<8x1xf32>
    %cst_26 = arith.constant dense<0.000000e+00> : vector<8xf32>
    %29 = vector.multi_reduction <add>, %25, %cst_26 [1] : vector<8x8xf32> to vector<8xf32>
    %30 = vector.shape_cast %29 : vector<8xf32> to vector<8x1xf32>
    %31 = arith.addf %28, %30 : vector<8x1xf32>
    %c0_27 = arith.constant 0 : index
    %c0_28 = arith.constant 0 : index
    %c0_29 = arith.constant 0 : index
    %32 = vector.load %arg9[%c0_27, %c0_28, %c0_29] : memref<4x8x1xf32, #tpu.memory_space<vmem>>, vector<1x8x1xf32>
    %33 = vector.shape_cast %32 : vector<1x8x1xf32> to vector<8x1xf32>
    %34 = vector.shape_cast %31 : vector<8x1xf32> to vector<1x8x1xf32>
    tpu.vector_store %arg9[%c0_27, %c0_28, %c0_29], %34 {strides = array<i32>} : memref<4x8x1xf32, #tpu.memory_space<vmem>>, vector<1x8x1xf32>,
    %c0_30 = arith.constant 0 : index
    %c0_31 = arith.constant 0 : index
    %c0_32 = arith.constant 0 : index
    %35 = vector.load %arg10[%c0_30, %c0_31, %c0_32] : memref<4x8x8xf32, #tpu.memory_space<vmem>>, vector<1x8x8xf32>
    %36 = vector.shape_cast %35 : vector<1x8x8xf32> to vector<8x8xf32>
    %37 = vector.broadcast %22 : vector<8x1xf32> to vector<8x8xf32>
    %38 = arith.mulf %37, %36 : vector<8x8xf32>
    %cst_33 = arith.constant dense<0.000000e+00> : vector<8x8xf32>
    %39 = tpu.matmul %25, %10, %cst_33 {dimension_numbers = #tpu.dot_dimension_numbers<[1], [0], [0], [1], [0, 0, 1, 1], [], []>} : vector<8x8xf32>, vector<8x8xf32>, vector<8x8xf32> -> vector<8x8xf32>
    %40 = arith.addf %38, %39 : vector<8x8xf32>
    %c0_34 = arith.constant 0 : index
    %c0_35 = arith.constant 0 : index
    %c0_36 = arith.constant 0 : index
    %41 = vector.load %arg10[%c0_34, %c0_35, %c0_36] : memref<4x8x8xf32, #tpu.memory_space<vmem>>, vector<1x8x8xf32>
    %42 = vector.shape_cast %41 : vector<1x8x8xf32> to vector<8x8xf32>
    %43 = vector.shape_cast %40 : vector<8x8xf32> to vector<1x8x8xf32>
    tpu.vector_store %arg10[%c0_34, %c0_35, %c0_36], %43 {strides = array<i32>} : memref<4x8x8xf32, #tpu.memory_space<vmem>>, vector<1x8x8xf32>,
    %c0_37 = arith.constant 0 : index
    %c0_38 = arith.constant 0 : index
    %c0_39 = arith.constant 0 : index
    %44 = vector.load %arg8[%c0_37, %c0_38, %c0_39] : memref<4x8x1xf32, #tpu.memory_space<vmem>>, vector<1x8x1xf32>
    %45 = vector.shape_cast %44 : vector<1x8x1xf32> to vector<8x1xf32>
    %46 = vector.shape_cast %20 : vector<8x1xf32> to vector<1x8x1xf32>
    tpu.vector_store %arg8[%c0_37, %c0_38, %c0_39], %46 {strides = array<i32>} : memref<4x8x1xf32, #tpu.memory_space<vmem>>, vector<1x8x1xf32>,
    %c0_40 = arith.constant 0 : index
    %c0_41 = arith.constant 0 : index
    %c0_42 = arith.constant 0 : index
    %c1 = arith.constant 1 : index
    %c0_43 = arith.constant 0 : index
    %47 = vector.load %arg3[%c0_40, %c0_41, %c0_42, %c1, %c0_43] : memref<1x8x1x4x8xf32, #tpu.memory_space<vmem>>, vector<1x8x1x1x8xf32>
    %48 = vector.shape_cast %47 : vector<1x8x1x1x8xf32> to vector<8x8xf32>
    %c0_44 = arith.constant 0 : index
    %c0_45 = arith.constant 0 : index
    %c0_46 = arith.constant 0 : index
    %c1_47 = arith.constant 1 : index
    %c0_48 = arith.constant 0 : index
    %49 = vector.load %arg4[%c0_44, %c0_45, %c0_46, %c1_47, %c0_48] : memref<1x8x1x4x8xf32, #tpu.memory_space<vmem>>, vector<1x8x1x1x8xf32>
    %50 = vector.shape_cast %49 : vector<1x8x1x1x8xf32> to vector<8x8xf32>
    %c0_49 = arith.constant 0 : index
    %c0_50 = arith.constant 0 : index
    %c0_51 = arith.constant 0 : index
    %c1_52 = arith.constant 1 : index
    %c0_53 = arith.constant 0 : index
    %51 = vector.load %arg5[%c0_49, %c0_50, %c0_51, %c1_52, %c0_53] : memref<1x8x1x4x8xf32, #tpu.memory_space<vmem>>, vector<1x8x1x1x8xf32>
    %52 = vector.shape_cast %51 : vector<1x8x1x1x8xf32> to vector<8x8xf32>
    %cst_54 = arith.constant dense<0.000000e+00> : vector<8x8xf32>
    %53 = tpu.matmul %48, %50, %cst_54 {dimension_numbers = #tpu.dot_dimension_numbers<[1], [1], [0], [0], [0, 0, 1, 0], [], []>} : vector<8x8xf32>, vector<8x8xf32>, vector<8x8xf32> -> vector<8x8xf32>
    %cst_55 = arith.constant 0.353553385 : f32
    %54 = vector.broadcast %cst_55 : f32 to vector<8x8xf32>
    %55 = arith.mulf %53, %54 : vector<8x8xf32>
    %56 = vector.broadcast %4 : vector<1x8xf32> to vector<8x8xf32>
    %57 = arith.addf %55, %56 : vector<8x8xf32>
    %c1_56 = arith.constant 1 : index
    %c0_57 = arith.constant 0 : index
    %c0_58 = arith.constant 0 : index
    %58 = vector.load %arg8[%c1_56, %c0_57, %c0_58] : memref<4x8x1xf32, #tpu.memory_space<vmem>>, vector<1x8x1xf32>
    %59 = vector.shape_cast %58 : vector<1x8x1xf32> to vector<8x1xf32>
    %cst_59 = arith.constant dense<0xFF800000> : vector<8xf32>
    %60 = vector.multi_reduction <maximumf>, %57, %cst_59 [1] : vector<8x8xf32> to vector<8xf32>
    %61 = vector.shape_cast %60 : vector<8xf32> to vector<8x1xf32>
    %62 = arith.maximumf %59, %61 : vector<8x1xf32>
    %63 = arith.subf %59, %62 : vector<8x1xf32>
    %64 = math.exp %63 : vector<8x1xf32>
    %65 = vector.broadcast %62 : vector<8x1xf32> to vector<8x8xf32>
    %66 = arith.subf %57, %65 : vector<8x8xf32>
    %67 = math.exp %66 : vector<8x8xf32>
    %c1_60 = arith.constant 1 : index
    %c0_61 = arith.constant 0 : index
    %c0_62 = arith.constant 0 : index
    %68 = vector.load %arg9[%c1_60, %c0_61, %c0_62] : memref<4x8x1xf32, #tpu.memory_space<vmem>>, vector<1x8x1xf32>
    %69 = vector.shape_cast %68 : vector<1x8x1xf32> to vector<8x1xf32>
    %70 = arith.mulf %64, %69 : vector<8x1xf32>
    %cst_63 = arith.constant dense<0.000000e+00> : vector<8xf32>
    %71 = vector.multi_reduction <add>, %67, %cst_63 [1] : vector<8x8xf32> to vector<8xf32>
    %72 = vector.shape_cast %71 : vector<8xf32> to vector<8x1xf32>
    %73 = arith.addf %70, %72 : vector<8x1xf32>
    %c1_64 = arith.constant 1 : index
    %c0_65 = arith.constant 0 : index
    %c0_66 = arith.constant 0 : index
    %74 = vector.load %arg9[%c1_64, %c0_65, %c0_66] : memref<4x8x1xf32, #tpu.memory_space<vmem>>, vector<1x8x1xf32>
    %75 = vector.shape_cast %74 : vector<1x8x1xf32> to vector<8x1xf32>
    %76 = vector.shape_cast %73 : vector<8x1xf32> to vector<1x8x1xf32>
    tpu.vector_store %arg9[%c1_64, %c0_65, %c0_66], %76 {strides = array<i32>} : memref<4x8x1xf32, #tpu.memory_space<vmem>>, vector<1x8x1xf32>,
    %c1_67 = arith.constant 1 : index
    %c0_68 = arith.constant 0 : index
    %c0_69 = arith.constant 0 : index
    %77 = vector.load %arg10[%c1_67, %c0_68, %c0_69] : memref<4x8x8xf32, #tpu.memory_space<vmem>>, vector<1x8x8xf32>
    %78 = vector.shape_cast %77 : vector<1x8x8xf32> to vector<8x8xf32>
    %79 = vector.broadcast %64 : vector<8x1xf32> to vector<8x8xf32>
    %80 = arith.mulf %79, %78 : vector<8x8xf32>
    %cst_70 = arith.constant dense<0.000000e+00> : vector<8x8xf32>
    %81 = tpu.matmul %67, %52, %cst_70 {dimension_numbers = #tpu.dot_dimension_numbers<[1], [0], [0], [1], [0, 0, 1, 1], [], []>} : vector<8x8xf32>, vector<8x8xf32>, vector<8x8xf32> -> vector<8x8xf32>
    %82 = arith.addf %80, %81 : vector<8x8xf32>
    %c1_71 = arith.constant 1 : index
    %c0_72 = arith.constant 0 : index
    %c0_73 = arith.constant 0 : index
    %83 = vector.load %arg10[%c1_71, %c0_72, %c0_73] : memref<4x8x8xf32, #tpu.memory_space<vmem>>, vector<1x8x8xf32>
    %84 = vector.shape_cast %83 : vector<1x8x8xf32> to vector<8x8xf32>
    %85 = vector.shape_cast %82 : vector<8x8xf32> to vector<1x8x8xf32>
    tpu.vector_store %arg10[%c1_71, %c0_72, %c0_73], %85 {strides = array<i32>} : memref<4x8x8xf32, #tpu.memory_space<vmem>>, vector<1x8x8xf32>,
    %c1_74 = arith.constant 1 : index
    %c0_75 = arith.constant 0 : index
    %c0_76 = arith.constant 0 : index
    %86 = vector.load %arg8[%c1_74, %c0_75, %c0_76] : memref<4x8x1xf32, #tpu.memory_space<vmem>>, vector<1x8x1xf32>
    %87 = vector.shape_cast %86 : vector<1x8x1xf32> to vector<8x1xf32>
    %88 = vector.shape_cast %62 : vector<8x1xf32> to vector<1x8x1xf32>
    tpu.vector_store %arg8[%c1_74, %c0_75, %c0_76], %88 {strides = array<i32>} : memref<4x8x1xf32, #tpu.memory_space<vmem>>, vector<1x8x1xf32>,
    %c0_77 = arith.constant 0 : index
    %c0_78 = arith.constant 0 : index
    %c0_79 = arith.constant 0 : index
    %c2 = arith.constant 2 : index
    %c0_80 = arith.constant 0 : index
    %89 = vector.load %arg3[%c0_77, %c0_78, %c0_79, %c2, %c0_80] : memref<1x8x1x4x8xf32, #tpu.memory_space<vmem>>, vector<1x8x1x1x8xf32>
    %90 = vector.shape_cast %89 : vector<1x8x1x1x8xf32> to vector<8x8xf32>
    %c0_81 = arith.constant 0 : index
    %c0_82 = arith.constant 0 : index
    %c0_83 = arith.constant 0 : index
    %c2_84 = arith.constant 2 : index
    %c0_85 = arith.constant 0 : index
    %91 = vector.load %arg4[%c0_81, %c0_82, %c0_83, %c2_84, %c0_85] : memref<1x8x1x4x8xf32, #tpu.memory_space<vmem>>, vector<1x8x1x1x8xf32>
    %92 = vector.shape_cast %91 : vector<1x8x1x1x8xf32> to vector<8x8xf32>
    %c0_86 = arith.constant 0 : index
    %c0_87 = arith.constant 0 : index
    %c0_88 = arith.constant 0 : index
    %c2_89 = arith.constant 2 : index
    %c0_90 = arith.constant 0 : index
    %93 = vector.load %arg5[%c0_86, %c0_87, %c0_88, %c2_89, %c0_90] : memref<1x8x1x4x8xf32, #tpu.memory_space<vmem>>, vector<1x8x1x1x8xf32>
    %94 = vector.shape_cast %93 : vector<1x8x1x1x8xf32> to vector<8x8xf32>
    %cst_91 = arith.constant dense<0.000000e+00> : vector<8x8xf32>
    %95 = tpu.matmul %90, %92, %cst_91 {dimension_numbers = #tpu.dot_dimension_numbers<[1], [1], [0], [0], [0, 0, 1, 0], [], []>} : vector<8x8xf32>, vector<8x8xf32>, vector<8x8xf32> -> vector<8x8xf32>
    %cst_92 = arith.constant 0.353553385 : f32
    %96 = vector.broadcast %cst_92 : f32 to vector<8x8xf32>
    %97 = arith.mulf %95, %96 : vector<8x8xf32>
    %98 = vector.broadcast %4 : vector<1x8xf32> to vector<8x8xf32>
    %99 = arith.addf %97, %98 : vector<8x8xf32>
    %c2_93 = arith.constant 2 : index
    %c0_94 = arith.constant 0 : index
    %c0_95 = arith.constant 0 : index
    %100 = vector.load %arg8[%c2_93, %c0_94, %c0_95] : memref<4x8x1xf32, #tpu.memory_space<vmem>>, vector<1x8x1xf32>
    %101 = vector.shape_cast %100 : vector<1x8x1xf32> to vector<8x1xf32>
    %cst_96 = arith.constant dense<0xFF800000> : vector<8xf32>
    %102 = vector.multi_reduction <maximumf>, %99, %cst_96 [1] : vector<8x8xf32> to vector<8xf32>
    %103 = vector.shape_cast %102 : vector<8xf32> to vector<8x1xf32>
    %104 = arith.maximumf %101, %103 : vector<8x1xf32>
    %105 = arith.subf %101, %104 : vector<8x1xf32>
    %106 = math.exp %105 : vector<8x1xf32>
    %107 = vector.broadcast %104 : vector<8x1xf32> to vector<8x8xf32>
    %108 = arith.subf %99, %107 : vector<8x8xf32>
    %109 = math.exp %108 : vector<8x8xf32>
    %c2_97 = arith.constant 2 : index
    %c0_98 = arith.constant 0 : index
    %c0_99 = arith.constant 0 : index
    %110 = vector.load %arg9[%c2_97, %c0_98, %c0_99] : memref<4x8x1xf32, #tpu.memory_space<vmem>>, vector<1x8x1xf32>
    %111 = vector.shape_cast %110 : vector<1x8x1xf32> to vector<8x1xf32>
    %112 = arith.mulf %106, %111 : vector<8x1xf32>
    %cst_100 = arith.constant dense<0.000000e+00> : vector<8xf32>
    %113 = vector.multi_reduction <add>, %109, %cst_100 [1] : vector<8x8xf32> to vector<8xf32>
    %114 = vector.shape_cast %113 : vector<8xf32> to vector<8x1xf32>
    %115 = arith.addf %112, %114 : vector<8x1xf32>
    %c2_101 = arith.constant 2 : index
    %c0_102 = arith.constant 0 : index
    %c0_103 = arith.constant 0 : index
    %116 = vector.load %arg9[%c2_101, %c0_102, %c0_103] : memref<4x8x1xf32, #tpu.memory_space<vmem>>, vector<1x8x1xf32>
    %117 = vector.shape_cast %116 : vector<1x8x1xf32> to vector<8x1xf32>
    %118 = vector.shape_cast %115 : vector<8x1xf32> to vector<1x8x1xf32>
    tpu.vector_store %arg9[%c2_101, %c0_102, %c0_103], %118 {strides = array<i32>} : memref<4x8x1xf32, #tpu.memory_space<vmem>>, vector<1x8x1xf32>,
    %c2_104 = arith.constant 2 : index
    %c0_105 = arith.constant 0 : index
    %c0_106 = arith.constant 0 : index
    %119 = vector.load %arg10[%c2_104, %c0_105, %c0_106] : memref<4x8x8xf32, #tpu.memory_space<vmem>>, vector<1x8x8xf32>
    %120 = vector.shape_cast %119 : vector<1x8x8xf32> to vector<8x8xf32>
    %121 = vector.broadcast %106 : vector<8x1xf32> to vector<8x8xf32>
    %122 = arith.mulf %121, %120 : vector<8x8xf32>
    %cst_107 = arith.constant dense<0.000000e+00> : vector<8x8xf32>
    %123 = tpu.matmul %109, %94, %cst_107 {dimension_numbers = #tpu.dot_dimension_numbers<[1], [0], [0], [1], [0, 0, 1, 1], [], []>} : vector<8x8xf32>, vector<8x8xf32>, vector<8x8xf32> -> vector<8x8xf32>
    %124 = arith.addf %122, %123 : vector<8x8xf32>
    %c2_108 = arith.constant 2 : index
    %c0_109 = arith.constant 0 : index
    %c0_110 = arith.constant 0 : index
    %125 = vector.load %arg10[%c2_108, %c0_109, %c0_110] : memref<4x8x8xf32, #tpu.memory_space<vmem>>, vector<1x8x8xf32>
    %126 = vector.shape_cast %125 : vector<1x8x8xf32> to vector<8x8xf32>
    %127 = vector.shape_cast %124 : vector<8x8xf32> to vector<1x8x8xf32>
    tpu.vector_store %arg10[%c2_108, %c0_109, %c0_110], %127 {strides = array<i32>} : memref<4x8x8xf32, #tpu.memory_space<vmem>>, vector<1x8x8xf32>,
    %c2_111 = arith.constant 2 : index
    %c0_112 = arith.constant 0 : index
    %c0_113 = arith.constant 0 : index
    %128 = vector.load %arg8[%c2_111, %c0_112, %c0_113] : memref<4x8x1xf32, #tpu.memory_space<vmem>>, vector<1x8x1xf32>
    %129 = vector.shape_cast %128 : vector<1x8x1xf32> to vector<8x1xf32>
    %130 = vector.shape_cast %104 : vector<8x1xf32> to vector<1x8x1xf32>
    tpu.vector_store %arg8[%c2_111, %c0_112, %c0_113], %130 {strides = array<i32>} : memref<4x8x1xf32, #tpu.memory_space<vmem>>, vector<1x8x1xf32>,
    %c0_114 = arith.constant 0 : index
    %c0_115 = arith.constant 0 : index
    %c0_116 = arith.constant 0 : index
    %c3 = arith.constant 3 : index
    %c0_117 = arith.constant 0 : index
    %131 = vector.load %arg3[%c0_114, %c0_115, %c0_116, %c3, %c0_117] : memref<1x8x1x4x8xf32, #tpu.memory_space<vmem>>, vector<1x8x1x1x8xf32>
    %132 = vector.shape_cast %131 : vector<1x8x1x1x8xf32> to vector<8x8xf32>
    %c0_118 = arith.constant 0 : index
    %c0_119 = arith.constant 0 : index
    %c0_120 = arith.constant 0 : index
    %c3_121 = arith.constant 3 : index
    %c0_122 = arith.constant 0 : index
    %133 = vector.load %arg4[%c0_118, %c0_119, %c0_120, %c3_121, %c0_122] : memref<1x8x1x4x8xf32, #tpu.memory_space<vmem>>, vector<1x8x1x1x8xf32>
    %134 = vector.shape_cast %133 : vector<1x8x1x1x8xf32> to vector<8x8xf32>
    %c0_123 = arith.constant 0 : index
    %c0_124 = arith.constant 0 : index
    %c0_125 = arith.constant 0 : index
    %c3_126 = arith.constant 3 : index
    %c0_127 = arith.constant 0 : index
    %135 = vector.load %arg5[%c0_123, %c0_124, %c0_125, %c3_126, %c0_127] : memref<1x8x1x4x8xf32, #tpu.memory_space<vmem>>, vector<1x8x1x1x8xf32>
    %136 = vector.shape_cast %135 : vector<1x8x1x1x8xf32> to vector<8x8xf32>
    %cst_128 = arith.constant dense<0.000000e+00> : vector<8x8xf32>
    %137 = tpu.matmul %132, %134, %cst_128 {dimension_numbers = #tpu.dot_dimension_numbers<[1], [1], [0], [0], [0, 0, 1, 0], [], []>} : vector<8x8xf32>, vector<8x8xf32>, vector<8x8xf32> -> vector<8x8xf32>
    %cst_129 = arith.constant 0.353553385 : f32
    %138 = vector.broadcast %cst_129 : f32 to vector<8x8xf32>
    %139 = arith.mulf %137, %138 : vector<8x8xf32>
    %140 = vector.broadcast %4 : vector<1x8xf32> to vector<8x8xf32>
    %141 = arith.addf %139, %140 : vector<8x8xf32>
    %c3_130 = arith.constant 3 : index
    %c0_131 = arith.constant 0 : index
    %c0_132 = arith.constant 0 : index
    %142 = vector.load %arg8[%c3_130, %c0_131, %c0_132] : memref<4x8x1xf32, #tpu.memory_space<vmem>>, vector<1x8x1xf32>
    %143 = vector.shape_cast %142 : vector<1x8x1xf32> to vector<8x1xf32>
    %cst_133 = arith.constant dense<0xFF800000> : vector<8xf32>
    %144 = vector.multi_reduction <maximumf>, %141, %cst_133 [1] : vector<8x8xf32> to vector<8xf32>
    %145 = vector.shape_cast %144 : vector<8xf32> to vector<8x1xf32>
    %146 = arith.maximumf %143, %145 : vector<8x1xf32>
    %147 = arith.subf %143, %146 : vector<8x1xf32>
    %148 = math.exp %147 : vector<8x1xf32>
    %149 = vector.broadcast %146 : vector<8x1xf32> to vector<8x8xf32>
    %150 = arith.subf %141, %149 : vector<8x8xf32>
    %151 = math.exp %150 : vector<8x8xf32>
    %c3_134 = arith.constant 3 : index
    %c0_135 = arith.constant 0 : index
    %c0_136 = arith.constant 0 : index
    %152 = vector.load %arg9[%c3_134, %c0_135, %c0_136] : memref<4x8x1xf32, #tpu.memory_space<vmem>>, vector<1x8x1xf32>
    %153 = vector.shape_cast %152 : vector<1x8x1xf32> to vector<8x1xf32>
    %154 = arith.mulf %148, %153 : vector<8x1xf32>
    %cst_137 = arith.constant dense<0.000000e+00> : vector<8xf32>
    %155 = vector.multi_reduction <add>, %151, %cst_137 [1] : vector<8x8xf32> to vector<8xf32>
    %156 = vector.shape_cast %155 : vector<8xf32> to vector<8x1xf32>
    %157 = arith.addf %154, %156 : vector<8x1xf32>
    %c3_138 = arith.constant 3 : index
    %c0_139 = arith.constant 0 : index
    %c0_140 = arith.constant 0 : index
    %158 = vector.load %arg9[%c3_138, %c0_139, %c0_140] : memref<4x8x1xf32, #tpu.memory_space<vmem>>, vector<1x8x1xf32>
    %159 = vector.shape_cast %158 : vector<1x8x1xf32> to vector<8x1xf32>
    %160 = vector.shape_cast %157 : vector<8x1xf32> to vector<1x8x1xf32>
    tpu.vector_store %arg9[%c3_138, %c0_139, %c0_140], %160 {strides = array<i32>} : memref<4x8x1xf32, #tpu.memory_space<vmem>>, vector<1x8x1xf32>,
    %c3_141 = arith.constant 3 : index
    %c0_142 = arith.constant 0 : index
    %c0_143 = arith.constant 0 : index
    %161 = vector.load %arg10[%c3_141, %c0_142, %c0_143] : memref<4x8x8xf32, #tpu.memory_space<vmem>>, vector<1x8x8xf32>
    %162 = vector.shape_cast %161 : vector<1x8x8xf32> to vector<8x8xf32>
    %163 = vector.broadcast %148 : vector<8x1xf32> to vector<8x8xf32>
    %164 = arith.mulf %163, %162 : vector<8x8xf32>
    %cst_144 = arith.constant dense<0.000000e+00> : vector<8x8xf32>
    %165 = tpu.matmul %151, %136, %cst_144 {dimension_numbers = #tpu.dot_dimension_numbers<[1], [0], [0], [1], [0, 0, 1, 1], [], []>} : vector<8x8xf32>, vector<8x8xf32>, vector<8x8xf32> -> vector<8x8xf32>
    %166 = arith.addf %164, %165 : vector<8x8xf32>
    %c3_145 = arith.constant 3 : index
    %c0_146 = arith.constant 0 : index
    %c0_147 = arith.constant 0 : index
    %167 = vector.load %arg10[%c3_145, %c0_146, %c0_147] : memref<4x8x8xf32, #tpu.memory_space<vmem>>, vector<1x8x8xf32>
    %168 = vector.shape_cast %167 : vector<1x8x8xf32> to vector<8x8xf32>
    %169 = vector.shape_cast %166 : vector<8x8xf32> to vector<1x8x8xf32>
    tpu.vector_store %arg10[%c3_145, %c0_146, %c0_147], %169 {strides = array<i32>} : memref<4x8x8xf32, #tpu.memory_space<vmem>>, vector<1x8x8xf32>,
    %c3_148 = arith.constant 3 : index
    %c0_149 = arith.constant 0 : index
    %c0_150 = arith.constant 0 : index
    %170 = vector.load %arg8[%c3_148, %c0_149, %c0_150] : memref<4x8x1xf32, #tpu.memory_space<vmem>>, vector<1x8x1xf32>
    %171 = vector.shape_cast %170 : vector<1x8x1xf32> to vector<8x1xf32>
    %172 = vector.shape_cast %146 : vector<8x1xf32> to vector<1x8x1xf32>
    tpu.vector_store %arg8[%c3_148, %c0_149, %c0_150], %172 {strides = array<i32>} : memref<4x8x1xf32, #tpu.memory_space<vmem>>, vector<1x8x1xf32>,
    %c0_i32_151 = arith.constant 0 : i32
    %173 = arith.cmpi eq, %arg2, %c0_i32_151 : i32
    %174 = arith.extui %173 : i1 to i32
    %c0_i32_152 = arith.constant 0 : i32
    %175 = arith.cmpi ne, %174, %c0_i32_152 : i32
    scf.if %175 {
      %c0_153 = arith.constant 0 : index
      %c0_154 = arith.constant 0 : index
      %c0_155 = arith.constant 0 : index
      %176 = vector.load %arg9[%c0_153, %c0_154, %c0_155] : memref<4x8x1xf32, #tpu.memory_space<vmem>>, vector<1x8x1xf32>
      %177 = vector.shape_cast %176 : vector<1x8x1xf32> to vector<8x1xf32>
      %178 = tpu.reciprocal %177 {approx = true} : vector<8x1xf32> -> vector<8x1xf32>
      %c0_156 = arith.constant 0 : index
      %c0_157 = arith.constant 0 : index
      %c0_158 = arith.constant 0 : index
      %179 = vector.load %arg10[%c0_156, %c0_157, %c0_158] : memref<4x8x8xf32, #tpu.memory_space<vmem>>, vector<1x8x8xf32>
      %180 = vector.shape_cast %179 : vector<1x8x8xf32> to vector<8x8xf32>
      %181 = vector.broadcast %178 : vector<8x1xf32> to vector<8x8xf32>
      %182 = arith.mulf %180, %181 : vector<8x8xf32>
      %c0_159 = arith.constant 0 : index
      %c0_160 = arith.constant 0 : index
      %c0_161 = arith.constant 0 : index
      %183 = vector.load %arg7[%c0_159, %c0_160, %c0_161] : memref<1x8x32xf32, #tpu.memory_space<vmem>>, vector<1x8x8xf32>
      %184 = vector.shape_cast %183 : vector<1x8x8xf32> to vector<8x8xf32>
      %185 = vector.shape_cast %182 : vector<8x8xf32> to vector<1x8x8xf32>
      tpu.vector_store %arg7[%c0_159, %c0_160, %c0_161], %185 {strides = array<i32>} : memref<1x8x32xf32, #tpu.memory_space<vmem>>, vector<1x8x8xf32>,
      %c1_162 = arith.constant 1 : index
      %c0_163 = arith.constant 0 : index
      %c0_164 = arith.constant 0 : index
      %186 = vector.load %arg9[%c1_162, %c0_163, %c0_164] : memref<4x8x1xf32, #tpu.memory_space<vmem>>, vector<1x8x1xf32>
      %187 = vector.shape_cast %186 : vector<1x8x1xf32> to vector<8x1xf32>
      %188 = tpu.reciprocal %187 {approx = true} : vector<8x1xf32> -> vector<8x1xf32>
      %c1_165 = arith.constant 1 : index
      %c0_166 = arith.constant 0 : index
      %c0_167 = arith.constant 0 : index
      %189 = vector.load %arg10[%c1_165, %c0_166, %c0_167] : memref<4x8x8xf32, #tpu.memory_space<vmem>>, vector<1x8x8xf32>
      %190 = vector.shape_cast %189 : vector<1x8x8xf32> to vector<8x8xf32>
      %191 = vector.broadcast %188 : vector<8x1xf32> to vector<8x8xf32>
      %192 = arith.mulf %190, %191 : vector<8x8xf32>
      %c0_168 = arith.constant 0 : index
      %c0_169 = arith.constant 0 : index
      %c8 = arith.constant 8 : index
      %193 = vector.load %arg7[%c0_168, %c0_169, %c8] : memref<1x8x32xf32, #tpu.memory_space<vmem>>, vector<1x8x8xf32>
      %194 = vector.shape_cast %193 : vector<1x8x8xf32> to vector<8x8xf32>
      %195 = vector.shape_cast %192 : vector<8x8xf32> to vector<1x8x8xf32>
      tpu.vector_store %arg7[%c0_168, %c0_169, %c8], %195 {strides = array<i32>} : memref<1x8x32xf32, #tpu.memory_space<vmem>>, vector<1x8x8xf32>,
      %c2_170 = arith.constant 2 : index
      %c0_171 = arith.constant 0 : index
      %c0_172 = arith.constant 0 : index
      %196 = vector.load %arg9[%c2_170, %c0_171, %c0_172] : memref<4x8x1xf32, #tpu.memory_space<vmem>>, vector<1x8x1xf32>
      %197 = vector.shape_cast %196 : vector<1x8x1xf32> to vector<8x1xf32>
      %198 = tpu.reciprocal %197 {approx = true} : vector<8x1xf32> -> vector<8x1xf32>
      %c2_173 = arith.constant 2 : index
      %c0_174 = arith.constant 0 : index
      %c0_175 = arith.constant 0 : index
      %199 = vector.load %arg10[%c2_173, %c0_174, %c0_175] : memref<4x8x8xf32, #tpu.memory_space<vmem>>, vector<1x8x8xf32>
      %200 = vector.shape_cast %199 : vector<1x8x8xf32> to vector<8x8xf32>
      %201 = vector.broadcast %198 : vector<8x1xf32> to vector<8x8xf32>
      %202 = arith.mulf %200, %201 : vector<8x8xf32>
      %c0_176 = arith.constant 0 : index
      %c0_177 = arith.constant 0 : index
      %c16 = arith.constant 16 : index
      %203 = vector.load %arg7[%c0_176, %c0_177, %c16] : memref<1x8x32xf32, #tpu.memory_space<vmem>>, vector<1x8x8xf32>
      %204 = vector.shape_cast %203 : vector<1x8x8xf32> to vector<8x8xf32>
      %205 = vector.shape_cast %202 : vector<8x8xf32> to vector<1x8x8xf32>
      tpu.vector_store %arg7[%c0_176, %c0_177, %c16], %205 {strides = array<i32>} : memref<1x8x32xf32, #tpu.memory_space<vmem>>, vector<1x8x8xf32>,
      %c3_178 = arith.constant 3 : index
      %c0_179 = arith.constant 0 : index
      %c0_180 = arith.constant 0 : index
      %206 = vector.load %arg9[%c3_178, %c0_179, %c0_180] : memref<4x8x1xf32, #tpu.memory_space<vmem>>, vector<1x8x1xf32>
      %207 = vector.shape_cast %206 : vector<1x8x1xf32> to vector<8x1xf32>
      %208 = tpu.reciprocal %207 {approx = true} : vector<8x1xf32> -> vector<8x1xf32>
      %c3_181 = arith.constant 3 : index
      %c0_182 = arith.constant 0 : index
      %c0_183 = arith.constant 0 : index
      %209 = vector.load %arg10[%c3_181, %c0_182, %c0_183] : memref<4x8x8xf32, #tpu.memory_space<vmem>>, vector<1x8x8xf32>
      %210 = vector.shape_cast %209 : vector<1x8x8xf32> to vector<8x8xf32>
      %211 = vector.broadcast %208 : vector<8x1xf32> to vector<8x8xf32>
      %212 = arith.mulf %210, %211 : vector<8x8xf32>
      %c0_184 = arith.constant 0 : index
      %c0_185 = arith.constant 0 : index
      %c24 = arith.constant 24 : index
      %213 = vector.load %arg7[%c0_184, %c0_185, %c24] : memref<1x8x32xf32, #tpu.memory_space<vmem>>, vector<1x8x8xf32>
      %214 = vector.shape_cast %213 : vector<1x8x8xf32> to vector<8x8xf32>
      %215 = vector.shape_cast %212 : vector<8x8xf32> to vector<1x8x8xf32>
      tpu.vector_store %arg7[%c0_184, %c0_185, %c24], %215 {strides = array<i32>} : memref<1x8x32xf32, #tpu.memory_space<vmem>>, vector<1x8x8xf32>,
    } else {
    }
    return
  }
  func.func @transform_0(%arg0: i32, %arg1: i32, %arg2: i32) -> (i32, i32, i32, i32, i32) {
    %c0_i32 = arith.constant 0 : i32
    %c0_i32_0 = arith.constant 0 : i32
    %c0_i32_1 = arith.constant 0 : i32
    %c0_i32_2 = arith.constant 0 : i32
    return %arg0, %arg1, %c0_i32, %c0_i32_0, %c0_i32_1 : i32, i32, i32, i32, i32
  }
  func.func @transform_1(%arg0: i32, %arg1: i32, %arg2: i32) -> (i32, i32, i32, i32, i32) {
    %c1_i32 = arith.constant 1 : i32
    %c0_i32 = arith.constant 0 : i32
    %c0_i32_0 = arith.constant 0 : i32
    %c0_i32_1 = arith.constant 0 : i32
    return %arg0, %arg2, %c1_i32, %c0_i32, %c0_i32_0 : i32, i32, i32, i32, i32
  }
  func.func @transform_2(%arg0: i32, %arg1: i32, %arg2: i32) -> (i32, i32, i32, i32, i32) {
    %c2_i32 = arith.constant 2 : i32
    %c0_i32 = arith.constant 0 : i32
    %c0_i32_0 = arith.constant 0 : i32
    %c0_i32_1 = arith.constant 0 : i32
    return %arg0, %arg2, %c2_i32, %c0_i32, %c0_i32_0 : i32, i32, i32, i32, i32
  }
  func.func @transform_3(%arg0: i32, %arg1: i32, %arg2: i32) -> (i32, i32, i32) {
    %c0_i32 = arith.constant 0 : i32
    %c0_i32_0 = arith.constant 0 : i32
    return %arg0, %c0_i32, %arg2 : i32, i32, i32
  }
  func.func @transform_4(%arg0: i32, %arg1: i32, %arg2: i32) -> (i32, i32, i32) {
    %c0_i32 = arith.constant 0 : i32
    %c0_i32_0 = arith.constant 0 : i32
    return %arg0, %arg1, %c0_i32 : i32, i32, i32
  }
}

module attributes {stable_mosaic.version = 11 : i64} {
  func.func @_ffn_ln_kernel(%arg0: i32, %arg1: i32, %arg2: memref<16x32xf32, #tpu.memory_space<vmem>>, %arg3: memref<32x128xf32, #tpu.memory_space<vmem>>, %arg4: memref<1x128xf32, #tpu.memory_space<vmem>>, %arg5: memref<128x32xf32, #tpu.memory_space<vmem>>, %arg6: memref<1x32xf32, #tpu.memory_space<vmem>>, %arg7: memref<1x32xf32, #tpu.memory_space<vmem>>, %arg8: memref<1x32xf32, #tpu.memory_space<vmem>>, %arg9: memref<16x32xf32, #tpu.memory_space<vmem>>, %arg10: memref<16x32xf32, #tpu.memory_space<vmem>>) attributes {dimension_semantics = [#tpu.dimension_semantics<parallel>, #tpu.dimension_semantics<arbitrary>], iteration_bounds = array<i64: 1, 1>, scalar_prefetch = 0 : i64, scratch_operands = 1 : i64, tpu.core_type = #tpu.core_type<tc>, window_params = [{transform_indices = @transform_0, window_bounds = array<i64: 16, 32>}, {transform_indices = @transform_1, window_bounds = array<i64: 32, 128>}, {transform_indices = @transform_2, window_bounds = array<i64: 1, 128>}, {transform_indices = @transform_3, window_bounds = array<i64: 128, 32>}, {pipeline_mode = #tpu.pipeline_mode<synchronous>, transform_indices = @transform_4, window_bounds = array<i64: 1, 32>}, {pipeline_mode = #tpu.pipeline_mode<synchronous>, transform_indices = @transform_5, window_bounds = array<i64: 1, 32>}, {pipeline_mode = #tpu.pipeline_mode<synchronous>, transform_indices = @transform_6, window_bounds = array<i64: 1, 32>}, {transform_indices = @transform_7, window_bounds = array<i64: 16, 32>}]} {
    %c0_i32 = arith.constant 0 : i32
    %0 = arith.cmpi eq, %arg1, %c0_i32 : i32
    %1 = arith.extui %0 : i1 to i32
    %c0_i32_0 = arith.constant 0 : i32
    %2 = arith.cmpi ne, %1, %c0_i32_0 : i32
    scf.if %2 {
      %cst_31 = arith.constant 0.000000e+00 : f32
      %58 = vector.broadcast %cst_31 : f32 to vector<16x32xf32>
      %c0_32 = arith.constant 0 : index
      %c0_33 = arith.constant 0 : index
      %59 = vector.load %arg10[%c0_32, %c0_33] : memref<16x32xf32, #tpu.memory_space<vmem>>, vector<16x32xf32>
      tpu.vector_store %arg10[%c0_32, %c0_33], %58 {strides = array<i32>} : memref<16x32xf32, #tpu.memory_space<vmem>>, vector<16x32xf32>,
    } else {
    }
    %c0 = arith.constant 0 : index
    %c0_1 = arith.constant 0 : index
    %3 = vector.load %arg2[%c0, %c0_1] : memref<16x32xf32, #tpu.memory_space<vmem>>, vector<16x32xf32>
    %c0_2 = arith.constant 0 : index
    %c0_3 = arith.constant 0 : index
    %4 = vector.load %arg3[%c0_2, %c0_3] : memref<32x128xf32, #tpu.memory_space<vmem>>, vector<32x128xf32>
    %cst = arith.constant dense<0.000000e+00> : vector<16x128xf32>
    %5 = tpu.matmul %3, %4, %cst {dimension_numbers = #tpu.dot_dimension_numbers<[1], [0], [0], [1], [0, 0, 1, 1], [], []>} : vector<16x32xf32>, vector<32x128xf32>, vector<16x128xf32> -> vector<16x128xf32>
    %c0_4 = arith.constant 0 : index
    %c0_5 = arith.constant 0 : index
    %6 = vector.load %arg4[%c0_4, %c0_5] : memref<1x128xf32, #tpu.memory_space<vmem>>, vector<1x128xf32>
    %7 = vector.broadcast %6 : vector<1x128xf32> to vector<16x128xf32>
    %8 = arith.addf %5, %7 : vector<16x128xf32>
    %cst_6 = arith.constant 5.000000e-01 : f32
    %9 = vector.broadcast %cst_6 : f32 to vector<16x128xf32>
    %10 = arith.mulf %8, %9 : vector<16x128xf32>
    %cst_7 = arith.constant 0.707106769 : f32
    %11 = vector.broadcast %cst_7 : f32 to vector<16x128xf32>
    %12 = arith.mulf %8, %11 : vector<16x128xf32>
    %cst_8 = arith.constant 0.000000e+00 : f32
    %13 = vector.broadcast %cst_8 : f32 to vector<16x128xf32>
    %14 = arith.cmpf oge, %12, %13 : vector<16x128xf32>
    %cst_9 = arith.constant 1.000000e+00 : f32
    %cst_10 = arith.constant -1.000000e+00 : f32
    %15 = vector.broadcast %cst_9 : f32 to vector<16x128xf32>
    %16 = vector.broadcast %cst_10 : f32 to vector<16x128xf32>
    %17 = arith.select %14, %15, %16 : vector<16x128xi1>, vector<16x128xf32>
    %18 = arith.mulf %12, %17 : vector<16x128xf32>
    %cst_11 = arith.constant 0.327591091 : f32
    %19 = vector.broadcast %cst_11 : f32 to vector<16x128xf32>
    %20 = arith.mulf %19, %18 : vector<16x128xf32>
    %cst_12 = arith.constant 1.000000e+00 : f32
    %21 = vector.broadcast %cst_12 : f32 to vector<16x128xf32>
    %22 = arith.addf %21, %20 : vector<16x128xf32>
    %cst_13 = arith.constant 1.000000e+00 : f32
    %23 = vector.broadcast %cst_13 : f32 to vector<16x128xf32>
    %24 = arith.divf %23, %22 : vector<16x128xf32>
    %cst_14 = arith.constant 1.06140542 : f32
    %25 = vector.broadcast %cst_14 : f32 to vector<16x128xf32>
    %26 = arith.mulf %25, %24 : vector<16x128xf32>
    %cst_15 = arith.constant -1.45315206 : f32
    %27 = vector.broadcast %cst_15 : f32 to vector<16x128xf32>
    %28 = arith.addf %26, %27 : vector<16x128xf32>
    %29 = arith.mulf %28, %24 : vector<16x128xf32>
    %cst_16 = arith.constant 1.42141378 : f32
    %30 = vector.broadcast %cst_16 : f32 to vector<16x128xf32>
    %31 = arith.addf %29, %30 : vector<16x128xf32>
    %32 = arith.mulf %31, %24 : vector<16x128xf32>
    %cst_17 = arith.constant -0.284496725 : f32
    %33 = vector.broadcast %cst_17 : f32 to vector<16x128xf32>
    %34 = arith.addf %32, %33 : vector<16x128xf32>
    %35 = arith.mulf %34, %24 : vector<16x128xf32>
    %cst_18 = arith.constant 0.254829586 : f32
    %36 = vector.broadcast %cst_18 : f32 to vector<16x128xf32>
    %37 = arith.addf %35, %36 : vector<16x128xf32>
    %38 = arith.mulf %37, %24 : vector<16x128xf32>
    %cst_19 = arith.constant 0.000000e+00 : f32
    %39 = vector.broadcast %cst_19 : f32 to vector<16x128xf32>
    %40 = arith.subf %39, %18 : vector<16x128xf32>
    %41 = arith.mulf %40, %18 : vector<16x128xf32>
    %42 = math.exp %41 : vector<16x128xf32>
    %43 = arith.mulf %38, %42 : vector<16x128xf32>
    %cst_20 = arith.constant 1.000000e+00 : f32
    %44 = vector.broadcast %cst_20 : f32 to vector<16x128xf32>
    %45 = arith.subf %44, %43 : vector<16x128xf32>
    %46 = arith.mulf %17, %45 : vector<16x128xf32>
    %cst_21 = arith.constant 1.000000e+00 : f32
    %47 = vector.broadcast %cst_21 : f32 to vector<16x128xf32>
    %48 = arith.addf %47, %46 : vector<16x128xf32>
    %49 = arith.mulf %10, %48 : vector<16x128xf32>
    %c0_22 = arith.constant 0 : index
    %c0_23 = arith.constant 0 : index
    %50 = vector.load %arg10[%c0_22, %c0_23] : memref<16x32xf32, #tpu.memory_space<vmem>>, vector<16x32xf32>
    %c0_24 = arith.constant 0 : index
    %c0_25 = arith.constant 0 : index
    %51 = vector.load %arg5[%c0_24, %c0_25] : memref<128x32xf32, #tpu.memory_space<vmem>>, vector<128x32xf32>
    %cst_26 = arith.constant dense<0.000000e+00> : vector<16x32xf32>
    %52 = tpu.matmul %49, %51, %cst_26 {dimension_numbers = #tpu.dot_dimension_numbers<[1], [0], [0], [1], [0, 0, 1, 1], [], []>} : vector<16x128xf32>, vector<128x32xf32>, vector<16x32xf32> -> vector<16x32xf32>
    %53 = arith.addf %50, %52 : vector<16x32xf32>
    %c0_27 = arith.constant 0 : index
    %c0_28 = arith.constant 0 : index
    %54 = vector.load %arg10[%c0_27, %c0_28] : memref<16x32xf32, #tpu.memory_space<vmem>>, vector<16x32xf32>
    tpu.vector_store %arg10[%c0_27, %c0_28], %53 {strides = array<i32>} : memref<16x32xf32, #tpu.memory_space<vmem>>, vector<16x32xf32>,
    %c0_i32_29 = arith.constant 0 : i32
    %55 = arith.cmpi eq, %arg1, %c0_i32_29 : i32
    %56 = arith.extui %55 : i1 to i32
    %c0_i32_30 = arith.constant 0 : i32
    %57 = arith.cmpi ne, %56, %c0_i32_30 : i32
    scf.if %57 {
      %c0_31 = arith.constant 0 : index
      %c0_32 = arith.constant 0 : index
      %58 = vector.load %arg2[%c0_31, %c0_32] : memref<16x32xf32, #tpu.memory_space<vmem>>, vector<16x32xf32>
      %c0_33 = arith.constant 0 : index
      %c0_34 = arith.constant 0 : index
      %59 = vector.load %arg10[%c0_33, %c0_34] : memref<16x32xf32, #tpu.memory_space<vmem>>, vector<16x32xf32>
      %60 = arith.addf %58, %59 : vector<16x32xf32>
      %c0_35 = arith.constant 0 : index
      %c0_36 = arith.constant 0 : index
      %61 = vector.load %arg6[%c0_35, %c0_36] : memref<1x32xf32, #tpu.memory_space<vmem>>, vector<1x32xf32>
      %62 = vector.broadcast %61 : vector<1x32xf32> to vector<16x32xf32>
      %63 = arith.addf %60, %62 : vector<16x32xf32>
      %c0_37 = arith.constant 0 : index
      %c0_38 = arith.constant 0 : index
      %64 = vector.load %arg7[%c0_37, %c0_38] : memref<1x32xf32, #tpu.memory_space<vmem>>, vector<1x32xf32>
      %c0_39 = arith.constant 0 : index
      %c0_40 = arith.constant 0 : index
      %65 = vector.load %arg8[%c0_39, %c0_40] : memref<1x32xf32, #tpu.memory_space<vmem>>, vector<1x32xf32>
      %cst_41 = arith.constant dense<0.000000e+00> : vector<16xf32>
      %66 = vector.multi_reduction <add>, %63, %cst_41 [1] : vector<16x32xf32> to vector<16xf32>
      %67 = vector.shape_cast %66 : vector<16xf32> to vector<16x1xf32>
      %cst_42 = arith.constant 3.200000e+01 : f32
      %68 = vector.broadcast %cst_42 : f32 to vector<16x1xf32>
      %69 = arith.divf %67, %68 : vector<16x1xf32>
      %70 = vector.broadcast %69 : vector<16x1xf32> to vector<16x32xf32>
      %71 = arith.subf %63, %70 : vector<16x32xf32>
      %72 = arith.mulf %71, %71 : vector<16x32xf32>
      %cst_43 = arith.constant dense<0.000000e+00> : vector<16xf32>
      %73 = vector.multi_reduction <add>, %72, %cst_43 [1] : vector<16x32xf32> to vector<16xf32>
      %74 = vector.shape_cast %73 : vector<16xf32> to vector<16x1xf32>
      %cst_44 = arith.constant 3.200000e+01 : f32
      %75 = vector.broadcast %cst_44 : f32 to vector<16x1xf32>
      %76 = arith.divf %74, %75 : vector<16x1xf32>
      %cst_45 = arith.constant 9.99999996E-13 : f32
      %77 = vector.broadcast %cst_45 : f32 to vector<16x1xf32>
      %78 = arith.addf %76, %77 : vector<16x1xf32>
      %79 = math.rsqrt %78 : vector<16x1xf32>
      %80 = vector.broadcast %79 : vector<16x1xf32> to vector<16x32xf32>
      %81 = vector.broadcast %64 : vector<1x32xf32> to vector<16x32xf32>
      %82 = arith.mulf %80, %81 : vector<16x32xf32>
      %83 = arith.mulf %71, %82 : vector<16x32xf32>
      %84 = vector.broadcast %65 : vector<1x32xf32> to vector<16x32xf32>
      %85 = arith.addf %83, %84 : vector<16x32xf32>
      %c0_46 = arith.constant 0 : index
      %c0_47 = arith.constant 0 : index
      %86 = vector.load %arg9[%c0_46, %c0_47] : memref<16x32xf32, #tpu.memory_space<vmem>>, vector<16x32xf32>
      tpu.vector_store %arg9[%c0_46, %c0_47], %85 {strides = array<i32>} : memref<16x32xf32, #tpu.memory_space<vmem>>, vector<16x32xf32>,
    } else {
    }
    return
  }
  func.func @transform_0(%arg0: i32, %arg1: i32) -> (i32, i32) {
    %c0_i32 = arith.constant 0 : i32
    %c0_i32_0 = arith.constant 0 : i32
    return %arg0, %c0_i32 : i32, i32
  }
  func.func @transform_1(%arg0: i32, %arg1: i32) -> (i32, i32) {
    %c0_i32 = arith.constant 0 : i32
    %c0_i32_0 = arith.constant 0 : i32
    return %c0_i32, %arg1 : i32, i32
  }
  func.func @transform_2(%arg0: i32, %arg1: i32) -> (i32, i32) {
    %c0_i32 = arith.constant 0 : i32
    %c0_i32_0 = arith.constant 0 : i32
    return %c0_i32, %arg1 : i32, i32
  }
  func.func @transform_3(%arg0: i32, %arg1: i32) -> (i32, i32) {
    %c0_i32 = arith.constant 0 : i32
    %c0_i32_0 = arith.constant 0 : i32
    return %arg1, %c0_i32 : i32, i32
  }
  func.func @transform_4(%arg0: i32, %arg1: i32) -> (i32, i32) {
    %c0_i32 = arith.constant 0 : i32
    %c0_i32_0 = arith.constant 0 : i32
    %c0_i32_1 = arith.constant 0 : i32
    return %c0_i32, %c0_i32_0 : i32, i32
  }
  func.func @transform_5(%arg0: i32, %arg1: i32) -> (i32, i32) {
    %c0_i32 = arith.constant 0 : i32
    %c0_i32_0 = arith.constant 0 : i32
    %c0_i32_1 = arith.constant 0 : i32
    return %c0_i32, %c0_i32_0 : i32, i32
  }
  func.func @transform_6(%arg0: i32, %arg1: i32) -> (i32, i32) {
    %c0_i32 = arith.constant 0 : i32
    %c0_i32_0 = arith.constant 0 : i32
    %c0_i32_1 = arith.constant 0 : i32
    return %c0_i32, %c0_i32_0 : i32, i32
  }
  func.func @transform_7(%arg0: i32, %arg1: i32) -> (i32, i32) {
    %c0_i32 = arith.constant 0 : i32
    %c0_i32_0 = arith.constant 0 : i32
    return %arg0, %c0_i32 : i32, i32
  }
}

module attributes {stable_mosaic.version = 11 : i64} {
  func.func @_ffn_ln_kernel(%arg0: i32, %arg1: i32, %arg2: memref<16x32xf32, #tpu.memory_space<vmem>>, %arg3: memref<32x128xf32, #tpu.memory_space<vmem>>, %arg4: memref<1x128xf32, #tpu.memory_space<vmem>>, %arg5: memref<128x32xf32, #tpu.memory_space<vmem>>, %arg6: memref<1x32xf32, #tpu.memory_space<vmem>>, %arg7: memref<1x32xf32, #tpu.memory_space<vmem>>, %arg8: memref<1x32xf32, #tpu.memory_space<vmem>>, %arg9: memref<16x32xf32, #tpu.memory_space<vmem>>, %arg10: memref<16x32xf32, #tpu.memory_space<vmem>>) attributes {dimension_semantics = [#tpu.dimension_semantics<parallel>, #tpu.dimension_semantics<arbitrary>], iteration_bounds = array<i64: 1, 1>, scalar_prefetch = 0 : i64, scratch_operands = 1 : i64, tpu.core_type = #tpu.core_type<tc>, window_params = [{transform_indices = @transform_0, window_bounds = array<i64: 16, 32>}, {transform_indices = @transform_1, window_bounds = array<i64: 32, 128>}, {transform_indices = @transform_2, window_bounds = array<i64: 1, 128>}, {transform_indices = @transform_3, window_bounds = array<i64: 128, 32>}, {pipeline_mode = #tpu.pipeline_mode<synchronous>, transform_indices = @transform_4, window_bounds = array<i64: 1, 32>}, {pipeline_mode = #tpu.pipeline_mode<synchronous>, transform_indices = @transform_5, window_bounds = array<i64: 1, 32>}, {pipeline_mode = #tpu.pipeline_mode<synchronous>, transform_indices = @transform_6, window_bounds = array<i64: 1, 32>}, {transform_indices = @transform_7, window_bounds = array<i64: 16, 32>}]} {
    %c0_i32 = arith.constant 0 : i32
    %0 = arith.cmpi eq, %arg1, %c0_i32 : i32
    %1 = arith.extui %0 : i1 to i32
    %c0_i32_0 = arith.constant 0 : i32
    %2 = arith.cmpi ne, %1, %c0_i32_0 : i32
    scf.if %2 {
      %cst_31 = arith.constant 0.000000e+00 : f32
      %58 = vector.broadcast %cst_31 : f32 to vector<16x32xf32>
      %c0_32 = arith.constant 0 : index
      %c0_33 = arith.constant 0 : index
      %59 = vector.load %arg10[%c0_32, %c0_33] : memref<16x32xf32, #tpu.memory_space<vmem>>, vector<16x32xf32>
      tpu.vector_store %arg10[%c0_32, %c0_33], %58 {strides = array<i32>} : memref<16x32xf32, #tpu.memory_space<vmem>>, vector<16x32xf32>,
    } else {
    }
    %c0 = arith.constant 0 : index
    %c0_1 = arith.constant 0 : index
    %3 = vector.load %arg2[%c0, %c0_1] : memref<16x32xf32, #tpu.memory_space<vmem>>, vector<16x32xf32>
    %c0_2 = arith.constant 0 : index
    %c0_3 = arith.constant 0 : index
    %4 = vector.load %arg3[%c0_2, %c0_3] : memref<32x128xf32, #tpu.memory_space<vmem>>, vector<32x128xf32>
    %cst = arith.constant dense<0.000000e+00> : vector<16x128xf32>
    %5 = tpu.matmul %3, %4, %cst {dimension_numbers = #tpu.dot_dimension_numbers<[1], [0], [0], [1], [0, 0, 1, 1], [], []>} : vector<16x32xf32>, vector<32x128xf32>, vector<16x128xf32> -> vector<16x128xf32>
    %c0_4 = arith.constant 0 : index
    %c0_5 = arith.constant 0 : index
    %6 = vector.load %arg4[%c0_4, %c0_5] : memref<1x128xf32, #tpu.memory_space<vmem>>, vector<1x128xf32>
    %7 = vector.broadcast %6 : vector<1x128xf32> to vector<16x128xf32>
    %8 = arith.addf %5, %7 : vector<16x128xf32>
    %cst_6 = arith.constant 5.000000e-01 : f32
    %9 = vector.broadcast %cst_6 : f32 to vector<16x128xf32>
    %10 = arith.mulf %8, %9 : vector<16x128xf32>
    %cst_7 = arith.constant 0.707106769 : f32
    %11 = vector.broadcast %cst_7 : f32 to vector<16x128xf32>
    %12 = arith.mulf %8, %11 : vector<16x128xf32>
    %cst_8 = arith.constant 0.000000e+00 : f32
    %13 = vector.broadcast %cst_8 : f32 to vector<16x128xf32>
    %14 = arith.cmpf oge, %12, %13 : vector<16x128xf32>
    %cst_9 = arith.constant 1.000000e+00 : f32
    %cst_10 = arith.constant -1.000000e+00 : f32
    %15 = vector.broadcast %cst_9 : f32 to vector<16x128xf32>
    %16 = vector.broadcast %cst_10 : f32 to vector<16x128xf32>
    %17 = arith.select %14, %15, %16 : vector<16x128xi1>, vector<16x128xf32>
    %18 = arith.mulf %12, %17 : vector<16x128xf32>
    %cst_11 = arith.constant 0.327591091 : f32
    %19 = vector.broadcast %cst_11 : f32 to vector<16x128xf32>
    %20 = arith.mulf %19, %18 : vector<16x128xf32>
    %cst_12 = arith.constant 1.000000e+00 : f32
    %21 = vector.broadcast %cst_12 : f32 to vector<16x128xf32>
    %22 = arith.addf %21, %20 : vector<16x128xf32>
    %cst_13 = arith.constant 1.000000e+00 : f32
    %23 = vector.broadcast %cst_13 : f32 to vector<16x128xf32>
    %24 = arith.divf %23, %22 : vector<16x128xf32>
    %cst_14 = arith.constant 1.06140542 : f32
    %25 = vector.broadcast %cst_14 : f32 to vector<16x128xf32>
    %26 = arith.mulf %25, %24 : vector<16x128xf32>
    %cst_15 = arith.constant -1.45315206 : f32
    %27 = vector.broadcast %cst_15 : f32 to vector<16x128xf32>
    %28 = arith.addf %26, %27 : vector<16x128xf32>
    %29 = arith.mulf %28, %24 : vector<16x128xf32>
    %cst_16 = arith.constant 1.42141378 : f32
    %30 = vector.broadcast %cst_16 : f32 to vector<16x128xf32>
    %31 = arith.addf %29, %30 : vector<16x128xf32>
    %32 = arith.mulf %31, %24 : vector<16x128xf32>
    %cst_17 = arith.constant -0.284496725 : f32
    %33 = vector.broadcast %cst_17 : f32 to vector<16x128xf32>
    %34 = arith.addf %32, %33 : vector<16x128xf32>
    %35 = arith.mulf %34, %24 : vector<16x128xf32>
    %cst_18 = arith.constant 0.254829586 : f32
    %36 = vector.broadcast %cst_18 : f32 to vector<16x128xf32>
    %37 = arith.addf %35, %36 : vector<16x128xf32>
    %38 = arith.mulf %37, %24 : vector<16x128xf32>
    %cst_19 = arith.constant 0.000000e+00 : f32
    %39 = vector.broadcast %cst_19 : f32 to vector<16x128xf32>
    %40 = arith.subf %39, %18 : vector<16x128xf32>
    %41 = arith.mulf %40, %18 : vector<16x128xf32>
    %42 = math.exp %41 : vector<16x128xf32>
    %43 = arith.mulf %38, %42 : vector<16x128xf32>
    %cst_20 = arith.constant 1.000000e+00 : f32
    %44 = vector.broadcast %cst_20 : f32 to vector<16x128xf32>
    %45 = arith.subf %44, %43 : vector<16x128xf32>
    %46 = arith.mulf %17, %45 : vector<16x128xf32>
    %cst_21 = arith.constant 1.000000e+00 : f32
    %47 = vector.broadcast %cst_21 : f32 to vector<16x128xf32>
    %48 = arith.addf %47, %46 : vector<16x128xf32>
    %49 = arith.mulf %10, %48 : vector<16x128xf32>
    %c0_22 = arith.constant 0 : index
    %c0_23 = arith.constant 0 : index
    %50 = vector.load %arg10[%c0_22, %c0_23] : memref<16x32xf32, #tpu.memory_space<vmem>>, vector<16x32xf32>
    %c0_24 = arith.constant 0 : index
    %c0_25 = arith.constant 0 : index
    %51 = vector.load %arg5[%c0_24, %c0_25] : memref<128x32xf32, #tpu.memory_space<vmem>>, vector<128x32xf32>
    %cst_26 = arith.constant dense<0.000000e+00> : vector<16x32xf32>
    %52 = tpu.matmul %49, %51, %cst_26 {dimension_numbers = #tpu.dot_dimension_numbers<[1], [0], [0], [1], [0, 0, 1, 1], [], []>} : vector<16x128xf32>, vector<128x32xf32>, vector<16x32xf32> -> vector<16x32xf32>
    %53 = arith.addf %50, %52 : vector<16x32xf32>
    %c0_27 = arith.constant 0 : index
    %c0_28 = arith.constant 0 : index
    %54 = vector.load %arg10[%c0_27, %c0_28] : memref<16x32xf32, #tpu.memory_space<vmem>>, vector<16x32xf32>
    tpu.vector_store %arg10[%c0_27, %c0_28], %53 {strides = array<i32>} : memref<16x32xf32, #tpu.memory_space<vmem>>, vector<16x32xf32>,
    %c0_i32_29 = arith.constant 0 : i32
    %55 = arith.cmpi eq, %arg1, %c0_i32_29 : i32
    %56 = arith.extui %55 : i1 to i32
    %c0_i32_30 = arith.constant 0 : i32
    %57 = arith.cmpi ne, %56, %c0_i32_30 : i32
    scf.if %57 {
      %c0_31 = arith.constant 0 : index
      %c0_32 = arith.constant 0 : index
      %58 = vector.load %arg2[%c0_31, %c0_32] : memref<16x32xf32, #tpu.memory_space<vmem>>, vector<16x32xf32>
      %c0_33 = arith.constant 0 : index
      %c0_34 = arith.constant 0 : index
      %59 = vector.load %arg10[%c0_33, %c0_34] : memref<16x32xf32, #tpu.memory_space<vmem>>, vector<16x32xf32>
      %60 = arith.addf %58, %59 : vector<16x32xf32>
      %c0_35 = arith.constant 0 : index
      %c0_36 = arith.constant 0 : index
      %61 = vector.load %arg6[%c0_35, %c0_36] : memref<1x32xf32, #tpu.memory_space<vmem>>, vector<1x32xf32>
      %62 = vector.broadcast %61 : vector<1x32xf32> to vector<16x32xf32>
      %63 = arith.addf %60, %62 : vector<16x32xf32>
      %c0_37 = arith.constant 0 : index
      %c0_38 = arith.constant 0 : index
      %64 = vector.load %arg7[%c0_37, %c0_38] : memref<1x32xf32, #tpu.memory_space<vmem>>, vector<1x32xf32>
      %c0_39 = arith.constant 0 : index
      %c0_40 = arith.constant 0 : index
      %65 = vector.load %arg8[%c0_39, %c0_40] : memref<1x32xf32, #tpu.memory_space<vmem>>, vector<1x32xf32>
      %cst_41 = arith.constant dense<0.000000e+00> : vector<16xf32>
      %66 = vector.multi_reduction <add>, %63, %cst_41 [1] : vector<16x32xf32> to vector<16xf32>
      %67 = vector.shape_cast %66 : vector<16xf32> to vector<16x1xf32>
      %cst_42 = arith.constant 3.200000e+01 : f32
      %68 = vector.broadcast %cst_42 : f32 to vector<16x1xf32>
      %69 = arith.divf %67, %68 : vector<16x1xf32>
      %70 = vector.broadcast %69 : vector<16x1xf32> to vector<16x32xf32>
      %71 = arith.subf %63, %70 : vector<16x32xf32>
      %72 = arith.mulf %71, %71 : vector<16x32xf32>
      %cst_43 = arith.constant dense<0.000000e+00> : vector<16xf32>
      %73 = vector.multi_reduction <add>, %72, %cst_43 [1] : vector<16x32xf32> to vector<16xf32>
      %74 = vector.shape_cast %73 : vector<16xf32> to vector<16x1xf32>
      %cst_44 = arith.constant 3.200000e+01 : f32
      %75 = vector.broadcast %cst_44 : f32 to vector<16x1xf32>
      %76 = arith.divf %74, %75 : vector<16x1xf32>
      %cst_45 = arith.constant 9.99999996E-13 : f32
      %77 = vector.broadcast %cst_45 : f32 to vector<16x1xf32>
      %78 = arith.addf %76, %77 : vector<16x1xf32>
      %79 = math.rsqrt %78 : vector<16x1xf32>
      %80 = vector.broadcast %79 : vector<16x1xf32> to vector<16x32xf32>
      %81 = vector.broadcast %64 : vector<1x32xf32> to vector<16x32xf32>
      %82 = arith.mulf %80, %81 : vector<16x32xf32>
      %83 = arith.mulf %71, %82 : vector<16x32xf32>
      %84 = vector.broadcast %65 : vector<1x32xf32> to vector<16x32xf32>
      %85 = arith.addf %83, %84 : vector<16x32xf32>
      %c0_46 = arith.constant 0 : index
      %c0_47 = arith.constant 0 : index
      %86 = vector.load %arg9[%c0_46, %c0_47] : memref<16x32xf32, #tpu.memory_space<vmem>>, vector<16x32xf32>
      tpu.vector_store %arg9[%c0_46, %c0_47], %85 {strides = array<i32>} : memref<16x32xf32, #tpu.memory_space<vmem>>, vector<16x32xf32>,
    } else {
    }
    return
  }
  func.func @transform_0(%arg0: i32, %arg1: i32) -> (i32, i32) {
    %c0_i32 = arith.constant 0 : i32
    %c0_i32_0 = arith.constant 0 : i32
    return %arg0, %c0_i32 : i32, i32
  }
  func.func @transform_1(%arg0: i32, %arg1: i32) -> (i32, i32) {
    %c0_i32 = arith.constant 0 : i32
    %c0_i32_0 = arith.constant 0 : i32
    return %c0_i32, %arg1 : i32, i32
  }
  func.func @transform_2(%arg0: i32, %arg1: i32) -> (i32, i32) {
    %c0_i32 = arith.constant 0 : i32
    %c0_i32_0 = arith.constant 0 : i32
    return %c0_i32, %arg1 : i32, i32
  }
  func.func @transform_3(%arg0: i32, %arg1: i32) -> (i32, i32) {
    %c0_i32 = arith.constant 0 : i32
    %c0_i32_0 = arith.constant 0 : i32
    return %arg1, %c0_i32 : i32, i32
  }
  func.func @transform_4(%arg0: i32, %arg1: i32) -> (i32, i32) {
    %c0_i32 = arith.constant 0 : i32
    %c0_i32_0 = arith.constant 0 : i32
    %c0_i32_1 = arith.constant 0 : i32
    return %c0_i32, %c0_i32_0 : i32, i32
  }
  func.func @transform_5(%arg0: i32, %arg1: i32) -> (i32, i32) {
    %c0_i32 = arith.constant 0 : i32
    %c0_i32_0 = arith.constant 0 : i32
    %c0_i32_1 = arith.constant 0 : i32
    return %c0_i32, %c0_i32_0 : i32, i32
  }
  func.func @transform_6(%arg0: i32, %arg1: i32) -> (i32, i32) {
    %c0_i32 = arith.constant 0 : i32
    %c0_i32_0 = arith.constant 0 : i32
    %c0_i32_1 = arith.constant 0 : i32
    return %c0_i32, %c0_i32_0 : i32, i32
  }
  func.func @transform_7(%arg0: i32, %arg1: i32) -> (i32, i32) {
    %c0_i32 = arith.constant 0 : i32
    %c0_i32_0 = arith.constant 0 : i32
    return %arg0, %c0_i32 : i32, i32
  }
}

</mosaic_0001>

<llo_original>
// kernel: transformer_forward.10
$region0: #{transformer_forward.10}
  #allocation0 [shape = 'u32[]', space=smem, size = 0x4, offset = 0x4, fixed_abs, tag = 'smem constant byte address 0x4 - core index']
  #allocation1 [shape = 'u32[144,128]{1,0:T(1,128)}', space=vmem, size = 0x12000, scoped, tag = 'internal scratch']
  %s0 = inlined_call_operand.vmem [shape: f32[16,32], index: 0, kind: input, shape index: {}]
  %s1 = inlined_call_operand.vmem [shape: f32[32,96], index: 1, kind: input, shape index: {}]
  %s2 = inlined_call_operand.vmem [shape: f32[1,96], index: 2, kind: input, shape index: {}]
  %s3 = inlined_call_operand.vmem [shape: f32[16,96], index: 3, kind: output, shape index: {}]
  %s4 = sld [smem:[#allocation0]]
  $region22: #{transformer_forward.10} parent=0
    _
  %s6 = ssub.s32 1, %s4
  %s7 = scalar_select 0, %s6, %s4
  // Predicated region
  $region2: #{transformer_forward.10} parent=0 // pred_check
    _
  $region3: #{transformer_forward.10} parent=0 // pred_check_branch
    %9 = sbr.rel (0) target = $region5
  $region4: #{transformer_forward.10} parent=0 // pred_region
    _
  $region5: #{transformer_forward.10} parent=0 // pred_fallthru
    _
  // Predicated region
  $region6: #{transformer_forward.10} parent=0 // pred_check
    _
  $region7: #{transformer_forward.10} parent=0 // pred_check_branch
    %11 = sbr.rel (0) target = $region9
  $region8: #{transformer_forward.10} parent=0 // pred_region
    _
  $region9: #{transformer_forward.10} parent=0 // pred_fallthru
    _
  // Predicated region
  $region10: #{transformer_forward.10} parent=0 // pred_check
    _
  $region11: #{transformer_forward.10} parent=0 // pred_check_branch
    %13 = sbr.rel (0) target = $region13
  $region12: #{transformer_forward.10} parent=0 // pred_region
    _
  $region13: #{transformer_forward.10} parent=0 // pred_fallthru
    _
  %v14 = vld [vmem:[%s0] sm:$0xff]
  %v15 = vld [vmem:[%s0 + $0x8] sm:$0xff]
  %v16 = vld [vmem:[%s1] sm:$0xff]
  %v17 = vld [vmem:[%s1 + $0x8] sm:$0xff]
  %v18 = vld [vmem:[%s1 + $0x10] sm:$0xff]
  %v19 = vld [vmem:[%s1 + $0x18] sm:$0xff]
  %v20 = vld [vmem:[%s2] sm:$0x1]
  %v22 = vlaneseq
  %v23 = vshrl.u32 %v22, 7
  %v24 = vsub.s32 0, %v23
  %v25 = vrot.slane %v20, %v24
  %vm27 = vcmask 261120
  %v29 = vsel %vm27, %v14, 0
  %v32 = vsel %vm27, %v15, 0
  %34 = vmatprep.subr.mxu0 0.0
  %35 = vmatpush1.msra.mxu0 %v16
  %36 = vmatprep.subr.mxu0 0.0
  %37 = vmatpush1.msra.mxu0 %v17
  %38 = vmatprep.subr.mxu0 0.0
  %39 = vmatpush1.msra.mxu0 %v18
  %40 = vmatprep.subr.mxu0 0.0
  %41 = vmatpush1.msra.mxu0 %v19
  %42 = vmatprep.subr.mxu0 0.0
  %43 = vmatpush1.msra.mxu0 0.0
  %44 = vmatprep.subr.mxu0 0.0
  %45 = vmatpush1.msra.mxu0 0.0
  %46 = vmatprep.subr.mxu0 0.0
  %47 = vmatpush1.msra.mxu0 0.0
  %48 = vmatprep.subr.mxu0 0.0
  %49 = vmatpush1.msra.mxu0 0.0
  %50 = vmatprep.subr.mxu0 0.0
  %51 = vmatpush1.msra.mxu0 0.0
  %52 = vmatprep.subr.mxu0 0.0
  %53 = vmatpush1.msra.mxu0 0.0
  %54 = vmatprep.subr.mxu0 0.0
  %55 = vmatpush1.msra.mxu0 0.0
  %56 = vmatprep.subr.mxu0 0.0
  %57 = vmatpush1.msra.mxu0 0.0
  %58 = vmatprep.subr.mxu0 0.0
  %59 = vmatpush1.msra.mxu0 0.0
  %60 = vmatprep.subr.mxu0 0.0
  %61 = vmatpush1.msra.mxu0 0.0
  %62 = vmatprep.subr.mxu0 0.0
  %63 = vmatpush1.msra.mxu0 0.0
  %64 = vmatprep.subr.mxu0 0.0
  %65 = vmatpush1.msra.mxu0 0.0
  %66 = vmatprep.subr.mxu0 0.0
  %67 = vmatpush1.msra.mxu0 0.0
  %68 = vmatprep.subr.mxu0 0.0
  %69 = vmatpush1.msra.mxu0 0.0
  %70 = vmatprep.subr.mxu0 0.0
  %71 = vmatpush1.msra.mxu0 0.0
  %72 = vmatprep.subr.mxu0 0.0
  %73 = vmatpush1.msra.mxu0 0.0
  %74 = vmatprep.subr.mxu0 0.0
  %75 = vmatpush1.msra.mxu0 0.0
  %76 = vmatprep.subr.mxu0 0.0
  %77 = vmatpush1.msra.mxu0 0.0
  %78 = vmatprep.subr.mxu0 0.0
  %79 = vmatpush1.msra.mxu0 0.0
  %80 = vmatprep.subr.mxu0 0.0
  %81 = vmatpush1.msra.mxu0 0.0
  %82 = vmatprep.subr.mxu0 0.0
  %83 = vmatpush1.msra.mxu0 0.0
  %84 = vmatprep.subr.mxu0 0.0
  %85 = vmatpush1.msra.mxu0 0.0
  %86 = vmatprep.subr.mxu0 0.0
  %87 = vmatpush1.msra.mxu0 0.0
  %88 = vmatprep.subr.mxu0 0.0
  %89 = vmatpush1.msra.mxu0 0.0
  %90 = vmatprep.subr.mxu0 0.0
  %91 = vmatpush1.msra.mxu0 0.0
  %92 = vmatprep.subr.mxu0 0.0
  %93 = vmatpush1.msra.mxu0 0.0
  %94 = vmatprep.subr.mxu0 0.0
  %95 = vmatpush1.msra.mxu0 0.0
  %96 = vmatprep.subr.mxu0 0.0
  %97 = vmatpush1.msra.mxu0 0.0
  %98 = vmatprep.mubr.f32.mxu0 0.0
  %99 = vmatmul.mubr.f32.gmra.mrb[0].mxu0 %v29
  %v100 = vpop.f32.mrb[0].mxu0
  %v101 = vadd.f32 %v25, %v100
  %v102 = vpop.f32.mrb[0].mxu0
  %103 = vmatprep.mubr.f32.mxu0 0.0
  %104 = vmatmul.mubr.f32.gmra.mrb[0].mxu0 %v32
  %v105 = vpop.f32.mrb[0].mxu0
  %v106 = vadd.f32 %v25, %v105
  %v107 = vpop.f32.mrb[0].mxu0
  %108 = vdwg.mxu0
  %vm109 = vcmask 785408
  %110 = vst.msk [vmem:[%s3] sm:$0xff] %vm109, %v101
  %111 = vst.msk [vmem:[%s3 + $0x8] sm:$0xff] %vm109, %v106
  // Predicated region
  $region14: #{transformer_forward.10} parent=0 // pred_check
    _
  $region15: #{transformer_forward.10} parent=0 // pred_check_branch
    %113 = sbr.rel (0) target = $region17
  $region16: #{transformer_forward.10} parent=0 // pred_region
    _
  $region17: #{transformer_forward.10} parent=0 // pred_fallthru
    _
  // Predicated region
  $region18: #{transformer_forward.10} parent=0 // pred_check
    _
  $region19: #{transformer_forward.10} parent=0 // pred_check_branch
    %115 = sbr.rel (0) target = $region21
  $region20: #{transformer_forward.10} parent=0 // pred_region
    _
  $region21: #{transformer_forward.10} parent=0 // pred_fallthru
    _

// kernel: transformer_forward.9
$region0: #{transformer_forward.9}
  #allocation0 [shape = 'u32[]', space=smem, size = 0x4, offset = 0x4, fixed_abs, tag = 'smem constant byte address 0x4 - core index']
  #allocation1 [shape = 'u32[144,128]{1,0:T(1,128)}', space=vmem, size = 0x12000, scoped, tag = 'internal scratch']
  %s0 = inlined_call_operand.vmem [shape: f32[16,32], index: 0, kind: input, shape index: {}]
  %s1 = inlined_call_operand.vmem [shape: f32[16,32], index: 1, kind: input, shape index: {}]
  %s2 = inlined_call_operand.vmem [shape: f32[1,32], index: 2, kind: input, shape index: {}]
  %s3 = inlined_call_operand.vmem [shape: f32[1,32], index: 3, kind: input, shape index: {}]
  %s4 = inlined_call_operand.vmem [shape: f32[16,32], index: 4, kind: output, shape index: {}]
  %s5 = sld [smem:[#allocation0]]
  $region26: #{transformer_forward.9} parent=0
    _
  %s7 = ssub.s32 1, %s5
  %s8 = scalar_select 0, %s7, %s5
  // Predicated region
  $region2: #{transformer_forward.9} parent=0 // pred_check
    _
  $region3: #{transformer_forward.9} parent=0 // pred_check_branch
    %10 = sbr.rel (0) target = $region5
  $region4: #{transformer_forward.9} parent=0 // pred_region
    _
  $region5: #{transformer_forward.9} parent=0 // pred_fallthru
    _
  // Predicated region
  $region6: #{transformer_forward.9} parent=0 // pred_check
    _
  $region7: #{transformer_forward.9} parent=0 // pred_check_branch
    %12 = sbr.rel (0) target = $region9
  $region8: #{transformer_forward.9} parent=0 // pred_region
    _
  $region9: #{transformer_forward.9} parent=0 // pred_fallthru
    _
  // Predicated region
  $region10: #{transformer_forward.9} parent=0 // pred_check
    _
  $region11: #{transformer_forward.9} parent=0 // pred_check_branch
    %14 = sbr.rel (0) target = $region13
  $region12: #{transformer_forward.9} parent=0 // pred_region
    _
  $region13: #{transformer_forward.9} parent=0 // pred_fallthru
    _
  // Predicated region
  $region14: #{transformer_forward.9} parent=0 // pred_check
    _
  $region15: #{transformer_forward.9} parent=0 // pred_check_branch
    %16 = sbr.rel (0) target = $region17
  $region16: #{transformer_forward.9} parent=0 // pred_region
    _
  $region17: #{transformer_forward.9} parent=0 // pred_fallthru
    _
  %v17 = vld [vmem:[%s0] sm:$0xff]
  %v18 = vld [vmem:[%s0 + $0x8] sm:$0xff]
  %v19 = vld [vmem:[%s1] sm:$0xff]
  %v20 = vld [vmem:[%s1 + $0x8] sm:$0xff]
  %v21 = vadd.f32 %v17, %v19
  %v22 = vadd.f32 %v18, %v20
  %v23 = vld [vmem:[%s2] sm:$0x1]
  %v24 = vld [vmem:[%s3] sm:$0x1]
  %vm25 = vcmask 261120
  %v26 = vsel %vm25, %v21, 0.0
  %27 = vadd.xlane.f32.xlu0 %v26
  %v28 = vpop.xlane.xlu0 %27
  %v29 = vsel %vm25, %v22, 0.0
  %30 = vadd.xlane.f32.xlu0 %v29
  %v31 = vpop.xlane.xlu0 %30
  %v32 = vrcp.pop 32.0
  %v33 = vmul.f32 %v28, %v32
  %v34 = vmul.f32 %v31, %v32
  %v35 = vsub.f32 %v21, %v33
  %v36 = vsub.f32 %v22, %v34
  %v37 = vmul.f32 %v35, %v35
  %v38 = vmul.f32 %v36, %v36
  %v39 = vsel %vm25, %v37, 0.0
  %40 = vadd.xlane.f32.xlu0 %v39
  %v41 = vpop.xlane.xlu0 %40
  %v42 = vsel %vm25, %v38, 0.0
  %43 = vadd.xlane.f32.xlu0 %v42
  %v44 = vpop.xlane.xlu0 %43
  %v45 = vmul.f32 %v41, %v32
  %v46 = vmul.f32 %v44, %v32
  %v47 = vadd.f32 %v45, 1e-12
  %v48 = vadd.f32 %v46, 1e-12
  %v49 = vrsqrt.pop %v47
  %v50 = vrsqrt.pop %v48
  %v52 = vlaneseq
  %v53 = vshrl.u32 %v52, 7
  %v54 = vsub.s32 0, %v53
  %v55 = vrot.slane %v23, %v54
  %v57 = vmul.f32 %v49, %v55
  %v58 = vmul.f32 %v50, %v55
  %v59 = vmul.f32 %v35, %v57
  %v60 = vmul.f32 %v36, %v58
  %v62 = vlaneseq
  %v63 = vshrl.u32 %v62, 7
  %v64 = vsub.s32 0, %v63
  %v65 = vrot.slane %v24, %v64
  %v67 = vadd.f32 %v59, %v65
  %v68 = vadd.f32 %v60, %v65
  %69 = vst.msk [vmem:[%s4] sm:$0xff] %vm25, %v67
  %70 = vst.msk [vmem:[%s4 + $0x8] sm:$0xff] %vm25, %v68
  // Predicated region
  $region18: #{transformer_forward.9} parent=0 // pred_check
    _
  $region19: #{transformer_forward.9} parent=0 // pred_check_branch
    %72 = sbr.rel (0) target = $region21
  $region20: #{transformer_forward.9} parent=0 // pred_region
    _
  $region21: #{transformer_forward.9} parent=0 // pred_fallthru
    _
  // Predicated region
  $region22: #{transformer_forward.9} parent=0 // pred_check
    _
  $region23: #{transformer_forward.9} parent=0 // pred_check_branch
    %74 = sbr.rel (0) target = $region25
  $region24: #{transformer_forward.9} parent=0 // pred_region
    _
  $region25: #{transformer_forward.9} parent=0 // pred_fallthru
    _

// kernel: transformer_forward.12
$region0: #{transformer_forward.12}
  #allocation0 [shape = 'u32[]', space=smem, size = 0x4, offset = 0x4, fixed_abs, tag = 'smem constant byte address 0x4 - core index']
  #allocation1 [shape = 'u32[144,128]{1,0:T(1,128)}', space=vmem, size = 0x12000, scoped, tag = 'internal scratch']
  %s0 = inlined_call_operand.vmem [shape: f32[16,32], index: 0, kind: input, shape index: {}]
  %s1 = inlined_call_operand.vmem [shape: f32[32,32], index: 1, kind: input, shape index: {}]
  %s2 = inlined_call_operand.vmem [shape: f32[1,32], index: 2, kind: input, shape index: {}]
  %s3 = inlined_call_operand.vmem [shape: f32[16,32], index: 3, kind: input, shape index: {}]
  %s4 = inlined_call_operand.vmem [shape: f32[1,32], index: 4, kind: input, shape index: {}]
  %s5 = inlined_call_operand.vmem [shape: f32[1,32], index: 5, kind: input, shape index: {}]
  %s6 = inlined_call_operand.vmem [shape: f32[16,32], index: 6, kind: output, shape index: {}]
  %s7 = sld [smem:[#allocation0]]
  $region34: #{transformer_forward.12} parent=0
    _
  %s9 = ssub.s32 1, %s7
  %s10 = scalar_select 0, %s9, %s7
  // Predicated region
  $region2: #{transformer_forward.12} parent=0 // pred_check
    _
  $region3: #{transformer_forward.12} parent=0 // pred_check_branch
    %12 = sbr.rel (0) target = $region5
  $region4: #{transformer_forward.12} parent=0 // pred_region
    _
  $region5: #{transformer_forward.12} parent=0 // pred_fallthru
    _
  // Predicated region
  $region6: #{transformer_forward.12} parent=0 // pred_check
    _
  $region7: #{transformer_forward.12} parent=0 // pred_check_branch
    %14 = sbr.rel (0) target = $region9
  $region8: #{transformer_forward.12} parent=0 // pred_region
    _
  $region9: #{transformer_forward.12} parent=0 // pred_fallthru
    _
  // Predicated region
  $region10: #{transformer_forward.12} parent=0 // pred_check
    _
  $region11: #{transformer_forward.12} parent=0 // pred_check_branch
    %16 = sbr.rel (0) target = $region13
  $region12: #{transformer_forward.12} parent=0 // pred_region
    _
  $region13: #{transformer_forward.12} parent=0 // pred_fallthru
    _
  // Predicated region
  $region14: #{transformer_forward.12} parent=0 // pred_check
    _
  $region15: #{transformer_forward.12} parent=0 // pred_check_branch
    %18 = sbr.rel (0) target = $region17
  $region16: #{transformer_forward.12} parent=0 // pred_region
    _
  $region17: #{transformer_forward.12} parent=0 // pred_fallthru
    _
  // Predicated region
  $region18: #{transformer_forward.12} parent=0 // pred_check
    _
  $region19: #{transformer_forward.12} parent=0 // pred_check_branch
    %20 = sbr.rel (0) target = $region21
  $region20: #{transformer_forward.12} parent=0 // pred_region
    _
  $region21: #{transformer_forward.12} parent=0 // pred_fallthru
    _
  // Predicated region
  $region22: #{transformer_forward.12} parent=0 // pred_check
    _
  $region23: #{transformer_forward.12} parent=0 // pred_check_branch
    %22 = sbr.rel (0) target = $region25
  $region24: #{transformer_forward.12} parent=0 // pred_region
    _
  $region25: #{transformer_forward.12} parent=0 // pred_fallthru
    _
  %v23 = vld [vmem:[%s0] sm:$0xff]
  %v24 = vld [vmem:[%s0 + $0x8] sm:$0xff]
  %v25 = vld [vmem:[%s1] sm:$0xff]
  %v26 = vld [vmem:[%s1 + $0x8] sm:$0xff]
  %v27 = vld [vmem:[%s1 + $0x10] sm:$0xff]
  %v28 = vld [vmem:[%s1 + $0x18] sm:$0xff]
  %vm29 = vcmask 261120
  %v31 = vsel %vm29, %v23, 0
  %v34 = vsel %vm29, %v24, 0
  %36 = vmatprep.subr.mxu0 0.0
  %37 = vmatpush1.msra.mxu0 %v25
  %38 = vmatprep.subr.mxu0 0.0
  %39 = vmatpush1.msra.mxu0 %v26
  %40 = vmatprep.subr.mxu0 0.0
  %41 = vmatpush1.msra.mxu0 %v27
  %42 = vmatprep.subr.mxu0 0.0
  %43 = vmatpush1.msra.mxu0 %v28
  %44 = vmatprep.subr.mxu0 0.0
  %45 = vmatpush1.msra.mxu0 0.0
  %46 = vmatprep.subr.mxu0 0.0
  %47 = vmatpush1.msra.mxu0 0.0
  %48 = vmatprep.subr.mxu0 0.0
  %49 = vmatpush1.msra.mxu0 0.0
  %50 = vmatprep.subr.mxu0 0.0
  %51 = vmatpush1.msra.mxu0 0.0
  %52 = vmatprep.subr.mxu0 0.0
  %53 = vmatpush1.msra.mxu0 0.0
  %54 = vmatprep.subr.mxu0 0.0
  %55 = vmatpush1.msra.mxu0 0.0
  %56 = vmatprep.subr.mxu0 0.0
  %57 = vmatpush1.msra.mxu0 0.0
  %58 = vmatprep.subr.mxu0 0.0
  %59 = vmatpush1.msra.mxu0 0.0
  %60 = vmatprep.subr.mxu0 0.0
  %61 = vmatpush1.msra.mxu0 0.0
  %62 = vmatprep.subr.mxu0 0.0
  %63 = vmatpush1.msra.mxu0 0.0
  %64 = vmatprep.subr.mxu0 0.0
  %65 = vmatpush1.msra.mxu0 0.0
  %66 = vmatprep.subr.mxu0 0.0
  %67 = vmatpush1.msra.mxu0 0.0
  %68 = vmatprep.subr.mxu0 0.0
  %69 = vmatpush1.msra.mxu0 0.0
  %70 = vmatprep.subr.mxu0 0.0
  %71 = vmatpush1.msra.mxu0 0.0
  %72 = vmatprep.subr.mxu0 0.0
  %73 = vmatpush1.msra.mxu0 0.0
  %74 = vmatprep.subr.mxu0 0.0
  %75 = vmatpush1.msra.mxu0 0.0
  %76 = vmatprep.subr.mxu0 0.0
  %77 = vmatpush1.msra.mxu0 0.0
  %78 = vmatprep.subr.mxu0 0.0
  %79 = vmatpush1.msra.mxu0 0.0
  %80 = vmatprep.subr.mxu0 0.0
  %81 = vmatpush1.msra.mxu0 0.0
  %82 = vmatprep.subr.mxu0 0.0
  %83 = vmatpush1.msra.mxu0 0.0
  %84 = vmatprep.subr.mxu0 0.0
  %85 = vmatpush1.msra.mxu0 0.0
  %86 = vmatprep.subr.mxu0 0.0
  %87 = vmatpush1.msra.mxu0 0.0
  %88 = vmatprep.subr.mxu0 0.0
  %89 = vmatpush1.msra.mxu0 0.0
  %90 = vmatprep.subr.mxu0 0.0
  %91 = vmatpush1.msra.mxu0 0.0
  %92 = vmatprep.subr.mxu0 0.0
  %93 = vmatpush1.msra.mxu0 0.0
  %94 = vmatprep.subr.mxu0 0.0
  %95 = vmatpush1.msra.mxu0 0.0
  %96 = vmatprep.subr.mxu0 0.0
  %97 = vmatpush1.msra.mxu0 0.0
  %98 = vmatprep.subr.mxu0 0.0
  %99 = vmatpush1.msra.mxu0 0.0
  %100 = vmatprep.mubr.f32.mxu0 0.0
  %101 = vmatmul.mubr.f32.gmra.mrb[0].mxu0 %v31
  %v102 = vpop.f32.mrb[0].mxu0
  %v103 = vadd.f32 0.0, %v102
  %v104 = vpop.f32.mrb[0].mxu0
  %105 = vmatprep.mubr.f32.mxu0 0.0
  %106 = vmatmul.mubr.f32.gmra.mrb[0].mxu0 %v34
  %v107 = vpop.f32.mrb[0].mxu0
  %v108 = vadd.f32 0.0, %v107
  %v109 = vpop.f32.mrb[0].mxu0
  %110 = vdwg.mxu0
  %v111 = vld [vmem:[%s3] sm:$0xff]
  %v112 = vld [vmem:[%s3 + $0x8] sm:$0xff]
  %v113 = vadd.f32 %v111, %v103
  %v114 = vadd.f32 %v112, %v108
  %v115 = vld [vmem:[%s2] sm:$0x1]
  %v117 = vlaneseq
  %v118 = vshrl.u32 %v117, 7
  %v119 = vsub.s32 0, %v118
  %v120 = vrot.slane %v115, %v119
  %v122 = vadd.f32 %v113, %v120
  %v123 = vadd.f32 %v114, %v120
  %v124 = vld [vmem:[%s4] sm:$0x1]
  %v125 = vld [vmem:[%s5] sm:$0x1]
  %v126 = vsel %vm29, %v122, 0.0
  %127 = vadd.xlane.f32.xlu0 %v126
  %v128 = vpop.xlane.xlu0 %127
  %v129 = vsel %vm29, %v123, 0.0
  %130 = vadd.xlane.f32.xlu0 %v129
  %v131 = vpop.xlane.xlu0 %130
  %v132 = vrcp.pop 32.0
  %v133 = vmul.f32 %v128, %v132
  %v134 = vmul.f32 %v131, %v132
  %v135 = vsub.f32 %v122, %v133
  %v136 = vsub.f32 %v123, %v134
  %v137 = vmul.f32 %v135, %v135
  %v138 = vmul.f32 %v136, %v136
  %v139 = vsel %vm29, %v137, 0.0
  %140 = vadd.xlane.f32.xlu0 %v139
  %v141 = vpop.xlane.xlu0 %140
  %v142 = vsel %vm29, %v138, 0.0
  %143 = vadd.xlane.f32.xlu0 %v142
  %v144 = vpop.xlane.xlu0 %143
  %v145 = vmul.f32 %v141, %v132
  %v146 = vmul.f32 %v144, %v132
  %v147 = vadd.f32 %v145, 1e-12
  %v148 = vadd.f32 %v146, 1e-12
  %v149 = vrsqrt.pop %v147
  %v150 = vrsqrt.pop %v148
  %v152 = vlaneseq
  %v153 = vshrl.u32 %v152, 7
  %v154 = vsub.s32 0, %v153
  %v155 = vrot.slane %v124, %v154
  %v157 = vmul.f32 %v149, %v155
  %v158 = vmul.f32 %v150, %v155
  %v159 = vmul.f32 %v135, %v157
  %v160 = vmul.f32 %v136, %v158
  %v162 = vlaneseq
  %v163 = vshrl.u32 %v162, 7
  %v164 = vsub.s32 0, %v163
  %v165 = vrot.slane %v125, %v164
  %v167 = vadd.f32 %v159, %v165
  %v168 = vadd.f32 %v160, %v165
  %169 = vst.msk [vmem:[%s6] sm:$0xff] %vm29, %v167
  %170 = vst.msk [vmem:[%s6 + $0x8] sm:$0xff] %vm29, %v168
  // Predicated region
  $region26: #{transformer_forward.12} parent=0 // pred_check
    _
  $region27: #{transformer_forward.12} parent=0 // pred_check_branch
    %172 = sbr.rel (0) target = $region29
  $region28: #{transformer_forward.12} parent=0 // pred_region
    _
  $region29: #{transformer_forward.12} parent=0 // pred_fallthru
    _
  // Predicated region
  $region30: #{transformer_forward.12} parent=0 // pred_check
    _
  $region31: #{transformer_forward.12} parent=0 // pred_check_branch
    %174 = sbr.rel (0) target = $region33
  $region32: #{transformer_forward.12} parent=0 // pred_region
    _
  $region33: #{transformer_forward.12} parent=0 // pred_fallthru
    _

// kernel: transformer_forward.17
$region0: #{transformer_forward.17}
  #allocation0 [shape = 'u32[]', space=smem, size = 0x4, offset = 0x4, fixed_abs, tag = 'smem constant byte address 0x4 - core index']
  #allocation1 [shape = 'u32[144,128]{1,0:T(1,128)}', space=vmem, size = 0x12000, scoped, tag = 'internal scratch']
  #allocation2 [shape = 'f32[16,32]{1,0:T(8,128)}', space=vmem, size = 0x2000, scoped, tag = 'scratch operand']
  %s0 = inlined_call_operand.vmem [shape: f32[16,32], index: 0, kind: input, shape index: {}]
  %s1 = inlined_call_operand.vmem [shape: f32[32,128], index: 1, kind: input, shape index: {}]
  %s2 = inlined_call_operand.vmem [shape: f32[1,128], index: 2, kind: input, shape index: {}]
  %s3 = inlined_call_operand.vmem [shape: f32[128,32], index: 3, kind: input, shape index: {}]
  %s4 = inlined_call_operand.vmem [shape: f32[1,32], index: 4, kind: input, shape index: {}]
  %s5 = inlined_call_operand.vmem [shape: f32[1,32], index: 5, kind: input, shape index: {}]
  %s6 = inlined_call_operand.vmem [shape: f32[1,32], index: 6, kind: input, shape index: {}]
  %s7 = inlined_call_operand.hbm [shape: f32[16,32], index: 7, kind: output, shape index: {}]
  %s8 = sld [smem:[#allocation0]]
  $region46: #{transformer_forward.17} parent=0
    _
  %s10 = ssub.s32 1, %s8
  %s11 = scalar_select 0, %s10, %s8
  $region1: #{transformer_forward.17} parent=0
    #allocation3 [shape = 'u8[8192]{0}', space=vmem, size = 0x2000, scoped, tag = 'output window, operand 0, single buffered']
    #allocation4 [shape = 's32[1]{0}', space=sflag, size = 0x4, scoped, tag = 'scoped memory for transformer_forward.17']
    %12 = vsyncpa [#allocation4], 0
    // Predicated region
    $region2: #{transformer_forward.17} parent=1 // pred_check
      _
    $region3: #{transformer_forward.17} parent=1 // pred_check_branch
      %14 = sbr.rel (0) target = $region5
    $region4: #{transformer_forward.17} parent=1 // pred_region
      _
    $region5: #{transformer_forward.17} parent=1 // pred_fallthru
      _
    // Predicated region
    $region6: #{transformer_forward.17} parent=1 // pred_check
      _
    $region7: #{transformer_forward.17} parent=1 // pred_check_branch
      %16 = sbr.rel (0) target = $region9
    $region8: #{transformer_forward.17} parent=1 // pred_region
      _
    $region9: #{transformer_forward.17} parent=1 // pred_fallthru
      _
    // Predicated region
    $region10: #{transformer_forward.17} parent=1 // pred_check
      _
    $region11: #{transformer_forward.17} parent=1 // pred_check_branch
      %18 = sbr.rel (0) target = $region13
    $region12: #{transformer_forward.17} parent=1 // pred_region
      _
    $region13: #{transformer_forward.17} parent=1 // pred_fallthru
      _
    // Predicated region
    $region14: #{transformer_forward.17} parent=1 // pred_check
      _
    $region15: #{transformer_forward.17} parent=1 // pred_check_branch
      %20 = sbr.rel (0) target = $region17
    $region16: #{transformer_forward.17} parent=1 // pred_region
      _
    $region17: #{transformer_forward.17} parent=1 // pred_fallthru
      _
    // Predicated region
    $region18: #{transformer_forward.17} parent=1 // pred_check
      _
    $region19: #{transformer_forward.17} parent=1 // pred_check_branch
      %22 = sbr.rel (0) target = $region21
    $region20: #{transformer_forward.17} parent=1 // pred_region
      _
    $region21: #{transformer_forward.17} parent=1 // pred_fallthru
      _
    // Predicated region
    $region22: #{transformer_forward.17} parent=1 // pred_check
      _
    $region23: #{transformer_forward.17} parent=1 // pred_check_branch
      %24 = sbr.rel (0) target = $region25
    $region24: #{transformer_forward.17} parent=1 // pred_region
      _
    $region25: #{transformer_forward.17} parent=1 // pred_fallthru
      _
    // Predicated region
    $region26: #{transformer_forward.17} parent=1 // pred_check
      _
    $region27: #{transformer_forward.17} parent=1 // pred_check_branch
      %26 = sbr.rel (0) target = $region29
    $region28: #{transformer_forward.17} parent=1 // pred_region
      _
    $region29: #{transformer_forward.17} parent=1 // pred_fallthru
      _
    %p27 = scmp.eq.s32.totalorder 0, 0
    // Predicated region
    $region30: #{transformer_forward.17} parent=1 // pred_check
      %p28 = pneg %p27
    $region31: #{transformer_forward.17} parent=1 // pred_check_branch
      %30 = sbr.rel (%p28) target = $region33
    $region32: #{transformer_forward.17} parent=1 // pred_region
      %vm31 = vcmask 261120
      %32 = vst.msk [vmem:[#allocation2] sm:$0xff] %vm31, 0.0
      %33 = vst.msk [vmem:[#allocation2 + $0x8] sm:$0xff] %vm31, 0.0
    $region33: #{transformer_forward.17} parent=1 // pred_fallthru
      _
    %v34 = vld [vmem:[%s0] sm:$0xff]
    %v35 = vld [vmem:[%s0 + $0x8] sm:$0xff]
    %v36 = vld [vmem:[%s1] sm:$0xff]
    %v37 = vld [vmem:[%s1 + $0x8] sm:$0xff]
    %v38 = vld [vmem:[%s1 + $0x10] sm:$0xff]
    %v39 = vld [vmem:[%s1 + $0x18] sm:$0xff]
    %v40 = vld [vmem:[%s2] sm:$0x1]
    %v42 = vlaneseq
    %v43 = vshrl.u32 %v42, 7
    %v44 = vsub.s32 0, %v43
    %v45 = vrot.slane %v40, %v44
    %vm47 = vcmask 261120
    %v49 = vsel %vm47, %v34, 0
    %v52 = vsel %vm47, %v35, 0
    %54 = vmatprep.subr.mxu0 0.0
    %55 = vmatpush1.msra.mxu0 %v36
    %56 = vmatprep.subr.mxu0 0.0
    %57 = vmatpush1.msra.mxu0 %v37
    %58 = vmatprep.subr.mxu0 0.0
    %59 = vmatpush1.msra.mxu0 %v38
    %60 = vmatprep.subr.mxu0 0.0
    %61 = vmatpush1.msra.mxu0 %v39
    %62 = vmatprep.subr.mxu0 0.0
    %63 = vmatpush1.msra.mxu0 0.0
    %64 = vmatprep.subr.mxu0 0.0
    %65 = vmatpush1.msra.mxu0 0.0
    %66 = vmatprep.subr.mxu0 0.0
    %67 = vmatpush1.msra.mxu0 0.0
    %68 = vmatprep.subr.mxu0 0.0
    %69 = vmatpush1.msra.mxu0 0.0
    %70 = vmatprep.subr.mxu0 0.0
    %71 = vmatpush1.msra.mxu0 0.0
    %72 = vmatprep.subr.mxu0 0.0
    %73 = vmatpush1.msra.mxu0 0.0
    %74 = vmatprep.subr.mxu0 0.0
    %75 = vmatpush1.msra.mxu0 0.0
    %76 = vmatprep.subr.mxu0 0.0
    %77 = vmatpush1.msra.mxu0 0.0
    %78 = vmatprep.subr.mxu0 0.0
    %79 = vmatpush1.msra.mxu0 0.0
    %80 = vmatprep.subr.mxu0 0.0
    %81 = vmatpush1.msra.mxu0 0.0
    %82 = vmatprep.subr.mxu0 0.0
    %83 = vmatpush1.msra.mxu0 0.0
    %84 = vmatprep.subr.mxu0 0.0
    %85 = vmatpush1.msra.mxu0 0.0
    %86 = vmatprep.subr.mxu0 0.0
    %87 = vmatpush1.msra.mxu0 0.0
    %88 = vmatprep.subr.mxu0 0.0
    %89 = vmatpush1.msra.mxu0 0.0
    %90 = vmatprep.subr.mxu0 0.0
    %91 = vmatpush1.msra.mxu0 0.0
    %92 = vmatprep.subr.mxu0 0.0
    %93 = vmatpush1.msra.mxu0 0.0
    %94 = vmatprep.subr.mxu0 0.0
    %95 = vmatpush1.msra.mxu0 0.0
    %96 = vmatprep.subr.mxu0 0.0
    %97 = vmatpush1.msra.mxu0 0.0
    %98 = vmatprep.subr.mxu0 0.0
    %99 = vmatpush1.msra.mxu0 0.0
    %100 = vmatprep.subr.mxu0 0.0
    %101 = vmatpush1.msra.mxu0 0.0
    %102 = vmatprep.subr.mxu0 0.0
    %103 = vmatpush1.msra.mxu0 0.0
    %104 = vmatprep.subr.mxu0 0.0
    %105 = vmatpush1.msra.mxu0 0.0
    %106 = vmatprep.subr.mxu0 0.0
    %107 = vmatpush1.msra.mxu0 0.0
    %108 = vmatprep.subr.mxu0 0.0
    %109 = vmatpush1.msra.mxu0 0.0
    %110 = vmatprep.subr.mxu0 0.0
    %111 = vmatpush1.msra.mxu0 0.0
    %112 = vmatprep.subr.mxu0 0.0
    %113 = vmatpush1.msra.mxu0 0.0
    %114 = vmatprep.subr.mxu0 0.0
    %115 = vmatpush1.msra.mxu0 0.0
    %116 = vmatprep.subr.mxu0 0.0
    %117 = vmatpush1.msra.mxu0 0.0
    %118 = vmatprep.mubr.f32.mxu0 0.0
    %119 = vmatmul.mubr.f32.gmra.mrb[0].mxu0 %v49
    %v120 = vpop.f32.mrb[0].mxu0
    %v121 = vadd.f32 %v45, %v120
    %v122 = vpop.f32.mrb[0].mxu0
    %123 = vmatprep.mubr.f32.mxu0 0.0
    %124 = vmatmul.mubr.f32.gmra.mrb[0].mxu0 %v52
    %v125 = vpop.f32.mrb[0].mxu0
    %v126 = vadd.f32 %v45, %v125
    %v127 = vpop.f32.mrb[0].mxu0
    %128 = vdwg.mxu0
    %v129 = vmul.f32 %v121, 0.5
    %v130 = vmul.f32 %v126, 0.5
    %v131 = vmul.f32 %v121, 0.70710677
    %v132 = vmul.f32 %v126, 0.70710677
    %vm133 = vcmp.ge.f32.partialorder %v131, 0.0
    %vm134 = vcmp.ge.f32.partialorder %v132, 0.0
    %v135 = vsel %vm133, 1.0, -1.0
    %v136 = vsel %vm134, 1.0, -1.0
    %v137 = vmul.f32 %v131, %v135
    %v138 = vmul.f32 %v132, %v136
    %v139 = vmul.f32 %v137, 0.3275911
    %v140 = vmul.f32 %v138, 0.3275911
    %v141 = vadd.f32 %v139, 1.0
    %v142 = vadd.f32 %v140, 1.0
    %v143 = vrcp.pop %v141
    %v144 = vmul.f32 1.0, %v143
    %v145 = vrcp.pop %v142
    %v146 = vmul.f32 1.0, %v145
    %v147 = vmul.f32 %v144, 1.0614054
    %v148 = vmul.f32 %v146, 1.0614054
    %v149 = vadd.f32 %v147, -1.4531521
    %v150 = vadd.f32 %v148, -1.4531521
    %v151 = vmul.f32 %v149, %v144
    %v152 = vmul.f32 %v150, %v146
    %v153 = vadd.f32 %v151, 1.4214138
    %v154 = vadd.f32 %v152, 1.4214138
    %v155 = vmul.f32 %v153, %v144
    %v156 = vmul.f32 %v154, %v146
    %v157 = vadd.f32 %v155, -0.28449672
    %v158 = vadd.f32 %v156, -0.28449672
    %v159 = vmul.f32 %v157, %v144
    %v160 = vmul.f32 %v158, %v146
    %v161 = vadd.f32 %v159, 0.2548296
    %v162 = vadd.f32 %v160, 0.2548296
    %v163 = vmul.f32 %v161, %v144
    %v164 = vmul.f32 %v162, %v146
    %v165 = vsub.f32 0.0, %v137
    %v166 = vsub.f32 0.0, %v138
    %v167 = vmul.f32 %v165, %v137
    %v168 = vmul.f32 %v166, %v138
    %v169 = vmul.f32 %v167, 1.442695
    %v170 = vpow.pop %v169
    %v171 = vmul.f32 %v168, 1.442695
    %v172 = vpow.pop %v171
    %v173 = vmul.f32 %v163, %v170
    %v174 = vmul.f32 %v164, %v172
    %v175 = vsub.f32 1.0, %v173
    %v176 = vsub.f32 1.0, %v174
    %v177 = vmul.f32 %v135, %v175
    %v178 = vmul.f32 %v136, %v176
    %v179 = vadd.f32 %v177, 1.0
    %v180 = vadd.f32 %v178, 1.0
    %v181 = vmul.f32 %v129, %v179
    %v182 = vmul.f32 %v130, %v180
    %v183 = vld [vmem:[#allocation2] sm:$0xff]
    %v184 = vld [vmem:[#allocation2 + $0x8] sm:$0xff]
    %v185 = vld [vmem:[%s3] sm:$0xff]
    %v186 = vld [vmem:[%s3 + $0x8] sm:$0xff]
    %v187 = vld [vmem:[%s3 + $0x10] sm:$0xff]
    %v188 = vld [vmem:[%s3 + $0x18] sm:$0xff]
    %v189 = vld [vmem:[%s3 + $0x20] sm:$0xff]
    %v190 = vld [vmem:[%s3 + $0x28] sm:$0xff]
    %v191 = vld [vmem:[%s3 + $0x30] sm:$0xff]
    %v192 = vld [vmem:[%s3 + $0x38] sm:$0xff]
    %v193 = vld [vmem:[%s3 + $0x40] sm:$0xff]
    %v194 = vld [vmem:[%s3 + $0x48] sm:$0xff]
    %v195 = vld [vmem:[%s3 + $0x50] sm:$0xff]
    %v196 = vld [vmem:[%s3 + $0x58] sm:$0xff]
    %v197 = vld [vmem:[%s3 + $0x60] sm:$0xff]
    %v198 = vld [vmem:[%s3 + $0x68] sm:$0xff]
    %v199 = vld [vmem:[%s3 + $0x70] sm:$0xff]
    %v200 = vld [vmem:[%s3 + $0x78] sm:$0xff]
    %201 = vmatprep.subr.mxu0 0.0
    %202 = vmatpush1.msra.mxu0 %v185
    %203 = vmatprep.subr.mxu0 0.0
    %204 = vmatpush1.msra.mxu0 %v186
    %205 = vmatprep.subr.mxu0 0.0
    %206 = vmatpush1.msra.mxu0 %v187
    %207 = vmatprep.subr.mxu0 0.0
    %208 = vmatpush1.msra.mxu0 %v188
    %209 = vmatprep.subr.mxu0 0.0
    %210 = vmatpush1.msra.mxu0 %v189
    %211 = vmatprep.subr.mxu0 0.0
    %212 = vmatpush1.msra.mxu0 %v190
    %213 = vmatprep.subr.mxu0 0.0
    %214 = vmatpush1.msra.mxu0 %v191
    %215 = vmatprep.subr.mxu0 0.0
    %216 = vmatpush1.msra.mxu0 %v192
    %217 = vmatprep.subr.mxu0 0.0
    %218 = vmatpush1.msra.mxu0 %v193
    %219 = vmatprep.subr.mxu0 0.0
    %220 = vmatpush1.msra.mxu0 %v194
    %221 = vmatprep.subr.mxu0 0.0
    %222 = vmatpush1.msra.mxu0 %v195
    %223 = vmatprep.subr.mxu0 0.0
    %224 = vmatpush1.msra.mxu0 %v196
    %225 = vmatprep.subr.mxu0 0.0
    %226 = vmatpush1.msra.mxu0 %v197
    %227 = vmatprep.subr.mxu0 0.0
    %228 = vmatpush1.msra.mxu0 %v198
    %229 = vmatprep.subr.mxu0 0.0
    %230 = vmatpush1.msra.mxu0 %v199
    %231 = vmatprep.subr.mxu0 0.0
    %232 = vmatpush1.msra.mxu0 %v200
    %233 = vmatprep.subr.mxu0 0.0
    %234 = vmatpush1.msra.mxu0 0.0
    %235 = vmatprep.subr.mxu0 0.0
    %236 = vmatpush1.msra.mxu0 0.0
    %237 = vmatprep.subr.mxu0 0.0
    %238 = vmatpush1.msra.mxu0 0.0
    %239 = vmatprep.subr.mxu0 0.0
    %240 = vmatpush1.msra.mxu0 0.0
    %241 = vmatprep.subr.mxu0 0.0
    %242 = vmatpush1.msra.mxu0 0.0
    %243 = vmatprep.subr.mxu0 0.0
    %244 = vmatpush1.msra.mxu0 0.0
    %245 = vmatprep.subr.mxu0 0.0
    %246 = vmatpush1.msra.mxu0 0.0
    %247 = vmatprep.subr.mxu0 0.0
    %248 = vmatpush1.msra.mxu0 0.0
    %249 = vmatprep.subr.mxu0 0.0
    %250 = vmatpush1.msra.mxu0 0.0
    %251 = vmatprep.subr.mxu0 0.0
    %252 = vmatpush1.msra.mxu0 0.0
    %253 = vmatprep.subr.mxu0 0.0
    %254 = vmatpush1.msra.mxu0 0.0
    %255 = vmatprep.subr.mxu0 0.0
    %256 = vmatpush1.msra.mxu0 0.0
    %257 = vmatprep.subr.mxu0 0.0
    %258 = vmatpush1.msra.mxu0 0.0
    %259 = vmatprep.subr.mxu0 0.0
    %260 = vmatpush1.msra.mxu0 0.0
    %261 = vmatprep.subr.mxu0 0.0
    %262 = vmatpush1.msra.mxu0 0.0
    %263 = vmatprep.subr.mxu0 0.0
    %264 = vmatpush1.msra.mxu0 0.0
    %265 = vmatprep.mubr.f32.mxu0 0.0
    %266 = vmatmul.mubr.f32.gmra.mrb[0].mxu0 %v181
    %v267 = vpop.f32.mrb[0].mxu0
    %v268 = vadd.f32 0.0, %v267
    %v269 = vpop.f32.mrb[0].mxu0
    %270 = vmatprep.mubr.f32.mxu0 0.0
    %271 = vmatmul.mubr.f32.gmra.mrb[0].mxu0 %v182
    %v272 = vpop.f32.mrb[0].mxu0
    %v273 = vadd.f32 0.0, %v272
    %v274 = vpop.f32.mrb[0].mxu0
    %275 = vdwg.mxu0
    %v276 = vadd.f32 %v183, %v268
    %v277 = vadd.f32 %v184, %v273
    %278 = vst.msk [vmem:[#allocation2] sm:$0xff] %vm47, %v276
    %279 = vst.msk [vmem:[#allocation2 + $0x8] sm:$0xff] %vm47, %v277
    // Predicated region
    $region34: #{transformer_forward.17} parent=1 // pred_check
      %p280 = pneg %p27
    $region35: #{transformer_forward.17} parent=1 // pred_check_branch
      %282 = sbr.rel (%p280) target = $region37
    $region36: #{transformer_forward.17} parent=1 // pred_region
      %v283 = vld [vmem:[%s0] sm:$0xff]
      %v284 = vld [vmem:[%s0 + $0x8] sm:$0xff]
      %v285 = vld [vmem:[#allocation2] sm:$0xff]
      %v286 = vld [vmem:[#allocation2 + $0x8] sm:$0xff]
      %v287 = vadd.f32 %v283, %v285
      %v288 = vadd.f32 %v284, %v286
      %v289 = vld [vmem:[%s4] sm:$0x1]
      %v291 = vlaneseq
      %v292 = vshrl.u32 %v291, 7
      %v293 = vsub.s32 0, %v292
      %v294 = vrot.slane %v289, %v293
      %v296 = vadd.f32 %v287, %v294
      %v297 = vadd.f32 %v288, %v294
      %v298 = vld [vmem:[%s5] sm:$0x1]
      %v299 = vld [vmem:[%s6] sm:$0x1]
      %v300 = vsel %vm47, %v296, 0.0
      %301 = vadd.xlane.f32.xlu0 %v300
      %v302 = vpop.xlane.xlu0 %301
      %v303 = vsel %vm47, %v297, 0.0
      %304 = vadd.xlane.f32.xlu0 %v303
      %v305 = vpop.xlane.xlu0 %304
      %v306 = vrcp.pop 32.0
      %v307 = vmul.f32 %v302, %v306
      %v308 = vmul.f32 %v305, %v306
      %v309 = vsub.f32 %v296, %v307
      %v310 = vsub.f32 %v297, %v308
      %v311 = vmul.f32 %v309, %v309
      %v312 = vmul.f32 %v310, %v310
      %v313 = vsel %vm47, %v311, 0.0
      %314 = vadd.xlane.f32.xlu0 %v313
      %v315 = vpop.xlane.xlu0 %314
      %v316 = vsel %vm47, %v312, 0.0
      %317 = vadd.xlane.f32.xlu0 %v316
      %v318 = vpop.xlane.xlu0 %317
      %v319 = vmul.f32 %v315, %v306
      %v320 = vmul.f32 %v318, %v306
      %v321 = vadd.f32 %v319, 1e-12
      %v322 = vadd.f32 %v320, 1e-12
      %v323 = vrsqrt.pop %v321
      %v324 = vrsqrt.pop %v322
      %v326 = vlaneseq
      %v327 = vshrl.u32 %v326, 7
      %v328 = vsub.s32 0, %v327
      %v329 = vrot.slane %v298, %v328
      %v331 = vmul.f32 %v323, %v329
      %v332 = vmul.f32 %v324, %v329
      %v333 = vmul.f32 %v309, %v331
      %v334 = vmul.f32 %v310, %v332
      %v336 = vlaneseq
      %v337 = vshrl.u32 %v336, 7
      %v338 = vsub.s32 0, %v337
      %v339 = vrot.slane %v299, %v338
      %v341 = vadd.f32 %v333, %v339
      %v342 = vadd.f32 %v334, %v339
      %343 = vst.msk [vmem:[#allocation3] sm:$0xff] %vm47, %v341
      %344 = vst.msk [vmem:[#allocation3 + $0x8] sm:$0xff] %vm47, %v342
    $region37: #{transformer_forward.17} parent=1 // pred_fallthru
      _
    // Predicated region
    $region38: #{transformer_forward.17} parent=1 // pred_check
      _
    $region39: #{transformer_forward.17} parent=1 // pred_check_branch
      %346 = sbr.rel (0) target = $region41
    $region40: #{transformer_forward.17} parent=1 // pred_region
      %s348 = ssub.s32 256, 256
      %349 = vsyncadd [#allocation4], %s348
      %s350 = sshll.u32 [#allocation3], 4
      %s351 = int_to_ptr.vmem [resolvable:$true] %s350
      %356 = dma.vmem_to_hbm [thread:$0]  %s351, 256, %s7, [#allocation4], 128, 128, 8
    $region41: #{transformer_forward.17} parent=1 // pred_fallthru
      _
    // Predicated region
    $region42: #{transformer_forward.17} parent=1 // pred_check
      _
    $region43: #{transformer_forward.17} parent=1 // pred_check_branch
      %358 = sbr.rel (0) target = $region45
    $region44: #{transformer_forward.17} parent=1 // pred_region
      %359 = dma.done [#allocation4], 256
    $region45: #{transformer_forward.17} parent=1 // pred_fallthru
      _
    %360 = vsyncpa [#allocation4], 1

// kernel: transformer_forward.13
$region0: #{transformer_forward.13}
  #allocation0 [shape = 'u32[]', space=smem, size = 0x4, offset = 0x4, fixed_abs, tag = 'smem constant byte address 0x4 - core index']
  #allocation1 [shape = 'u32[144,128]{1,0:T(1,128)}', space=vmem, size = 0x12000, scoped, tag = 'internal scratch']
  #allocation2 [shape = 'f32[16,32]{1,0:T(8,128)}', space=vmem, size = 0x2000, scoped, tag = 'scratch operand']
  %s0 = inlined_call_operand.vmem [shape: f32[16,32], index: 0, kind: input, shape index: {}]
  %s1 = inlined_call_operand.vmem [shape: f32[32,128], index: 1, kind: input, shape index: {}]
  %s2 = inlined_call_operand.vmem [shape: f32[1,128], index: 2, kind: input, shape index: {}]
  %s3 = inlined_call_operand.vmem [shape: f32[128,32], index: 3, kind: input, shape index: {}]
  %s4 = inlined_call_operand.vmem [shape: f32[1,32], index: 4, kind: input, shape index: {}]
  %s5 = inlined_call_operand.vmem [shape: f32[1,32], index: 5, kind: input, shape index: {}]
  %s6 = inlined_call_operand.vmem [shape: f32[1,32], index: 6, kind: input, shape index: {}]
  %s7 = inlined_call_operand.vmem [shape: f32[16,32], index: 7, kind: output, shape index: {}]
  %s8 = sld [smem:[#allocation0]]
  $region46: #{transformer_forward.13} parent=0
    _
  %s10 = ssub.s32 1, %s8
  %s11 = scalar_select 0, %s10, %s8
  // Predicated region
  $region2: #{transformer_forward.13} parent=0 // pred_check
    _
  $region3: #{transformer_forward.13} parent=0 // pred_check_branch
    %13 = sbr.rel (0) target = $region5
  $region4: #{transformer_forward.13} parent=0 // pred_region
    _
  $region5: #{transformer_forward.13} parent=0 // pred_fallthru
    _
  // Predicated region
  $region6: #{transformer_forward.13} parent=0 // pred_check
    _
  $region7: #{transformer_forward.13} parent=0 // pred_check_branch
    %15 = sbr.rel (0) target = $region9
  $region8: #{transformer_forward.13} parent=0 // pred_region
    _
  $region9: #{transformer_forward.13} parent=0 // pred_fallthru
    _
  // Predicated region
  $region10: #{transformer_forward.13} parent=0 // pred_check
    _
  $region11: #{transformer_forward.13} parent=0 // pred_check_branch
    %17 = sbr.rel (0) target = $region13
  $region12: #{transformer_forward.13} parent=0 // pred_region
    _
  $region13: #{transformer_forward.13} parent=0 // pred_fallthru
    _
  // Predicated region
  $region14: #{transformer_forward.13} parent=0 // pred_check
    _
  $region15: #{transformer_forward.13} parent=0 // pred_check_branch
    %19 = sbr.rel (0) target = $region17
  $region16: #{transformer_forward.13} parent=0 // pred_region
    _
  $region17: #{transformer_forward.13} parent=0 // pred_fallthru
    _
  // Predicated region
  $region18: #{transformer_forward.13} parent=0 // pred_check
    _
  $region19: #{transformer_forward.13} parent=0 // pred_check_branch
    %21 = sbr.rel (0) target = $region21
  $region20: #{transformer_forward.13} parent=0 // pred_region
    _
  $region21: #{transformer_forward.13} parent=0 // pred_fallthru
    _
  // Predicated region
  $region22: #{transformer_forward.13} parent=0 // pred_check
    _
  $region23: #{transformer_forward.13} parent=0 // pred_check_branch
    %23 = sbr.rel (0) target = $region25
  $region24: #{transformer_forward.13} parent=0 // pred_region
    _
  $region25: #{transformer_forward.13} parent=0 // pred_fallthru
    _
  // Predicated region
  $region26: #{transformer_forward.13} parent=0 // pred_check
    _
  $region27: #{transformer_forward.13} parent=0 // pred_check_branch
    %25 = sbr.rel (0) target = $region29
  $region28: #{transformer_forward.13} parent=0 // pred_region
    _
  $region29: #{transformer_forward.13} parent=0 // pred_fallthru
    _
  %p26 = scmp.eq.s32.totalorder 0, 0
  // Predicated region
  $region30: #{transformer_forward.13} parent=0 // pred_check
    %p27 = pneg %p26
  $region31: #{transformer_forward.13} parent=0 // pred_check_branch
    %29 = sbr.rel (%p27) target = $region33
  $region32: #{transformer_forward.13} parent=0 // pred_region
    %vm30 = vcmask 261120
    %31 = vst.msk [vmem:[#allocation2] sm:$0xff] %vm30, 0.0
    %32 = vst.msk [vmem:[#allocation2 + $0x8] sm:$0xff] %vm30, 0.0
  $region33: #{transformer_forward.13} parent=0 // pred_fallthru
    _
  %v33 = vld [vmem:[%s0] sm:$0xff]
  %v34 = vld [vmem:[%s0 + $0x8] sm:$0xff]
  %v35 = vld [vmem:[%s1] sm:$0xff]
  %v36 = vld [vmem:[%s1 + $0x8] sm:$0xff]
  %v37 = vld [vmem:[%s1 + $0x10] sm:$0xff]
  %v38 = vld [vmem:[%s1 + $0x18] sm:$0xff]
  %v39 = vld [vmem:[%s2] sm:$0x1]
  %v41 = vlaneseq
  %v42 = vshrl.u32 %v41, 7
  %v43 = vsub.s32 0, %v42
  %v44 = vrot.slane %v39, %v43
  %vm46 = vcmask 261120
  %v48 = vsel %vm46, %v33, 0
  %v51 = vsel %vm46, %v34, 0
  %53 = vmatprep.subr.mxu0 0.0
  %54 = vmatpush1.msra.mxu0 %v35
  %55 = vmatprep.subr.mxu0 0.0
  %56 = vmatpush1.msra.mxu0 %v36
  %57 = vmatprep.subr.mxu0 0.0
  %58 = vmatpush1.msra.mxu0 %v37
  %59 = vmatprep.subr.mxu0 0.0
  %60 = vmatpush1.msra.mxu0 %v38
  %61 = vmatprep.subr.mxu0 0.0
  %62 = vmatpush1.msra.mxu0 0.0
  %63 = vmatprep.subr.mxu0 0.0
  %64 = vmatpush1.msra.mxu0 0.0
  %65 = vmatprep.subr.mxu0 0.0
  %66 = vmatpush1.msra.mxu0 0.0
  %67 = vmatprep.subr.mxu0 0.0
  %68 = vmatpush1.msra.mxu0 0.0
  %69 = vmatprep.subr.mxu0 0.0
  %70 = vmatpush1.msra.mxu0 0.0
  %71 = vmatprep.subr.mxu0 0.0
  %72 = vmatpush1.msra.mxu0 0.0
  %73 = vmatprep.subr.mxu0 0.0
  %74 = vmatpush1.msra.mxu0 0.0
  %75 = vmatprep.subr.mxu0 0.0
  %76 = vmatpush1.msra.mxu0 0.0
  %77 = vmatprep.subr.mxu0 0.0
  %78 = vmatpush1.msra.mxu0 0.0
  %79 = vmatprep.subr.mxu0 0.0
  %80 = vmatpush1.msra.mxu0 0.0
  %81 = vmatprep.subr.mxu0 0.0
  %82 = vmatpush1.msra.mxu0 0.0
  %83 = vmatprep.subr.mxu0 0.0
  %84 = vmatpush1.msra.mxu0 0.0
  %85 = vmatprep.subr.mxu0 0.0
  %86 = vmatpush1.msra.mxu0 0.0
  %87 = vmatprep.subr.mxu0 0.0
  %88 = vmatpush1.msra.mxu0 0.0
  %89 = vmatprep.subr.mxu0 0.0
  %90 = vmatpush1.msra.mxu0 0.0
  %91 = vmatprep.subr.mxu0 0.0
  %92 = vmatpush1.msra.mxu0 0.0
  %93 = vmatprep.subr.mxu0 0.0
  %94 = vmatpush1.msra.mxu0 0.0
  %95 = vmatprep.subr.mxu0 0.0
  %96 = vmatpush1.msra.mxu0 0.0
  %97 = vmatprep.subr.mxu0 0.0
  %98 = vmatpush1.msra.mxu0 0.0
  %99 = vmatprep.subr.mxu0 0.0
  %100 = vmatpush1.msra.mxu0 0.0
  %101 = vmatprep.subr.mxu0 0.0
  %102 = vmatpush1.msra.mxu0 0.0
  %103 = vmatprep.subr.mxu0 0.0
  %104 = vmatpush1.msra.mxu0 0.0
  %105 = vmatprep.subr.mxu0 0.0
  %106 = vmatpush1.msra.mxu0 0.0
  %107 = vmatprep.subr.mxu0 0.0
  %108 = vmatpush1.msra.mxu0 0.0
  %109 = vmatprep.subr.mxu0 0.0
  %110 = vmatpush1.msra.mxu0 0.0
  %111 = vmatprep.subr.mxu0 0.0
  %112 = vmatpush1.msra.mxu0 0.0
  %113 = vmatprep.subr.mxu0 0.0
  %114 = vmatpush1.msra.mxu0 0.0
  %115 = vmatprep.subr.mxu0 0.0
  %116 = vmatpush1.msra.mxu0 0.0
  %117 = vmatprep.mubr.f32.mxu0 0.0
  %118 = vmatmul.mubr.f32.gmra.mrb[0].mxu0 %v48
  %v119 = vpop.f32.mrb[0].mxu0
  %v120 = vadd.f32 %v44, %v119
  %v121 = vpop.f32.mrb[0].mxu0
  %122 = vmatprep.mubr.f32.mxu0 0.0
  %123 = vmatmul.mubr.f32.gmra.mrb[0].mxu0 %v51
  %v124 = vpop.f32.mrb[0].mxu0
  %v125 = vadd.f32 %v44, %v124
  %v126 = vpop.f32.mrb[0].mxu0
  %127 = vdwg.mxu0
  %v128 = vmul.f32 %v120, 0.5
  %v129 = vmul.f32 %v125, 0.5
  %v130 = vmul.f32 %v120, 0.70710677
  %v131 = vmul.f32 %v125, 0.70710677
  %vm132 = vcmp.ge.f32.partialorder %v130, 0.0
  %vm133 = vcmp.ge.f32.partialorder %v131, 0.0
  %v134 = vsel %vm132, 1.0, -1.0
  %v135 = vsel %vm133, 1.0, -1.0
  %v136 = vmul.f32 %v130, %v134
  %v137 = vmul.f32 %v131, %v135
  %v138 = vmul.f32 %v136, 0.3275911
  %v139 = vmul.f32 %v137, 0.3275911
  %v140 = vadd.f32 %v138, 1.0
  %v141 = vadd.f32 %v139, 1.0
  %v142 = vrcp.pop %v140
  %v143 = vmul.f32 1.0, %v142
  %v144 = vrcp.pop %v141
  %v145 = vmul.f32 1.0, %v144
  %v146 = vmul.f32 %v143, 1.0614054
  %v147 = vmul.f32 %v145, 1.0614054
  %v148 = vadd.f32 %v146, -1.4531521
  %v149 = vadd.f32 %v147, -1.4531521
  %v150 = vmul.f32 %v148, %v143
  %v151 = vmul.f32 %v149, %v145
  %v152 = vadd.f32 %v150, 1.4214138
  %v153 = vadd.f32 %v151, 1.4214138
  %v154 = vmul.f32 %v152, %v143
  %v155 = vmul.f32 %v153, %v145
  %v156 = vadd.f32 %v154, -0.28449672
  %v157 = vadd.f32 %v155, -0.28449672
  %v158 = vmul.f32 %v156, %v143
  %v159 = vmul.f32 %v157, %v145
  %v160 = vadd.f32 %v158, 0.2548296
  %v161 = vadd.f32 %v159, 0.2548296
  %v162 = vmul.f32 %v160, %v143
  %v163 = vmul.f32 %v161, %v145
  %v164 = vsub.f32 0.0, %v136
  %v165 = vsub.f32 0.0, %v137
  %v166 = vmul.f32 %v164, %v136
  %v167 = vmul.f32 %v165, %v137
  %v168 = vmul.f32 %v166, 1.442695
  %v169 = vpow.pop %v168
  %v170 = vmul.f32 %v167, 1.442695
  %v171 = vpow.pop %v170
  %v172 = vmul.f32 %v162, %v169
  %v173 = vmul.f32 %v163, %v171
  %v174 = vsub.f32 1.0, %v172
  %v175 = vsub.f32 1.0, %v173
  %v176 = vmul.f32 %v134, %v174
  %v177 = vmul.f32 %v135, %v175
  %v178 = vadd.f32 %v176, 1.0
  %v179 = vadd.f32 %v177, 1.0
  %v180 = vmul.f32 %v128, %v178
  %v181 = vmul.f32 %v129, %v179
  %v182 = vld [vmem:[#allocation2] sm:$0xff]
  %v183 = vld [vmem:[#allocation2 + $0x8] sm:$0xff]
  %v184 = vld [vmem:[%s3] sm:$0xff]
  %v185 = vld [vmem:[%s3 + $0x8] sm:$0xff]
  %v186 = vld [vmem:[%s3 + $0x10] sm:$0xff]
  %v187 = vld [vmem:[%s3 + $0x18] sm:$0xff]
  %v188 = vld [vmem:[%s3 + $0x20] sm:$0xff]
  %v189 = vld [vmem:[%s3 + $0x28] sm:$0xff]
  %v190 = vld [vmem:[%s3 + $0x30] sm:$0xff]
  %v191 = vld [vmem:[%s3 + $0x38] sm:$0xff]
  %v192 = vld [vmem:[%s3 + $0x40] sm:$0xff]
  %v193 = vld [vmem:[%s3 + $0x48] sm:$0xff]
  %v194 = vld [vmem:[%s3 + $0x50] sm:$0xff]
  %v195 = vld [vmem:[%s3 + $0x58] sm:$0xff]
  %v196 = vld [vmem:[%s3 + $0x60] sm:$0xff]
  %v197 = vld [vmem:[%s3 + $0x68] sm:$0xff]
  %v198 = vld [vmem:[%s3 + $0x70] sm:$0xff]
  %v199 = vld [vmem:[%s3 + $0x78] sm:$0xff]
  %200 = vmatprep.subr.mxu0 0.0
  %201 = vmatpush1.msra.mxu0 %v184
  %202 = vmatprep.subr.mxu0 0.0
  %203 = vmatpush1.msra.mxu0 %v185
  %204 = vmatprep.subr.mxu0 0.0
  %205 = vmatpush1.msra.mxu0 %v186
  %206 = vmatprep.subr.mxu0 0.0
  %207 = vmatpush1.msra.mxu0 %v187
  %208 = vmatprep.subr.mxu0 0.0
  %209 = vmatpush1.msra.mxu0 %v188
  %210 = vmatprep.subr.mxu0 0.0
  %211 = vmatpush1.msra.mxu0 %v189
  %212 = vmatprep.subr.mxu0 0.0
  %213 = vmatpush1.msra.mxu0 %v190
  %214 = vmatprep.subr.mxu0 0.0
  %215 = vmatpush1.msra.mxu0 %v191
  %216 = vmatprep.subr.mxu0 0.0
  %217 = vmatpush1.msra.mxu0 %v192
  %218 = vmatprep.subr.mxu0 0.0
  %219 = vmatpush1.msra.mxu0 %v193
  %220 = vmatprep.subr.mxu0 0.0
  %221 = vmatpush1.msra.mxu0 %v194
  %222 = vmatprep.subr.mxu0 0.0
  %223 = vmatpush1.msra.mxu0 %v195
  %224 = vmatprep.subr.mxu0 0.0
  %225 = vmatpush1.msra.mxu0 %v196
  %226 = vmatprep.subr.mxu0 0.0
  %227 = vmatpush1.msra.mxu0 %v197
  %228 = vmatprep.subr.mxu0 0.0
  %229 = vmatpush1.msra.mxu0 %v198
  %230 = vmatprep.subr.mxu0 0.0
  %231 = vmatpush1.msra.mxu0 %v199
  %232 = vmatprep.subr.mxu0 0.0
  %233 = vmatpush1.msra.mxu0 0.0
  %234 = vmatprep.subr.mxu0 0.0
  %235 = vmatpush1.msra.mxu0 0.0
  %236 = vmatprep.subr.mxu0 0.0
  %237 = vmatpush1.msra.mxu0 0.0
  %238 = vmatprep.subr.mxu0 0.0
  %239 = vmatpush1.msra.mxu0 0.0
  %240 = vmatprep.subr.mxu0 0.0
  %241 = vmatpush1.msra.mxu0 0.0
  %242 = vmatprep.subr.mxu0 0.0
  %243 = vmatpush1.msra.mxu0 0.0
  %244 = vmatprep.subr.mxu0 0.0
  %245 = vmatpush1.msra.mxu0 0.0
  %246 = vmatprep.subr.mxu0 0.0
  %247 = vmatpush1.msra.mxu0 0.0
  %248 = vmatprep.subr.mxu0 0.0
  %249 = vmatpush1.msra.mxu0 0.0
  %250 = vmatprep.subr.mxu0 0.0
  %251 = vmatpush1.msra.mxu0 0.0
  %252 = vmatprep.subr.mxu0 0.0
  %253 = vmatpush1.msra.mxu0 0.0
  %254 = vmatprep.subr.mxu0 0.0
  %255 = vmatpush1.msra.mxu0 0.0
  %256 = vmatprep.subr.mxu0 0.0
  %257 = vmatpush1.msra.mxu0 0.0
  %258 = vmatprep.subr.mxu0 0.0
  %259 = vmatpush1.msra.mxu0 0.0
  %260 = vmatprep.subr.mxu0 0.0
  %261 = vmatpush1.msra.mxu0 0.0
  %262 = vmatprep.subr.mxu0 0.0
  %263 = vmatpush1.msra.mxu0 0.0
  %264 = vmatprep.mubr.f32.mxu0 0.0
  %265 = vmatmul.mubr.f32.gmra.mrb[0].mxu0 %v180
  %v266 = vpop.f32.mrb[0].mxu0
  %v267 = vadd.f32 0.0, %v266
  %v268 = vpop.f32.mrb[0].mxu0
  %269 = vmatprep.mubr.f32.mxu0 0.0
  %270 = vmatmul.mubr.f32.gmra.mrb[0].mxu0 %v181
  %v271 = vpop.f32.mrb[0].mxu0
  %v272 = vadd.f32 0.0, %v271
  %v273 = vpop.f32.mrb[0].mxu0
  %274 = vdwg.mxu0
  %v275 = vadd.f32 %v182, %v267
  %v276 = vadd.f32 %v183, %v272
  %277 = vst.msk [vmem:[#allocation2] sm:$0xff] %vm46, %v275
  %278 = vst.msk [vmem:[#allocation2 + $0x8] sm:$0xff] %vm46, %v276
  // Predicated region
  $region34: #{transformer_forward.13} parent=0 // pred_check
    %p279 = pneg %p26
  $region35: #{transformer_forward.13} parent=0 // pred_check_branch
    %281 = sbr.rel (%p279) target = $region37
  $region36: #{transformer_forward.13} parent=0 // pred_region
    %v282 = vld [vmem:[%s0] sm:$0xff]
    %v283 = vld [vmem:[%s0 + $0x8] sm:$0xff]
    %v284 = vld [vmem:[#allocation2] sm:$0xff]
    %v285 = vld [vmem:[#allocation2 + $0x8] sm:$0xff]
    %v286 = vadd.f32 %v282, %v284
    %v287 = vadd.f32 %v283, %v285
    %v288 = vld [vmem:[%s4] sm:$0x1]
    %v290 = vlaneseq
    %v291 = vshrl.u32 %v290, 7
    %v292 = vsub.s32 0, %v291
    %v293 = vrot.slane %v288, %v292
    %v295 = vadd.f32 %v286, %v293
    %v296 = vadd.f32 %v287, %v293
    %v297 = vld [vmem:[%s5] sm:$0x1]
    %v298 = vld [vmem:[%s6] sm:$0x1]
    %v299 = vsel %vm46, %v295, 0.0
    %300 = vadd.xlane.f32.xlu0 %v299
    %v301 = vpop.xlane.xlu0 %300
    %v302 = vsel %vm46, %v296, 0.0
    %303 = vadd.xlane.f32.xlu0 %v302
    %v304 = vpop.xlane.xlu0 %303
    %v305 = vrcp.pop 32.0
    %v306 = vmul.f32 %v301, %v305
    %v307 = vmul.f32 %v304, %v305
    %v308 = vsub.f32 %v295, %v306
    %v309 = vsub.f32 %v296, %v307
    %v310 = vmul.f32 %v308, %v308
    %v311 = vmul.f32 %v309, %v309
    %v312 = vsel %vm46, %v310, 0.0
    %313 = vadd.xlane.f32.xlu0 %v312
    %v314 = vpop.xlane.xlu0 %313
    %v315 = vsel %vm46, %v311, 0.0
    %316 = vadd.xlane.f32.xlu0 %v315
    %v317 = vpop.xlane.xlu0 %316
    %v318 = vmul.f32 %v314, %v305
    %v319 = vmul.f32 %v317, %v305
    %v320 = vadd.f32 %v318, 1e-12
    %v321 = vadd.f32 %v319, 1e-12
    %v322 = vrsqrt.pop %v320
    %v323 = vrsqrt.pop %v321
    %v325 = vlaneseq
    %v326 = vshrl.u32 %v325, 7
    %v327 = vsub.s32 0, %v326
    %v328 = vrot.slane %v297, %v327
    %v330 = vmul.f32 %v322, %v328
    %v331 = vmul.f32 %v323, %v328
    %v332 = vmul.f32 %v308, %v330
    %v333 = vmul.f32 %v309, %v331
    %v335 = vlaneseq
    %v336 = vshrl.u32 %v335, 7
    %v337 = vsub.s32 0, %v336
    %v338 = vrot.slane %v298, %v337
    %v340 = vadd.f32 %v332, %v338
    %v341 = vadd.f32 %v333, %v338
    %342 = vst.msk [vmem:[%s7] sm:$0xff] %vm46, %v340
    %343 = vst.msk [vmem:[%s7 + $0x8] sm:$0xff] %vm46, %v341
  $region37: #{transformer_forward.13} parent=0 // pred_fallthru
    _
  // Predicated region
  $region38: #{transformer_forward.13} parent=0 // pred_check
    _
  $region39: #{transformer_forward.13} parent=0 // pred_check_branch
    %345 = sbr.rel (0) target = $region41
  $region40: #{transformer_forward.13} parent=0 // pred_region
    _
  $region41: #{transformer_forward.13} parent=0 // pred_fallthru
    _
  // Predicated region
  $region42: #{transformer_forward.13} parent=0 // pred_check
    _
  $region43: #{transformer_forward.13} parent=0 // pred_check_branch
    %347 = sbr.rel (0) target = $region45
  $region44: #{transformer_forward.13} parent=0 // pred_region
    _
  $region45: #{transformer_forward.13} parent=0 // pred_fallthru
    _

// kernel: transformer_forward.11
$region0: #{transformer_forward.11}
  #allocation0 [shape = 'u32[]', space=smem, size = 0x4, offset = 0x4, fixed_abs, tag = 'smem constant byte address 0x4 - core index']
  #allocation1 [shape = 'u32[144,128]{1,0:T(1,128)}', space=vmem, size = 0x12000, scoped, tag = 'internal scratch']
  #allocation2 [shape = 'f32[4,8,1]{2,1,0:T(8,128)}', space=vmem, size = 0x4000, scoped, tag = 'scratch operand']
  #allocation3 [shape = 'f32[4,8,1]{2,1,0:T(8,128)}', space=vmem, size = 0x4000, scoped, tag = 'scratch operand']
  #allocation4 [shape = 'f32[4,8,8]{2,1,0:T(8,128)}', space=vmem, size = 0x4000, scoped, tag = 'scratch operand']
  %s0 = inlined_call_operand.vmem [shape: f32[2,8,3,4,8], index: 0, kind: input, shape index: {}, may-alias: {0,1,2}]
  %s1 = inlined_call_operand.vmem [shape: f32[2,8,3,4,8], index: 1, kind: input, shape index: {}, may-alias: {0,1,2}]
  %s2 = inlined_call_operand.vmem [shape: f32[2,8,3,4,8], index: 2, kind: input, shape index: {}, may-alias: {0,1,2}]
  %s3 = inlined_call_operand.vmem [shape: f32[2,1,8], index: 3, kind: input, shape index: {}]
  %s4 = inlined_call_operand.vmem [shape: f32[2,8,32], index: 4, kind: output, shape index: {}]
  %s5 = sld [smem:[#allocation0]]
  $region180: #{transformer_forward.11} parent=0
    _
  %s7 = ssub.s32 1, %s5
  %s8 = scalar_select 0, %s7, %s5
  $region1: #{transformer_forward.11} parent=0
    #allocation5 [shape = 'u8[32768]{0}', space=vmem, size = 0x8000, scoped, tag = 'input window, operand 0']
    #allocation6 [shape = 'u8[32768]{0}', space=vmem, size = 0x8000, scoped, tag = 'input window, operand 1']
    #allocation7 [shape = 'u8[32768]{0}', space=vmem, size = 0x8000, scoped, tag = 'input window, operand 2']
    loop: start=0, step=1, limit=4
    $region2: #{transformer_forward.11} parent=1 // loop_pre_header
      _
    $region3: #{transformer_forward.11} parent=1 // loop_header
      %s10 = sphi 0, %s14
      %p11 = scmp.ge.s32.totalorder %s10, 4
      %s17 = sphi 0, %s36
      %s18 = sphi 0, %s32
      %s19 = sphi 0, %s28
      %s20 = sphi 0, %s17
      %s21 = sphi 0, %s18
      %s22 = sphi 0, %s19
      %s23 = sphi 0, %s20
      %s24 = sphi 0, %s21
      %s25 = sphi 0, %s22
      %s41 = sphi 0, %s43
      %s44 = sphi 0, %s41
      %s45 = sphi 0, %s44
      %s61 = sphi 0, %s45
      %s69 = sphi 0, %s71
      %s72 = sphi 0, %s69
      %s73 = sphi 0, %s72
      %s89 = sphi 0, %s73
      %s97 = sphi 0, %s99
      %s100 = sphi 0, %s97
      %s101 = sphi 0, %s100
      %s117 = sphi 0, %s101
      %s125 = sphi 0, %s127
      %s128 = sphi 0, %s125
      %s129 = sphi 0, %s128
      %s145 = sphi 0, %s129
      %s153 = sphi 0, %s155
      %s156 = sphi 0, %s153
      %s157 = sphi 0, %s156
      %s173 = sphi 0, %s157
    $region4: #{transformer_forward.11} parent=1 // loop_header_branch
      %13 = sbr.rel (%p11) target = $region8
    $region5: #{transformer_forward.11} parent=1 // loop_body
      %s15 = ssub.s32 %s10, 1
      %s16 = ssub.s32 %s10, 2
      %s26 = sadd.s32 1, %s19
      %p27 = scmp.ge.s32.totalorder %s26, 1
      %s28 = scalar_select %p27, 0, %s26
      %s29 = sadd.s32 1, %s18
      %s30 = scalar_select %p27, %s29, %s18
      %p31 = scmp.ge.s32.totalorder %s30, 1
      %s32 = scalar_select %p31, 0, %s30
      %s33 = sadd.s32 1, %s17
      %s34 = scalar_select %p31, %s33, %s17
      %p35 = scmp.ge.s32.totalorder %s34, 2
      %s36 = scalar_select %p35, 0, %s34
      %s37 = ssub.s32 %s17, %s36
      %s38 = ssub.s32 %s18, %s32
      %s39 = sor.u32 %s37, %s38
      %p40 = scmp.eq.s32.totalorder %s39, 0
      %s42 = sadd.s32 %s41, 1
      %s43 = scalar_select %p40, %s41, %s42
      %p46 = pneg %p40
      %p47 = scmp.eq.s32.totalorder %s10, 1
      %p48 = por %p46, %p47
      %p49 = scmp.ne.s32.totalorder %s41, %s44
      %p50 = scmp.eq.s32.totalorder %s10, 0
      %p51 = por %p49, %p50
      %p52 = scmp.ne.s32.totalorder %s41, %s44
      %p53 = scmp.eq.s32.totalorder %s15, 1
      %p54 = por %p52, %p53
      %p55 = scmp.ne.s32.totalorder %s44, %s45
      %p56 = scmp.eq.s32.totalorder %s15, 0
      %p57 = por %p55, %p56
      %p58 = scmp.ne.s32.totalorder %s44, %s45
      %p59 = scmp.eq.s32.totalorder %s16, 1
      %p60 = por %p58, %p59
      %p62 = scmp.ne.s32.totalorder %s45, %s61
      %p63 = scmp.eq.s32.totalorder %s16, 0
      %p64 = por %p62, %p63
      %s65 = ssub.s32 %s17, %s36
      %s66 = ssub.s32 %s19, %s28
      %s67 = sor.u32 %s65, %s66
      %p68 = scmp.eq.s32.totalorder %s67, 0
      %s70 = sadd.s32 %s69, 1
      %s71 = scalar_select %p68, %s69, %s70
      %p74 = pneg %p68
      %p75 = scmp.eq.s32.totalorder %s10, 1
      %p76 = por %p74, %p75
      %p77 = scmp.ne.s32.totalorder %s69, %s72
      %p78 = scmp.eq.s32.totalorder %s10, 0
      %p79 = por %p77, %p78
      %p80 = scmp.ne.s32.totalorder %s69, %s72
      %p81 = scmp.eq.s32.totalorder %s15, 1
      %p82 = por %p80, %p81
      %p83 = scmp.ne.s32.totalorder %s72, %s73
      %p84 = scmp.eq.s32.totalorder %s15, 0
      %p85 = por %p83, %p84
      %p86 = scmp.ne.s32.totalorder %s72, %s73
      %p87 = scmp.eq.s32.totalorder %s16, 1
      %p88 = por %p86, %p87
      %p90 = scmp.ne.s32.totalorder %s73, %s89
      %p91 = scmp.eq.s32.totalorder %s16, 0
      %p92 = por %p90, %p91
      %s93 = ssub.s32 %s17, %s36
      %s94 = ssub.s32 %s19, %s28
      %s95 = sor.u32 %s93, %s94
      %p96 = scmp.eq.s32.totalorder %s95, 0
      %s98 = sadd.s32 %s97, 1
      %s99 = scalar_select %p96, %s97, %s98
      %p102 = pneg %p96
      %p103 = scmp.eq.s32.totalorder %s10, 1
      %p104 = por %p102, %p103
      %p105 = scmp.ne.s32.totalorder %s97, %s100
      %p106 = scmp.eq.s32.totalorder %s10, 0
      %p107 = por %p105, %p106
      %p108 = scmp.ne.s32.totalorder %s97, %s100
      %p109 = scmp.eq.s32.totalorder %s15, 1
      %p110 = por %p108, %p109
      %p111 = scmp.ne.s32.totalorder %s100, %s101
      %p112 = scmp.eq.s32.totalorder %s15, 0
      %p113 = por %p111, %p112
      %p114 = scmp.ne.s32.totalorder %s100, %s101
      %p115 = scmp.eq.s32.totalorder %s16, 1
      %p116 = por %p114, %p115
      %p118 = scmp.ne.s32.totalorder %s101, %s117
      %p119 = scmp.eq.s32.totalorder %s16, 0
      %p120 = por %p118, %p119
      %s121 = ssub.s32 %s17, %s36
      %s122 = ssub.s32 %s19, %s28
      %s123 = sor.u32 %s121, %s122
      %p124 = scmp.eq.s32.totalorder %s123, 0
      %s126 = sadd.s32 %s125, 1
      %s127 = scalar_select %p124, %s125, %s126
      %p130 = pneg %p124
      %p131 = scmp.eq.s32.totalorder %s10, 1
      %p132 = por %p130, %p131
      %p133 = scmp.ne.s32.totalorder %s125, %s128
      %p134 = scmp.eq.s32.totalorder %s10, 0
      %p135 = por %p133, %p134
      %p136 = scmp.ne.s32.totalorder %s125, %s128
      %p137 = scmp.eq.s32.totalorder %s15, 1
      %p138 = por %p136, %p137
      %p139 = scmp.ne.s32.totalorder %s128, %s129
      %p140 = scmp.eq.s32.totalorder %s15, 0
      %p141 = por %p139, %p140
      %p142 = scmp.ne.s32.totalorder %s128, %s129
      %p143 = scmp.eq.s32.totalorder %s16, 1
      %p144 = por %p142, %p143
      %p146 = scmp.ne.s32.totalorder %s129, %s145
      %p147 = scmp.eq.s32.totalorder %s16, 0
      %p148 = por %p146, %p147
      %s149 = ssub.s32 %s17, %s36
      %s150 = ssub.s32 %s18, %s32
      %s151 = sor.u32 %s149, %s150
      %p152 = scmp.eq.s32.totalorder %s151, 0
      %s154 = sadd.s32 %s153, 1
      %s155 = scalar_select %p152, %s153, %s154
      %p158 = pneg %p152
      %p159 = scmp.eq.s32.totalorder %s10, 1
      %p160 = por %p158, %p159
      %p161 = scmp.ne.s32.totalorder %s153, %s156
      %p162 = scmp.eq.s32.totalorder %s10, 0
      %p163 = por %p161, %p162
      %p164 = scmp.ne.s32.totalorder %s153, %s156
      %p165 = scmp.eq.s32.totalorder %s15, 1
      %p166 = por %p164, %p165
      %p167 = scmp.ne.s32.totalorder %s156, %s157
      %p168 = scmp.eq.s32.totalorder %s15, 0
      %p169 = por %p167, %p168
      %p170 = scmp.ne.s32.totalorder %s156, %s157
      %p171 = scmp.eq.s32.totalorder %s16, 1
      %p172 = por %p170, %p171
      %p174 = scmp.ne.s32.totalorder %s157, %s173
      %p175 = scmp.eq.s32.totalorder %s16, 0
      %p176 = por %p174, %p175
      %p177 = scmp.le.s32.totalorder 1, %s10
      %p178 = scmp.lt.s32.totalorder %s10, 3
      %p179 = pnand %p177, %p178
      %p180 = pneg %p179
      // Predicated region
      $region9: #{transformer_forward.11} parent=5 // pred_check
        _
      $region10: #{transformer_forward.11} parent=5 // pred_check_branch
        %182 = sbr.rel (%p179) target = $region12
      $region11: #{transformer_forward.11} parent=5 // pred_region
        %s183 = ssub.s32 %s10, 1
      $region12: #{transformer_forward.11} parent=5 // pred_fallthru
        _
      %p184 = scmp.lt.s32.totalorder %s10, 2
      // Predicated region
      $region13: #{transformer_forward.11} parent=5 // pred_check
        %p185 = pneg %p184
      $region14: #{transformer_forward.11} parent=5 // pred_check_branch
        %187 = sbr.rel (%p185) target = $region16
      $region15: #{transformer_forward.11} parent=5 // pred_region
        // Predicated region
        $region17: #{transformer_forward.11} parent=15 // pred_check
          %p188 = pneg %p51
        $region18: #{transformer_forward.11} parent=15 // pred_check_branch
          %190 = sbr.rel (%p188) target = $region20
        $region19: #{transformer_forward.11} parent=15 // pred_region
          %s191 = sand.u32 %s41, 1
          %s192 = sand.u32 %s41, 1
          %s193 = smul.addr %s192, 32
          %s194 = scalar_lea.vmem [#allocation5], %s193
          %s195 = smul.u32 8, %s18
          %s196 = smul.addr %s195, 3
          %s197 = smul.addr %s17, 24
          %s198 = sadd.s32 %s196, %s197
          %s199 = smul.addr %s198, 4
          %s200 = scalar_lea.vmem %s0, %s199
          // Predicated region
          $region21: #{transformer_forward.11} parent=19 // pred_check
            _
          $region22: #{transformer_forward.11} parent=19 // pred_check_branch
            %202 = sbr.rel (0) target = $region24
          $region23: #{transformer_forward.11} parent=19 // pred_region
            // Predicated region
            $region25: #{transformer_forward.11} parent=23 // pred_check
              _
            $region26: #{transformer_forward.11} parent=23 // pred_check_branch
              %204 = sbr.rel target = $region28
            $region27: #{transformer_forward.11} parent=23 // pred_region
              // Predicated region
              $region40: #{transformer_forward.11} parent=27 // pred_check
                _
              $region41: #{transformer_forward.11} parent=27 // pred_check_branch
                %233 = sbr.rel (0) target = $region43
              $region42: #{transformer_forward.11} parent=27 // pred_region
                loop: start=0, step=1, limit=1
                $region44: #{transformer_forward.11} parent=42 // loop_pre_header
                  _
                $region45: #{transformer_forward.11} parent=42 // loop_header
                  %s235 = sphi 0, %s239
                  %p236 = scmp.ge.s32.totalorder %s235, 1
                  %s240 = sphi %s200, %s200
                  %s241 = sphi %s194, %s194
                $region46: #{transformer_forward.11} parent=42 // loop_header_branch
                  %238 = sbr.rel (%p236) target = $region50
                $region47: #{transformer_forward.11} parent=42 // loop_body
                  _
                $region48: #{transformer_forward.11} parent=42 // loop_footer
                  %s239 = sadd.s32 1, %s235
                $region49: #{transformer_forward.11} parent=42 // loop_footer_branch
                  %234 = sbr.rel target = $region45
                $region50: #{transformer_forward.11} parent=42 // loop_exit
                  _
                loop: start=0, step=1, limit=1
                $region51: #{transformer_forward.11} parent=42 // loop_pre_header
                  _
                $region52: #{transformer_forward.11} parent=42 // loop_header
                  %s244 = sphi 0, %s248
                  %p245 = scmp.ge.s32.totalorder %s244, 1
                  %s249 = sphi %s200, %s200
                  %s250 = sphi %s194, %s194
                $region53: #{transformer_forward.11} parent=42 // loop_header_branch
                  %247 = sbr.rel (%p245) target = $region57
                $region54: #{transformer_forward.11} parent=42 // loop_body
                  %v251 = vld [vmem:[%s249] sm:$0xf]
                  %252 = vst [vmem:[%s250] sm:$0xf] %v251
                  %v253 = vld [vmem:[%s249 + $0xc] sm:$0xf]
                  %254 = vst [vmem:[%s250 + $0x4] sm:$0xf] %v253
                  %v255 = vld [vmem:[%s249 + $0x18] sm:$0xf]
                  %256 = vst [vmem:[%s250 + $0x8] sm:$0xf] %v255
                  %v257 = vld [vmem:[%s249 + $0x24] sm:$0xf]
                  %258 = vst [vmem:[%s250 + $0xc] sm:$0xf] %v257
                  %v259 = vld [vmem:[%s249 + $0x30] sm:$0xf]
                  %260 = vst [vmem:[%s250 + $0x10] sm:$0xf] %v259
                  %v261 = vld [vmem:[%s249 + $0x3c] sm:$0xf]
                  %262 = vst [vmem:[%s250 + $0x14] sm:$0xf] %v261
                  %v263 = vld [vmem:[%s249 + $0x48] sm:$0xf]
                  %264 = vst [vmem:[%s250 + $0x18] sm:$0xf] %v263
                  %v265 = vld [vmem:[%s249 + $0x54] sm:$0xf]
                  %266 = vst [vmem:[%s250 + $0x1c] sm:$0xf] %v265
                $region55: #{transformer_forward.11} parent=42 // loop_footer
                  %s248 = sadd.s32 1, %s244
                $region56: #{transformer_forward.11} parent=42 // loop_footer_branch
                  %243 = sbr.rel target = $region52
                $region57: #{transformer_forward.11} parent=42 // loop_exit
                  _
              $region43: #{transformer_forward.11} parent=27 // pred_fallthru
                _
            $region28: #{transformer_forward.11} parent=23 // pred_fallthru
              _
            // Predicated region
            $region29: #{transformer_forward.11} parent=23 // pred_check
              _
            $region30: #{transformer_forward.11} parent=23 // pred_check_branch
              %206 = sbr.rel (0) target = $region32
            $region31: #{transformer_forward.11} parent=23 // pred_region
              loop: start=0, step=1, limit=1
              $region33: #{transformer_forward.11} parent=31 // loop_pre_header
                _
              $region34: #{transformer_forward.11} parent=31 // loop_header
                %s209 = sphi 0, %s213
                %p210 = scmp.ge.s32.totalorder %s209, 1
                %s214 = sphi %s200, %s200
                %s215 = sphi %s194, %s194
              $region35: #{transformer_forward.11} parent=31 // loop_header_branch
                %212 = sbr.rel (%p210) target = $region39
              $region36: #{transformer_forward.11} parent=31 // loop_body
                %v216 = vld [vmem:[%s214] sm:$0xf]
                %217 = vst [vmem:[%s215] sm:$0xf] %v216
                %v218 = vld [vmem:[%s214 + $0xc] sm:$0xf]
                %219 = vst [vmem:[%s215 + $0x4] sm:$0xf] %v218
                %v220 = vld [vmem:[%s214 + $0x18] sm:$0xf]
                %221 = vst [vmem:[%s215 + $0x8] sm:$0xf] %v220
                %v222 = vld [vmem:[%s214 + $0x24] sm:$0xf]
                %223 = vst [vmem:[%s215 + $0xc] sm:$0xf] %v222
                %v224 = vld [vmem:[%s214 + $0x30] sm:$0xf]
                %225 = vst [vmem:[%s215 + $0x10] sm:$0xf] %v224
                %v226 = vld [vmem:[%s214 + $0x3c] sm:$0xf]
                %227 = vst [vmem:[%s215 + $0x14] sm:$0xf] %v226
                %v228 = vld [vmem:[%s214 + $0x48] sm:$0xf]
                %229 = vst [vmem:[%s215 + $0x18] sm:$0xf] %v228
                %v230 = vld [vmem:[%s214 + $0x54] sm:$0xf]
                %231 = vst [vmem:[%s215 + $0x1c] sm:$0xf] %v230
              $region37: #{transformer_forward.11} parent=31 // loop_footer
                %s213 = sadd.s32 1, %s209
              $region38: #{transformer_forward.11} parent=31 // loop_footer_branch
                %208 = sbr.rel target = $region34
              $region39: #{transformer_forward.11} parent=31 // loop_exit
                _
            $region32: #{transformer_forward.11} parent=23 // pred_fallthru
              _
          $region24: #{transformer_forward.11} parent=19 // pred_fallthru
            _
          %267 = vnop
        $region20: #{transformer_forward.11} parent=15 // pred_fallthru
          _
        // Predicated region
        $region58: #{transformer_forward.11} parent=15 // pred_check
          %p268 = pneg %p79
        $region59: #{transformer_forward.11} parent=15 // pred_check_branch
          %270 = sbr.rel (%p268) target = $region61
        $region60: #{transformer_forward.11} parent=15 // pred_region
          %s271 = sand.u32 %s69, 1
          %s272 = sand.u32 %s69, 1
          %s273 = smul.addr %s272, 32
          %s274 = scalar_lea.vmem [#allocation6], %s273
          %s275 = smul.u32 8, %s19
          %s276 = smul.addr %s275, 3
          %s277 = sadd.s32 1, %s276
          %s278 = smul.addr %s17, 24
          %s279 = sadd.s32 %s277, %s278
          %s280 = smul.addr %s279, 4
          %s281 = scalar_lea.vmem %s1, %s280
          // Predicated region
          $region62: #{transformer_forward.11} parent=60 // pred_check
            _
          $region63: #{transformer_forward.11} parent=60 // pred_check_branch
            %283 = sbr.rel (0) target = $region65
          $region64: #{transformer_forward.11} parent=60 // pred_region
            // Predicated region
            $region66: #{transformer_forward.11} parent=64 // pred_check
              _
            $region67: #{transformer_forward.11} parent=64 // pred_check_branch
              %285 = sbr.rel target = $region69
            $region68: #{transformer_forward.11} parent=64 // pred_region
              // Predicated region
              $region81: #{transformer_forward.11} parent=68 // pred_check
                _
              $region82: #{transformer_forward.11} parent=68 // pred_check_branch
                %314 = sbr.rel (0) target = $region84
              $region83: #{transformer_forward.11} parent=68 // pred_region
                loop: start=0, step=1, limit=1
                $region85: #{transformer_forward.11} parent=83 // loop_pre_header
                  _
                $region86: #{transformer_forward.11} parent=83 // loop_header
                  %s316 = sphi 0, %s320
                  %p317 = scmp.ge.s32.totalorder %s316, 1
                  %s321 = sphi %s281, %s281
                  %s322 = sphi %s274, %s274
                $region87: #{transformer_forward.11} parent=83 // loop_header_branch
                  %319 = sbr.rel (%p317) target = $region91
                $region88: #{transformer_forward.11} parent=83 // loop_body
                  _
                $region89: #{transformer_forward.11} parent=83 // loop_footer
                  %s320 = sadd.s32 1, %s316
                $region90: #{transformer_forward.11} parent=83 // loop_footer_branch
                  %315 = sbr.rel target = $region86
                $region91: #{transformer_forward.11} parent=83 // loop_exit
                  _
                loop: start=0, step=1, limit=1
                $region92: #{transformer_forward.11} parent=83 // loop_pre_header
                  _
                $region93: #{transformer_forward.11} parent=83 // loop_header
                  %s325 = sphi 0, %s329
                  %p326 = scmp.ge.s32.totalorder %s325, 1
                  %s330 = sphi %s281, %s281
                  %s331 = sphi %s274, %s274
                $region94: #{transformer_forward.11} parent=83 // loop_header_branch
                  %328 = sbr.rel (%p326) target = $region98
                $region95: #{transformer_forward.11} parent=83 // loop_body
                  %v332 = vld [vmem:[%s330] sm:$0xf]
                  %333 = vst [vmem:[%s331] sm:$0xf] %v332
                  %v334 = vld [vmem:[%s330 + $0xc] sm:$0xf]
                  %335 = vst [vmem:[%s331 + $0x4] sm:$0xf] %v334
                  %v336 = vld [vmem:[%s330 + $0x18] sm:$0xf]
                  %337 = vst [vmem:[%s331 + $0x8] sm:$0xf] %v336
                  %v338 = vld [vmem:[%s330 + $0x24] sm:$0xf]
                  %339 = vst [vmem:[%s331 + $0xc] sm:$0xf] %v338
                  %v340 = vld [vmem:[%s330 + $0x30] sm:$0xf]
                  %341 = vst [vmem:[%s331 + $0x10] sm:$0xf] %v340
                  %v342 = vld [vmem:[%s330 + $0x3c] sm:$0xf]
                  %343 = vst [vmem:[%s331 + $0x14] sm:$0xf] %v342
                  %v344 = vld [vmem:[%s330 + $0x48] sm:$0xf]
                  %345 = vst [vmem:[%s331 + $0x18] sm:$0xf] %v344
                  %v346 = vld [vmem:[%s330 + $0x54] sm:$0xf]
                  %347 = vst [vmem:[%s331 + $0x1c] sm:$0xf] %v346
                $region96: #{transformer_forward.11} parent=83 // loop_footer
                  %s329 = sadd.s32 1, %s325
                $region97: #{transformer_forward.11} parent=83 // loop_footer_branch
                  %324 = sbr.rel target = $region93
                $region98: #{transformer_forward.11} parent=83 // loop_exit
                  _
              $region84: #{transformer_forward.11} parent=68 // pred_fallthru
                _
            $region69: #{transformer_forward.11} parent=64 // pred_fallthru
              _
            // Predicated region
            $region70: #{transformer_forward.11} parent=64 // pred_check
              _
            $region71: #{transformer_forward.11} parent=64 // pred_check_branch
              %287 = sbr.rel (0) target = $region73
            $region72: #{transformer_forward.11} parent=64 // pred_region
              loop: start=0, step=1, limit=1
              $region74: #{transformer_forward.11} parent=72 // loop_pre_header
                _
              $region75: #{transformer_forward.11} parent=72 // loop_header
                %s290 = sphi 0, %s294
                %p291 = scmp.ge.s32.totalorder %s290, 1
                %s295 = sphi %s281, %s281
                %s296 = sphi %s274, %s274
              $region76: #{transformer_forward.11} parent=72 // loop_header_branch
                %293 = sbr.rel (%p291) target = $region80
              $region77: #{transformer_forward.11} parent=72 // loop_body
                %v297 = vld [vmem:[%s295] sm:$0xf]
                %298 = vst [vmem:[%s296] sm:$0xf] %v297
                %v299 = vld [vmem:[%s295 + $0xc] sm:$0xf]
                %300 = vst [vmem:[%s296 + $0x4] sm:$0xf] %v299
                %v301 = vld [vmem:[%s295 + $0x18] sm:$0xf]
                %302 = vst [vmem:[%s296 + $0x8] sm:$0xf] %v301
                %v303 = vld [vmem:[%s295 + $0x24] sm:$0xf]
                %304 = vst [vmem:[%s296 + $0xc] sm:$0xf] %v303
                %v305 = vld [vmem:[%s295 + $0x30] sm:$0xf]
                %306 = vst [vmem:[%s296 + $0x10] sm:$0xf] %v305
                %v307 = vld [vmem:[%s295 + $0x3c] sm:$0xf]
                %308 = vst [vmem:[%s296 + $0x14] sm:$0xf] %v307
                %v309 = vld [vmem:[%s295 + $0x48] sm:$0xf]
                %310 = vst [vmem:[%s296 + $0x18] sm:$0xf] %v309
                %v311 = vld [vmem:[%s295 + $0x54] sm:$0xf]
                %312 = vst [vmem:[%s296 + $0x1c] sm:$0xf] %v311
              $region78: #{transformer_forward.11} parent=72 // loop_footer
                %s294 = sadd.s32 1, %s290
              $region79: #{transformer_forward.11} parent=72 // loop_footer_branch
                %289 = sbr.rel target = $region75
              $region80: #{transformer_forward.11} parent=72 // loop_exit
                _
            $region73: #{transformer_forward.11} parent=64 // pred_fallthru
              _
          $region65: #{transformer_forward.11} parent=60 // pred_fallthru
            _
          %348 = vnop
        $region61: #{transformer_forward.11} parent=15 // pred_fallthru
          _
        // Predicated region
        $region99: #{transformer_forward.11} parent=15 // pred_check
          %p349 = pneg %p107
        $region100: #{transformer_forward.11} parent=15 // pred_check_branch
          %351 = sbr.rel (%p349) target = $region102
        $region101: #{transformer_forward.11} parent=15 // pred_region
          %s352 = sand.u32 %s97, 1
          %s353 = sand.u32 %s97, 1
          %s354 = smul.addr %s353, 32
          %s355 = scalar_lea.vmem [#allocation7], %s354
          %s356 = smul.u32 8, %s19
          %s357 = smul.addr %s356, 3
          %s358 = sadd.s32 2, %s357
          %s359 = smul.addr %s17, 24
          %s360 = sadd.s32 %s358, %s359
          %s361 = smul.addr %s360, 4
          %s362 = scalar_lea.vmem %s2, %s361
          // Predicated region
          $region103: #{transformer_forward.11} parent=101 // pred_check
            _
          $region104: #{transformer_forward.11} parent=101 // pred_check_branch
            %364 = sbr.rel (0) target = $region106
          $region105: #{transformer_forward.11} parent=101 // pred_region
            // Predicated region
            $region107: #{transformer_forward.11} parent=105 // pred_check
              _
            $region108: #{transformer_forward.11} parent=105 // pred_check_branch
              %366 = sbr.rel target = $region110
            $region109: #{transformer_forward.11} parent=105 // pred_region
              // Predicated region
              $region122: #{transformer_forward.11} parent=109 // pred_check
                _
              $region123: #{transformer_forward.11} parent=109 // pred_check_branch
                %395 = sbr.rel (0) target = $region125
              $region124: #{transformer_forward.11} parent=109 // pred_region
                loop: start=0, step=1, limit=1
                $region126: #{transformer_forward.11} parent=124 // loop_pre_header
                  _
                $region127: #{transformer_forward.11} parent=124 // loop_header
                  %s397 = sphi 0, %s401
                  %p398 = scmp.ge.s32.totalorder %s397, 1
                  %s402 = sphi %s362, %s362
                  %s403 = sphi %s355, %s355
                $region128: #{transformer_forward.11} parent=124 // loop_header_branch
                  %400 = sbr.rel (%p398) target = $region132
                $region129: #{transformer_forward.11} parent=124 // loop_body
                  _
                $region130: #{transformer_forward.11} parent=124 // loop_footer
                  %s401 = sadd.s32 1, %s397
                $region131: #{transformer_forward.11} parent=124 // loop_footer_branch
                  %396 = sbr.rel target = $region127
                $region132: #{transformer_forward.11} parent=124 // loop_exit
                  _
                loop: start=0, step=1, limit=1
                $region133: #{transformer_forward.11} parent=124 // loop_pre_header
                  _
                $region134: #{transformer_forward.11} parent=124 // loop_header
                  %s406 = sphi 0, %s410
                  %p407 = scmp.ge.s32.totalorder %s406, 1
                  %s411 = sphi %s362, %s362
                  %s412 = sphi %s355, %s355
                $region135: #{transformer_forward.11} parent=124 // loop_header_branch
                  %409 = sbr.rel (%p407) target = $region139
                $region136: #{transformer_forward.11} parent=124 // loop_body
                  %v413 = vld [vmem:[%s411] sm:$0xf]
                  %414 = vst [vmem:[%s412] sm:$0xf] %v413
                  %v415 = vld [vmem:[%s411 + $0xc] sm:$0xf]
                  %416 = vst [vmem:[%s412 + $0x4] sm:$0xf] %v415
                  %v417 = vld [vmem:[%s411 + $0x18] sm:$0xf]
                  %418 = vst [vmem:[%s412 + $0x8] sm:$0xf] %v417
                  %v419 = vld [vmem:[%s411 + $0x24] sm:$0xf]
                  %420 = vst [vmem:[%s412 + $0xc] sm:$0xf] %v419
                  %v421 = vld [vmem:[%s411 + $0x30] sm:$0xf]
                  %422 = vst [vmem:[%s412 + $0x10] sm:$0xf] %v421
                  %v423 = vld [vmem:[%s411 + $0x3c] sm:$0xf]
                  %424 = vst [vmem:[%s412 + $0x14] sm:$0xf] %v423
                  %v425 = vld [vmem:[%s411 + $0x48] sm:$0xf]
                  %426 = vst [vmem:[%s412 + $0x18] sm:$0xf] %v425
                  %v427 = vld [vmem:[%s411 + $0x54] sm:$0xf]
                  %428 = vst [vmem:[%s412 + $0x1c] sm:$0xf] %v427
                $region137: #{transformer_forward.11} parent=124 // loop_footer
                  %s410 = sadd.s32 1, %s406
                $region138: #{transformer_forward.11} parent=124 // loop_footer_branch
                  %405 = sbr.rel target = $region134
                $region139: #{transformer_forward.11} parent=124 // loop_exit
                  _
              $region125: #{transformer_forward.11} parent=109 // pred_fallthru
                _
            $region110: #{transformer_forward.11} parent=105 // pred_fallthru
              _
            // Predicated region
            $region111: #{transformer_forward.11} parent=105 // pred_check
              _
            $region112: #{transformer_forward.11} parent=105 // pred_check_branch
              %368 = sbr.rel (0) target = $region114
            $region113: #{transformer_forward.11} parent=105 // pred_region
              loop: start=0, step=1, limit=1
              $region115: #{transformer_forward.11} parent=113 // loop_pre_header
                _
              $region116: #{transformer_forward.11} parent=113 // loop_header
                %s371 = sphi 0, %s375
                %p372 = scmp.ge.s32.totalorder %s371, 1
                %s376 = sphi %s362, %s362
                %s377 = sphi %s355, %s355
              $region117: #{transformer_forward.11} parent=113 // loop_header_branch
                %374 = sbr.rel (%p372) target = $region121
              $region118: #{transformer_forward.11} parent=113 // loop_body
                %v378 = vld [vmem:[%s376] sm:$0xf]
                %379 = vst [vmem:[%s377] sm:$0xf] %v378
                %v380 = vld [vmem:[%s376 + $0xc] sm:$0xf]
                %381 = vst [vmem:[%s377 + $0x4] sm:$0xf] %v380
                %v382 = vld [vmem:[%s376 + $0x18] sm:$0xf]
                %383 = vst [vmem:[%s377 + $0x8] sm:$0xf] %v382
                %v384 = vld [vmem:[%s376 + $0x24] sm:$0xf]
                %385 = vst [vmem:[%s377 + $0xc] sm:$0xf] %v384
                %v386 = vld [vmem:[%s376 + $0x30] sm:$0xf]
                %387 = vst [vmem:[%s377 + $0x10] sm:$0xf] %v386
                %v388 = vld [vmem:[%s376 + $0x3c] sm:$0xf]
                %389 = vst [vmem:[%s377 + $0x14] sm:$0xf] %v388
                %v390 = vld [vmem:[%s376 + $0x48] sm:$0xf]
                %391 = vst [vmem:[%s377 + $0x18] sm:$0xf] %v390
                %v392 = vld [vmem:[%s376 + $0x54] sm:$0xf]
                %393 = vst [vmem:[%s377 + $0x1c] sm:$0xf] %v392
              $region119: #{transformer_forward.11} parent=113 // loop_footer
                %s375 = sadd.s32 1, %s371
              $region120: #{transformer_forward.11} parent=113 // loop_footer_branch
                %370 = sbr.rel target = $region116
              $region121: #{transformer_forward.11} parent=113 // loop_exit
                _
            $region114: #{transformer_forward.11} parent=105 // pred_fallthru
              _
          $region106: #{transformer_forward.11} parent=101 // pred_fallthru
            _
          %429 = vnop
        $region102: #{transformer_forward.11} parent=15 // pred_fallthru
          _
        // Predicated region
        $region140: #{transformer_forward.11} parent=15 // pred_check
          %p430 = pneg %p135
        $region141: #{transformer_forward.11} parent=15 // pred_check_branch
          %432 = sbr.rel (%p430) target = $region143
        $region142: #{transformer_forward.11} parent=15 // pred_region
          %p433 = scmp.lt.s32.totalorder %s17, 1
          %s434 = scalar_select %p433, %s17, 1
          %p435 = scmp.lt.s32.totalorder %s19, 0
          %s436 = scalar_select %p435, %s19, 0
          %s437 = sadd.s32 %s436, %s434
          %s438 = scalar_lea.vmem %s3, %s437
        $region143: #{transformer_forward.11} parent=15 // pred_fallthru
          _
      $region16: #{transformer_forward.11} parent=5 // pred_fallthru
        _
      %p439 = scmp.le.s32.totalorder 1, %s10
      %p440 = scmp.lt.s32.totalorder %s10, 3
      %p441 = pnand %p439, %p440
      %p442 = pneg %p441
      // Predicated region
      $region144: #{transformer_forward.11} parent=5 // pred_check
        _
      $region145: #{transformer_forward.11} parent=5 // pred_check_branch
        %444 = sbr.rel (%p441) target = $region147
      $region146: #{transformer_forward.11} parent=5 // pred_region
        %s445 = ssub.s32 %s10, 1
        %s446 = sand.u32 %s44, 1
        %s447 = sand.u32 %s44, 1
        %s448 = smul.addr %s447, 32
        %s449 = scalar_lea.vmem [#allocation5], %s448
        // Predicated region
        $region148: #{transformer_forward.11} parent=146 // pred_check
          %p450 = pneg %p57
        $region149: #{transformer_forward.11} parent=146 // pred_check_branch
          %452 = sbr.rel (%p450) target = $region151
        $region150: #{transformer_forward.11} parent=146 // pred_region
          _
        $region151: #{transformer_forward.11} parent=146 // pred_fallthru
          _
        %s453 = sand.u32 %s72, 1
        %s454 = sand.u32 %s72, 1
        %s455 = smul.addr %s454, 32
        %s456 = scalar_lea.vmem [#allocation6], %s455
        // Predicated region
        $region152: #{transformer_forward.11} parent=146 // pred_check
          %p457 = pneg %p85
        $region153: #{transformer_forward.11} parent=146 // pred_check_branch
          %459 = sbr.rel (%p457) target = $region155
        $region154: #{transformer_forward.11} parent=146 // pred_region
          _
        $region155: #{transformer_forward.11} parent=146 // pred_fallthru
          _
        %s460 = sand.u32 %s100, 1
        %s461 = sand.u32 %s100, 1
        %s462 = smul.addr %s461, 32
        %s463 = scalar_lea.vmem [#allocation7], %s462
        // Predicated region
        $region156: #{transformer_forward.11} parent=146 // pred_check
          %p464 = pneg %p113
        $region157: #{transformer_forward.11} parent=146 // pred_check_branch
          %466 = sbr.rel (%p464) target = $region159
        $region158: #{transformer_forward.11} parent=146 // pred_region
          _
        $region159: #{transformer_forward.11} parent=146 // pred_fallthru
          _
        %s467 = sand.u32 %s44, 1
        %s468 = sand.u32 %s44, 1
        %s469 = smul.addr %s468, 32
        %s470 = scalar_lea.vmem [#allocation5], %s469
        %p471 = pneg %p57
        %p472 = pneg %p54
        %s473 = sand.u32 %s72, 1
        %s474 = sand.u32 %s72, 1
        %s475 = smul.addr %s474, 32
        %s476 = scalar_lea.vmem [#allocation6], %s475
        %p477 = pneg %p85
        %p478 = pneg %p82
        %s479 = sand.u32 %s100, 1
        %s480 = sand.u32 %s100, 1
        %s481 = smul.addr %s480, 32
        %s482 = scalar_lea.vmem [#allocation7], %s481
        %p483 = pneg %p113
        %p484 = pneg %p110
        %p485 = scmp.lt.s32.totalorder %s20, 1
        %s486 = scalar_select %p485, %s20, 1
        %p487 = scmp.lt.s32.totalorder %s22, 0
        %s488 = scalar_select %p487, %s22, 0
        %s489 = sadd.s32 %s488, %s486
        %s490 = scalar_lea.vmem %s3, %s489
        %p491 = pneg %p141
        %p492 = pneg %p138
        %p493 = pneg %p169
        %p494 = pneg %p166
        %p495 = scmp.lt.s32.totalorder %s20, 1
        %s496 = scalar_select %p495, %s20, 1
        %p497 = scmp.lt.s32.totalorder %s21, 0
        %s498 = scalar_select %p497, %s21, 0
        %s499 = sadd.s32 %s498, %s496
        %s500 = smul.addr %s499, 8
        %s501 = scalar_lea.vmem %s4, %s500
        %s502 = smul.u32 8, %s21
        %s503 = smul.u32 8, %s22
        %s504 = smul.u32 8, %s22
        %p505 = scmp.lt.s32.totalorder %s20, 1
        %s506 = scalar_select %p505, %s20, 1
        %p507 = scmp.lt.s32.totalorder %s22, 0
        %s508 = scalar_select %p507, %s22, 0
        %s509 = sadd.s32 %s508, %s506
        %s510 = scalar_lea.vmem %s3, %s509
        %p511 = scmp.lt.s32.totalorder %s20, 1
        %s512 = scalar_select %p511, %s20, 1
        %p513 = scmp.lt.s32.totalorder %s21, 0
        %s514 = scalar_select %p513, %s21, 0
        %s515 = sadd.s32 %s514, %s512
        %s516 = smul.addr %s515, 8
        %s517 = scalar_lea.vmem %s4, %s516
        %p518 = scmp.eq.s32.totalorder %s22, 0
        // Predicated region
        $region160: #{transformer_forward.11} parent=146 // pred_check
          %p519 = pneg %p518
        $region161: #{transformer_forward.11} parent=146 // pred_check_branch
          %521 = sbr.rel (%p519) target = $region163
        $region162: #{transformer_forward.11} parent=146 // pred_region
          %vm522 = vcmask 7168
          %523 = vst.msk [vmem:[#allocation2] sm:$0xff] %vm522, -inf
          %524 = vst.msk [vmem:[#allocation2 + $0x8] sm:$0xff] %vm522, -inf
          %525 = vst.msk [vmem:[#allocation2 + $0x10] sm:$0xff] %vm522, -inf
          %526 = vst.msk [vmem:[#allocation2 + $0x18] sm:$0xff] %vm522, -inf
          %527 = vst.msk [vmem:[#allocation3] sm:$0xff] %vm522, 0.0
          %528 = vst.msk [vmem:[#allocation3 + $0x8] sm:$0xff] %vm522, 0.0
          %529 = vst.msk [vmem:[#allocation3 + $0x10] sm:$0xff] %vm522, 0.0
          %530 = vst.msk [vmem:[#allocation3 + $0x18] sm:$0xff] %vm522, 0.0
          %vm531 = vcmask 64512
          %532 = vst.msk [vmem:[#allocation4] sm:$0xff] %vm531, 0.0
          %533 = vst.msk [vmem:[#allocation4 + $0x8] sm:$0xff] %vm531, 0.0
          %534 = vst.msk [vmem:[#allocation4 + $0x10] sm:$0xff] %vm531, 0.0
          %535 = vst.msk [vmem:[#allocation4 + $0x18] sm:$0xff] %vm531, 0.0
        $region163: #{transformer_forward.11} parent=146 // pred_fallthru
          _
        %v536 = vld [vmem:[%s510] sm:$0x1]
        %v537 = vld [vmem:[%s449] sm:$0x1]
        %v538 = vld [vmem:[%s449 + $0x4] sm:$0x1]
        %v539 = vld [vmem:[%s449 + $0x8] sm:$0x1]
        %v540 = vld [vmem:[%s449 + $0xc] sm:$0x1]
        %v541 = vld [vmem:[%s449 + $0x10] sm:$0x1]
        %v542 = vld [vmem:[%s449 + $0x14] sm:$0x1]
        %v543 = vld [vmem:[%s449 + $0x18] sm:$0x1]
        %v544 = vld [vmem:[%s449 + $0x1c] sm:$0x1]
        %v545 = vld [vmem:[%s456] sm:$0x1]
        %v546 = vld [vmem:[%s456 + $0x4] sm:$0x1]
        %v547 = vld [vmem:[%s456 + $0x8] sm:$0x1]
        %v548 = vld [vmem:[%s456 + $0xc] sm:$0x1]
        %v549 = vld [vmem:[%s456 + $0x10] sm:$0x1]
        %v550 = vld [vmem:[%s456 + $0x14] sm:$0x1]
        %v551 = vld [vmem:[%s456 + $0x18] sm:$0x1]
        %v552 = vld [vmem:[%s456 + $0x1c] sm:$0x1]
        %v553 = vld [vmem:[%s463] sm:$0x1]
        %v554 = vld [vmem:[%s463 + $0x4] sm:$0x1]
        %v555 = vld [vmem:[%s463 + $0x8] sm:$0x1]
        %v556 = vld [vmem:[%s463 + $0xc] sm:$0x1]
        %v557 = vld [vmem:[%s463 + $0x10] sm:$0x1]
        %v558 = vld [vmem:[%s463 + $0x14] sm:$0x1]
        %v559 = vld [vmem:[%s463 + $0x18] sm:$0x1]
        %v560 = vld [vmem:[%s463 + $0x1c] sm:$0x1]
        %v569 = vrot.slane %v538, 7
        %vm570 = vcmask 1041409
        %v571 = vsel %vm570, %v569, %v537
        %v572 = vrot.slane %v539, 6
        %vm573 = vcmask 1042434
        %v574 = vsel %vm573, %v572, %v571
        %v575 = vrot.slane %v540, 5
        %vm576 = vcmask 1043459
        %v577 = vsel %vm576, %v575, %v574
        %v578 = vrot.slane %v541, 4
        %vm579 = vcmask 1044484
        %v580 = vsel %vm579, %v578, %v577
        %v581 = vrot.slane %v542, 3
        %vm582 = vcmask 1045509
        %v583 = vsel %vm582, %v581, %v580
        %v584 = vrot.slane %v543, 2
        %vm585 = vcmask 1046534
        %v586 = vsel %vm585, %v584, %v583
        %v587 = vrot.slane %v544, 1
        %vm588 = vcmask 1047559
        %v589 = vsel %vm588, %v587, %v586
        %v598 = vrot.slane %v546, 7
        %v599 = vsel %vm570, %v598, %v545
        %v600 = vrot.slane %v547, 6
        %v601 = vsel %vm573, %v600, %v599
        %v602 = vrot.slane %v548, 5
        %v603 = vsel %vm576, %v602, %v601
        %v604 = vrot.slane %v549, 4
        %v605 = vsel %vm579, %v604, %v603
        %v606 = vrot.slane %v550, 3
        %v607 = vsel %vm582, %v606, %v605
        %v608 = vrot.slane %v551, 2
        %v609 = vsel %vm585, %v608, %v607
        %v610 = vrot.slane %v552, 1
        %v611 = vsel %vm588, %v610, %v609
        %vm612 = vcmask 64512
        %v613 = vsel %vm612, %v589, 0
        %v615 = vsel %vm612, %v611, 0
        %617 = vmatprep.subr.mxu0 0.0
        %618 = vmatpush1.xpose.msra.mxu0 %v615
        %619 = vmatprep.subr.mxu0 0.0
        %620 = vmatpush1.xpose.msra.mxu0 0.0
        %621 = vmatprep.subr.mxu0 0.0
        %622 = vmatpush1.xpose.msra.mxu0 0.0
        %623 = vmatprep.subr.mxu0 0.0
        %624 = vmatpush1.xpose.msra.mxu0 0.0
        %625 = vmatprep.subr.mxu0 0.0
        %626 = vmatpush1.xpose.msra.mxu0 0.0
        %627 = vmatprep.subr.mxu0 0.0
        %628 = vmatpush1.xpose.msra.mxu0 0.0
        %629 = vmatprep.subr.mxu0 0.0
        %630 = vmatpush1.xpose.msra.mxu0 0.0
        %631 = vmatprep.subr.mxu0 0.0
        %632 = vmatpush1.xpose.msra.mxu0 0.0
        %633 = vmatprep.subr.mxu0 0.0
        %634 = vmatpush1.xpose.msra.mxu0 0.0
        %635 = vmatprep.subr.mxu0 0.0
        %636 = vmatpush1.xpose.msra.mxu0 0.0
        %637 = vmatprep.subr.mxu0 0.0
        %638 = vmatpush1.xpose.msra.mxu0 0.0
        %639 = vmatprep.subr.mxu0 0.0
        %640 = vmatpush1.xpose.msra.mxu0 0.0
        %641 = vmatprep.subr.mxu0 0.0
        %642 = vmatpush1.xpose.msra.mxu0 0.0
        %643 = vmatprep.subr.mxu0 0.0
        %644 = vmatpush1.xpose.msra.mxu0 0.0
        %645 = vmatprep.subr.mxu0 0.0
        %646 = vmatpush1.xpose.msra.mxu0 0.0
        %647 = vmatprep.subr.mxu0 0.0
        %648 = vmatpush1.xpose.msra.mxu0 0.0
        %649 = vmatprep.subr.mxu0 0.0
        %650 = vmatpush1.xpose.msra.mxu0 0.0
        %651 = vmatprep.subr.mxu0 0.0
        %652 = vmatpush1.xpose.msra.mxu0 0.0
        %653 = vmatprep.subr.mxu0 0.0
        %654 = vmatpush1.xpose.msra.mxu0 0.0
        %655 = vmatprep.subr.mxu0 0.0
        %656 = vmatpush1.xpose.msra.mxu0 0.0
        %657 = vmatprep.subr.mxu0 0.0
        %658 = vmatpush1.xpose.msra.mxu0 0.0
        %659 = vmatprep.subr.mxu0 0.0
        %660 = vmatpush1.xpose.msra.mxu0 0.0
        %661 = vmatprep.subr.mxu0 0.0
        %662 = vmatpush1.xpose.msra.mxu0 0.0
        %663 = vmatprep.subr.mxu0 0.0
        %664 = vmatpush1.xpose.msra.mxu0 0.0
        %665 = vmatprep.subr.mxu0 0.0
        %666 = vmatpush1.xpose.msra.mxu0 0.0
        %667 = vmatprep.subr.mxu0 0.0
        %668 = vmatpush1.xpose.msra.mxu0 0.0
        %669 = vmatprep.subr.mxu0 0.0
        %670 = vmatpush1.xpose.msra.mxu0 0.0
        %671 = vmatprep.subr.mxu0 0.0
        %672 = vmatpush1.xpose.msra.mxu0 0.0
        %673 = vmatprep.subr.mxu0 0.0
        %674 = vmatpush1.xpose.msra.mxu0 0.0
        %675 = vmatprep.subr.mxu0 0.0
        %676 = vmatpush1.xpose.msra.mxu0 0.0
        %677 = vmatprep.subr.mxu0 0.0
        %678 = vmatpush1.xpose.msra.mxu0 0.0
        %679 = vmatprep.subr.mxu0 0.0
        %680 = vmatpush1.xpose.msra.mxu0 0.0
        %681 = vmatprep.mubr.f32.mxu0 0.0
        %682 = vmatmul.mubr.f32.gmra.mrb[0].mxu0 %v613
        %v683 = vpop.f32.mrb[0].mxu0
        %v684 = vadd.f32 0.0, %v683
        %v685 = vpop.f32.mrb[0].mxu0
        %686 = vdwg.mxu0
        %v687 = vmul.f32 %v684, 0.35355338
        %v689 = vlaneseq
        %v690 = vshrl.u32 %v689, 7
        %v691 = vsub.s32 0, %v690
        %v692 = vrot.slane %v536, %v691
        %v694 = vadd.f32 %v687, %v692
        %v695 = vld [vmem:[#allocation2] sm:$0xff]
        %v696 = vsel %vm612, %v694, -inf
        %697 = vmax.xlane.f32.xlu0 %v696
        %v698 = vpop.xlane.xlu0 %697
        %v699 = vmax.f32 %v695, %v698
        %v700 = vsub.f32 %v695, %v699
        %v701 = vmul.f32 %v700, 1.442695
        %v702 = vpow.pop %v701
        %704 = vset.pattern.permute.xlu0 0
        %705 = vperm.xlu0 %704, %v699
        %v706 = vpop.permute.xlu0 %705
        %v708 = vsub.f32 %v694, %v706
        %v709 = vmul.f32 %v708, 1.442695
        %v710 = vpow.pop %v709
        %v711 = vld [vmem:[#allocation3] sm:$0xff]
        %v712 = vmul.f32 %v702, %v711
        %v713 = vsel %vm612, %v710, 0.0
        %714 = vadd.xlane.f32.xlu0 %v713
        %v715 = vpop.xlane.xlu0 %714
        %v716 = vadd.f32 %v712, %v715
        %vm717 = vcmask 7168
        %718 = vst.msk [vmem:[#allocation3] sm:$0xff] %vm717, %v716
        %v719 = vld [vmem:[#allocation4] sm:$0xff]
        %721 = vset.pattern.permute.xlu0 0
        %722 = vperm.xlu0 %721, %v702
        %v723 = vpop.permute.xlu0 %722
        %v725 = vmul.f32 %v723, %v719
        %v734 = vrot.slane %v554, 7
        %v735 = vsel %vm570, %v734, %v553
        %v736 = vrot.slane %v555, 6
        %v737 = vsel %vm573, %v736, %v735
        %v738 = vrot.slane %v556, 5
        %v739 = vsel %vm576, %v738, %v737
        %v740 = vrot.slane %v557, 4
        %v741 = vsel %vm579, %v740, %v739
        %v742 = vrot.slane %v558, 3
        %v743 = vsel %vm582, %v742, %v741
        %v744 = vrot.slane %v559, 2
        %v745 = vsel %vm585, %v744, %v743
        %v746 = vrot.slane %v560, 1
        %v747 = vsel %vm588, %v746, %v745
        %v750 = vsel %vm612, %v710, 0
        %752 = vmatprep.subr.mxu0 0.0
        %753 = vmatpush1.msra.mxu0 %v747
        %754 = vmatprep.subr.mxu0 0.0
        %755 = vmatpush1.msra.mxu0 0.0
        %756 = vmatprep.subr.mxu0 0.0
        %757 = vmatpush1.msra.mxu0 0.0
        %758 = vmatprep.subr.mxu0 0.0
        %759 = vmatpush1.msra.mxu0 0.0
        %760 = vmatprep.subr.mxu0 0.0
        %761 = vmatpush1.msra.mxu0 0.0
        %762 = vmatprep.subr.mxu0 0.0
        %763 = vmatpush1.msra.mxu0 0.0
        %764 = vmatprep.subr.mxu0 0.0
        %765 = vmatpush1.msra.mxu0 0.0
        %766 = vmatprep.subr.mxu0 0.0
        %767 = vmatpush1.msra.mxu0 0.0
        %768 = vmatprep.subr.mxu0 0.0
        %769 = vmatpush1.msra.mxu0 0.0
        %770 = vmatprep.subr.mxu0 0.0
        %771 = vmatpush1.msra.mxu0 0.0
        %772 = vmatprep.subr.mxu0 0.0
        %773 = vmatpush1.msra.mxu0 0.0
        %774 = vmatprep.subr.mxu0 0.0
        %775 = vmatpush1.msra.mxu0 0.0
        %776 = vmatprep.subr.mxu0 0.0
        %777 = vmatpush1.msra.mxu0 0.0
        %778 = vmatprep.subr.mxu0 0.0
        %779 = vmatpush1.msra.mxu0 0.0
        %780 = vmatprep.subr.mxu0 0.0
        %781 = vmatpush1.msra.mxu0 0.0
        %782 = vmatprep.subr.mxu0 0.0
        %783 = vmatpush1.msra.mxu0 0.0
        %784 = vmatprep.subr.mxu0 0.0
        %785 = vmatpush1.msra.mxu0 0.0
        %786 = vmatprep.subr.mxu0 0.0
        %787 = vmatpush1.msra.mxu0 0.0
        %788 = vmatprep.subr.mxu0 0.0
        %789 = vmatpush1.msra.mxu0 0.0
        %790 = vmatprep.subr.mxu0 0.0
        %791 = vmatpush1.msra.mxu0 0.0
        %792 = vmatprep.subr.mxu0 0.0
        %793 = vmatpush1.msra.mxu0 0.0
        %794 = vmatprep.subr.mxu0 0.0
        %795 = vmatpush1.msra.mxu0 0.0
        %796 = vmatprep.subr.mxu0 0.0
        %797 = vmatpush1.msra.mxu0 0.0
        %798 = vmatprep.subr.mxu0 0.0
        %799 = vmatpush1.msra.mxu0 0.0
        %800 = vmatprep.subr.mxu0 0.0
        %801 = vmatpush1.msra.mxu0 0.0
        %802 = vmatprep.subr.mxu0 0.0
        %803 = vmatpush1.msra.mxu0 0.0
        %804 = vmatprep.subr.mxu0 0.0
        %805 = vmatpush1.msra.mxu0 0.0
        %806 = vmatprep.subr.mxu0 0.0
        %807 = vmatpush1.msra.mxu0 0.0
        %808 = vmatprep.subr.mxu0 0.0
        %809 = vmatpush1.msra.mxu0 0.0
        %810 = vmatprep.subr.mxu0 0.0
        %811 = vmatpush1.msra.mxu0 0.0
        %812 = vmatprep.subr.mxu0 0.0
        %813 = vmatpush1.msra.mxu0 0.0
        %814 = vmatprep.subr.mxu0 0.0
        %815 = vmatpush1.msra.mxu0 0.0
        %816 = vmatprep.mubr.f32.mxu0 0.0
        %817 = vmatmul.mubr.f32.gmra.mrb[0].mxu0 %v750
        %v818 = vpop.f32.mrb[0].mxu0
        %v819 = vadd.f32 0.0, %v818
        %v820 = vpop.f32.mrb[0].mxu0
        %821 = vdwg.mxu0
        %v822 = vadd.f32 %v725, %v819
        %823 = vst.msk [vmem:[#allocation4] sm:$0xff] %vm612, %v822
        %824 = vst.msk [vmem:[#allocation2] sm:$0xff] %vm717, %v699
        %v825 = vld [vmem:[%s449 + $0x1] sm:$0x1]
        %v826 = vld [vmem:[%s449 + $0x5] sm:$0x1]
        %v827 = vld [vmem:[%s449 + $0x9] sm:$0x1]
        %v828 = vld [vmem:[%s449 + $0xd] sm:$0x1]
        %v829 = vld [vmem:[%s449 + $0x11] sm:$0x1]
        %v830 = vld [vmem:[%s449 + $0x15] sm:$0x1]
        %v831 = vld [vmem:[%s449 + $0x19] sm:$0x1]
        %v832 = vld [vmem:[%s449 + $0x1d] sm:$0x1]
        %v833 = vld [vmem:[%s456 + $0x1] sm:$0x1]
        %v834 = vld [vmem:[%s456 + $0x5] sm:$0x1]
        %v835 = vld [vmem:[%s456 + $0x9] sm:$0x1]
        %v836 = vld [vmem:[%s456 + $0xd] sm:$0x1]
        %v837 = vld [vmem:[%s456 + $0x11] sm:$0x1]
        %v838 = vld [vmem:[%s456 + $0x15] sm:$0x1]
        %v839 = vld [vmem:[%s456 + $0x19] sm:$0x1]
        %v840 = vld [vmem:[%s456 + $0x1d] sm:$0x1]
        %v841 = vld [vmem:[%s463 + $0x1] sm:$0x1]
        %v842 = vld [vmem:[%s463 + $0x5] sm:$0x1]
        %v843 = vld [vmem:[%s463 + $0x9] sm:$0x1]
        %v844 = vld [vmem:[%s463 + $0xd] sm:$0x1]
        %v845 = vld [vmem:[%s463 + $0x11] sm:$0x1]
        %v846 = vld [vmem:[%s463 + $0x15] sm:$0x1]
        %v847 = vld [vmem:[%s463 + $0x19] sm:$0x1]
        %v848 = vld [vmem:[%s463 + $0x1d] sm:$0x1]
        %v857 = vrot.slane %v826, 7
        %v858 = vsel %vm570, %v857, %v825
        %v859 = vrot.slane %v827, 6
        %v860 = vsel %vm573, %v859, %v858
        %v861 = vrot.slane %v828, 5
        %v862 = vsel %vm576, %v861, %v860
        %v863 = vrot.slane %v829, 4
        %v864 = vsel %vm579, %v863, %v862
        %v865 = vrot.slane %v830, 3
        %v866 = vsel %vm582, %v865, %v864
        %v867 = vrot.slane %v831, 2
        %v868 = vsel %vm585, %v867, %v866
        %v869 = vrot.slane %v832, 1
        %v870 = vsel %vm588, %v869, %v868
        %v879 = vrot.slane %v834, 7
        %v880 = vsel %vm570, %v879, %v833
        %v881 = vrot.slane %v835, 6
        %v882 = vsel %vm573, %v881, %v880
        %v883 = vrot.slane %v836, 5
        %v884 = vsel %vm576, %v883, %v882
        %v885 = vrot.slane %v837, 4
        %v886 = vsel %vm579, %v885, %v884
        %v887 = vrot.slane %v838, 3
        %v888 = vsel %vm582, %v887, %v886
        %v889 = vrot.slane %v839, 2
        %v890 = vsel %vm585, %v889, %v888
        %v891 = vrot.slane %v840, 1
        %v892 = vsel %vm588, %v891, %v890
        %v893 = vsel %vm612, %v870, 0
        %v895 = vsel %vm612, %v892, 0
        %897 = vmatprep.subr.mxu0 0.0
        %898 = vmatpush1.xpose.msra.mxu0 %v895
        %899 = vmatprep.subr.mxu0 0.0
        %900 = vmatpush1.xpose.msra.mxu0 0.0
        %901 = vmatprep.subr.mxu0 0.0
        %902 = vmatpush1.xpose.msra.mxu0 0.0
        %903 = vmatprep.subr.mxu0 0.0
        %904 = vmatpush1.xpose.msra.mxu0 0.0
        %905 = vmatprep.subr.mxu0 0.0
        %906 = vmatpush1.xpose.msra.mxu0 0.0
        %907 = vmatprep.subr.mxu0 0.0
        %908 = vmatpush1.xpose.msra.mxu0 0.0
        %909 = vmatprep.subr.mxu0 0.0
        %910 = vmatpush1.xpose.msra.mxu0 0.0
        %911 = vmatprep.subr.mxu0 0.0
        %912 = vmatpush1.xpose.msra.mxu0 0.0
        %913 = vmatprep.subr.mxu0 0.0
        %914 = vmatpush1.xpose.msra.mxu0 0.0
        %915 = vmatprep.subr.mxu0 0.0
        %916 = vmatpush1.xpose.msra.mxu0 0.0
        %917 = vmatprep.subr.mxu0 0.0
        %918 = vmatpush1.xpose.msra.mxu0 0.0
        %919 = vmatprep.subr.mxu0 0.0
        %920 = vmatpush1.xpose.msra.mxu0 0.0
        %921 = vmatprep.subr.mxu0 0.0
        %922 = vmatpush1.xpose.msra.mxu0 0.0
        %923 = vmatprep.subr.mxu0 0.0
        %924 = vmatpush1.xpose.msra.mxu0 0.0
        %925 = vmatprep.subr.mxu0 0.0
        %926 = vmatpush1.xpose.msra.mxu0 0.0
        %927 = vmatprep.subr.mxu0 0.0
        %928 = vmatpush1.xpose.msra.mxu0 0.0
        %929 = vmatprep.subr.mxu0 0.0
        %930 = vmatpush1.xpose.msra.mxu0 0.0
        %931 = vmatprep.subr.mxu0 0.0
        %932 = vmatpush1.xpose.msra.mxu0 0.0
        %933 = vmatprep.subr.mxu0 0.0
        %934 = vmatpush1.xpose.msra.mxu0 0.0
        %935 = vmatprep.subr.mxu0 0.0
        %936 = vmatpush1.xpose.msra.mxu0 0.0
        %937 = vmatprep.subr.mxu0 0.0
        %938 = vmatpush1.xpose.msra.mxu0 0.0
        %939 = vmatprep.subr.mxu0 0.0
        %940 = vmatpush1.xpose.msra.mxu0 0.0
        %941 = vmatprep.subr.mxu0 0.0
        %942 = vmatpush1.xpose.msra.mxu0 0.0
        %943 = vmatprep.subr.mxu0 0.0
        %944 = vmatpush1.xpose.msra.mxu0 0.0
        %945 = vmatprep.subr.mxu0 0.0
        %946 = vmatpush1.xpose.msra.mxu0 0.0
        %947 = vmatprep.subr.mxu0 0.0
        %948 = vmatpush1.xpose.msra.mxu0 0.0
        %949 = vmatprep.subr.mxu0 0.0
        %950 = vmatpush1.xpose.msra.mxu0 0.0
        %951 = vmatprep.subr.mxu0 0.0
        %952 = vmatpush1.xpose.msra.mxu0 0.0
        %953 = vmatprep.subr.mxu0 0.0
        %954 = vmatpush1.xpose.msra.mxu0 0.0
        %955 = vmatprep.subr.mxu0 0.0
        %956 = vmatpush1.xpose.msra.mxu0 0.0
        %957 = vmatprep.subr.mxu0 0.0
        %958 = vmatpush1.xpose.msra.mxu0 0.0
        %959 = vmatprep.subr.mxu0 0.0
        %960 = vmatpush1.xpose.msra.mxu0 0.0
        %961 = vmatprep.mubr.f32.mxu0 0.0
        %962 = vmatmul.mubr.f32.gmra.mrb[0].mxu0 %v893
        %v963 = vpop.f32.mrb[0].mxu0
        %v964 = vadd.f32 0.0, %v963
        %v965 = vpop.f32.mrb[0].mxu0
        %966 = vdwg.mxu0
        %v967 = vmul.f32 %v964, 0.35355338
        %v968 = vadd.f32 %v967, %v692
        %s969 = scalar_lea.vmem [#allocation2], 8
        %v970 = vld [vmem:[%s969] sm:$0xff]
        %v971 = vsel %vm612, %v968, -inf
        %972 = vmax.xlane.f32.xlu0 %v971
        %v973 = vpop.xlane.xlu0 %972
        %v974 = vmax.f32 %v970, %v973
        %v975 = vsub.f32 %v970, %v974
        %v976 = vmul.f32 %v975, 1.442695
        %v977 = vpow.pop %v976
        %979 = vset.pattern.permute.xlu0 0
        %980 = vperm.xlu0 %979, %v974
        %v981 = vpop.permute.xlu0 %980
        %v983 = vsub.f32 %v968, %v981
        %v984 = vmul.f32 %v983, 1.442695
        %v985 = vpow.pop %v984
        %s986 = scalar_lea.vmem [#allocation3], 8
        %v987 = vld [vmem:[%s986] sm:$0xff]
        %v988 = vmul.f32 %v977, %v987
        %v989 = vsel %vm612, %v985, 0.0
        %990 = vadd.xlane.f32.xlu0 %v989
        %v991 = vpop.xlane.xlu0 %990
        %v992 = vadd.f32 %v988, %v991
        %993 = vst.msk [vmem:[%s986] sm:$0xff] %vm717, %v992
        %s994 = scalar_lea.vmem [#allocation4], 8
        %v995 = vld [vmem:[%s994] sm:$0xff]
        %997 = vset.pattern.permute.xlu0 0
        %998 = vperm.xlu0 %997, %v977
        %v999 = vpop.permute.xlu0 %998
        %v1001 = vmul.f32 %v999, %v995
        %v1010 = vrot.slane %v842, 7
        %v1011 = vsel %vm570, %v1010, %v841
        %v1012 = vrot.slane %v843, 6
        %v1013 = vsel %vm573, %v1012, %v1011
        %v1014 = vrot.slane %v844, 5
        %v1015 = vsel %vm576, %v1014, %v1013
        %v1016 = vrot.slane %v845, 4
        %v1017 = vsel %vm579, %v1016, %v1015
        %v1018 = vrot.slane %v846, 3
        %v1019 = vsel %vm582, %v1018, %v1017
        %v1020 = vrot.slane %v847, 2
        %v1021 = vsel %vm585, %v1020, %v1019
        %v1022 = vrot.slane %v848, 1
        %v1023 = vsel %vm588, %v1022, %v1021
        %v1026 = vsel %vm612, %v985, 0
        %1028 = vmatprep.subr.mxu0 0.0
        %1029 = vmatpush1.msra.mxu0 %v1023
        %1030 = vmatprep.subr.mxu0 0.0
        %1031 = vmatpush1.msra.mxu0 0.0
        %1032 = vmatprep.subr.mxu0 0.0
        %1033 = vmatpush1.msra.mxu0 0.0
        %1034 = vmatprep.subr.mxu0 0.0
        %1035 = vmatpush1.msra.mxu0 0.0
        %1036 = vmatprep.subr.mxu0 0.0
        %1037 = vmatpush1.msra.mxu0 0.0
        %1038 = vmatprep.subr.mxu0 0.0
        %1039 = vmatpush1.msra.mxu0 0.0
        %1040 = vmatprep.subr.mxu0 0.0
        %1041 = vmatpush1.msra.mxu0 0.0
        %1042 = vmatprep.subr.mxu0 0.0
        %1043 = vmatpush1.msra.mxu0 0.0
        %1044 = vmatprep.subr.mxu0 0.0
        %1045 = vmatpush1.msra.mxu0 0.0
        %1046 = vmatprep.subr.mxu0 0.0
        %1047 = vmatpush1.msra.mxu0 0.0
        %1048 = vmatprep.subr.mxu0 0.0
        %1049 = vmatpush1.msra.mxu0 0.0
        %1050 = vmatprep.subr.mxu0 0.0
        %1051 = vmatpush1.msra.mxu0 0.0
        %1052 = vmatprep.subr.mxu0 0.0
        %1053 = vmatpush1.msra.mxu0 0.0
        %1054 = vmatprep.subr.mxu0 0.0
        %1055 = vmatpush1.msra.mxu0 0.0
        %1056 = vmatprep.subr.mxu0 0.0
        %1057 = vmatpush1.msra.mxu0 0.0
        %1058 = vmatprep.subr.mxu0 0.0
        %1059 = vmatpush1.msra.mxu0 0.0
        %1060 = vmatprep.subr.mxu0 0.0
        %1061 = vmatpush1.msra.mxu0 0.0
        %1062 = vmatprep.subr.mxu0 0.0
        %1063 = vmatpush1.msra.mxu0 0.0
        %1064 = vmatprep.subr.mxu0 0.0
        %1065 = vmatpush1.msra.mxu0 0.0
        %1066 = vmatprep.subr.mxu0 0.0
        %1067 = vmatpush1.msra.mxu0 0.0
        %1068 = vmatprep.subr.mxu0 0.0
        %1069 = vmatpush1.msra.mxu0 0.0
        %1070 = vmatprep.subr.mxu0 0.0
        %1071 = vmatpush1.msra.mxu0 0.0
        %1072 = vmatprep.subr.mxu0 0.0
        %1073 = vmatpush1.msra.mxu0 0.0
        %1074 = vmatprep.subr.mxu0 0.0
        %1075 = vmatpush1.msra.mxu0 0.0
        %1076 = vmatprep.subr.mxu0 0.0
        %1077 = vmatpush1.msra.mxu0 0.0
        %1078 = vmatprep.subr.mxu0 0.0
        %1079 = vmatpush1.msra.mxu0 0.0
        %1080 = vmatprep.subr.mxu0 0.0
        %1081 = vmatpush1.msra.mxu0 0.0
        %1082 = vmatprep.subr.mxu0 0.0
        %1083 = vmatpush1.msra.mxu0 0.0
        %1084 = vmatprep.subr.mxu0 0.0
        %1085 = vmatpush1.msra.mxu0 0.0
        %1086 = vmatprep.subr.mxu0 0.0
        %1087 = vmatpush1.msra.mxu0 0.0
        %1088 = vmatprep.subr.mxu0 0.0
        %1089 = vmatpush1.msra.mxu0 0.0
        %1090 = vmatprep.subr.mxu0 0.0
        %1091 = vmatpush1.msra.mxu0 0.0
        %1092 = vmatprep.mubr.f32.mxu0 0.0
        %1093 = vmatmul.mubr.f32.gmra.mrb[0].mxu0 %v1026
        %v1094 = vpop.f32.mrb[0].mxu0
        %v1095 = vadd.f32 0.0, %v1094
        %v1096 = vpop.f32.mrb[0].mxu0
        %1097 = vdwg.mxu0
        %v1098 = vadd.f32 %v1001, %v1095
        %1099 = vst.msk [vmem:[%s994] sm:$0xff] %vm612, %v1098
        %1100 = vst.msk [vmem:[%s969] sm:$0xff] %vm717, %v974
        %v1101 = vld [vmem:[%s449 + $0x2] sm:$0x1]
        %v1102 = vld [vmem:[%s449 + $0x6] sm:$0x1]
        %v1103 = vld [vmem:[%s449 + $0xa] sm:$0x1]
        %v1104 = vld [vmem:[%s449 + $0xe] sm:$0x1]
        %v1105 = vld [vmem:[%s449 + $0x12] sm:$0x1]
        %v1106 = vld [vmem:[%s449 + $0x16] sm:$0x1]
        %v1107 = vld [vmem:[%s449 + $0x1a] sm:$0x1]
        %v1108 = vld [vmem:[%s449 + $0x1e] sm:$0x1]
        %v1109 = vld [vmem:[%s456 + $0x2] sm:$0x1]
        %v1110 = vld [vmem:[%s456 + $0x6] sm:$0x1]
        %v1111 = vld [vmem:[%s456 + $0xa] sm:$0x1]
        %v1112 = vld [vmem:[%s456 + $0xe] sm:$0x1]
        %v1113 = vld [vmem:[%s456 + $0x12] sm:$0x1]
        %v1114 = vld [vmem:[%s456 + $0x16] sm:$0x1]
        %v1115 = vld [vmem:[%s456 + $0x1a] sm:$0x1]
        %v1116 = vld [vmem:[%s456 + $0x1e] sm:$0x1]
        %v1117 = vld [vmem:[%s463 + $0x2] sm:$0x1]
        %v1118 = vld [vmem:[%s463 + $0x6] sm:$0x1]
        %v1119 = vld [vmem:[%s463 + $0xa] sm:$0x1]
        %v1120 = vld [vmem:[%s463 + $0xe] sm:$0x1]
        %v1121 = vld [vmem:[%s463 + $0x12] sm:$0x1]
        %v1122 = vld [vmem:[%s463 + $0x16] sm:$0x1]
        %v1123 = vld [vmem:[%s463 + $0x1a] sm:$0x1]
        %v1124 = vld [vmem:[%s463 + $0x1e] sm:$0x1]
        %v1133 = vrot.slane %v1102, 7
        %v1134 = vsel %vm570, %v1133, %v1101
        %v1135 = vrot.slane %v1103, 6
        %v1136 = vsel %vm573, %v1135, %v1134
        %v1137 = vrot.slane %v1104, 5
        %v1138 = vsel %vm576, %v1137, %v1136
        %v1139 = vrot.slane %v1105, 4
        %v1140 = vsel %vm579, %v1139, %v1138
        %v1141 = vrot.slane %v1106, 3
        %v1142 = vsel %vm582, %v1141, %v1140
        %v1143 = vrot.slane %v1107, 2
        %v1144 = vsel %vm585, %v1143, %v1142
        %v1145 = vrot.slane %v1108, 1
        %v1146 = vsel %vm588, %v1145, %v1144
        %v1155 = vrot.slane %v1110, 7
        %v1156 = vsel %vm570, %v1155, %v1109
        %v1157 = vrot.slane %v1111, 6
        %v1158 = vsel %vm573, %v1157, %v1156
        %v1159 = vrot.slane %v1112, 5
        %v1160 = vsel %vm576, %v1159, %v1158
        %v1161 = vrot.slane %v1113, 4
        %v1162 = vsel %vm579, %v1161, %v1160
        %v1163 = vrot.slane %v1114, 3
        %v1164 = vsel %vm582, %v1163, %v1162
        %v1165 = vrot.slane %v1115, 2
        %v1166 = vsel %vm585, %v1165, %v1164
        %v1167 = vrot.slane %v1116, 1
        %v1168 = vsel %vm588, %v1167, %v1166
        %v1169 = vsel %vm612, %v1146, 0
        %v1171 = vsel %vm612, %v1168, 0
        %1173 = vmatprep.subr.mxu0 0.0
        %1174 = vmatpush1.xpose.msra.mxu0 %v1171
        %1175 = vmatprep.subr.mxu0 0.0
        %1176 = vmatpush1.xpose.msra.mxu0 0.0
        %1177 = vmatprep.subr.mxu0 0.0
        %1178 = vmatpush1.xpose.msra.mxu0 0.0
        %1179 = vmatprep.subr.mxu0 0.0
        %1180 = vmatpush1.xpose.msra.mxu0 0.0
        %1181 = vmatprep.subr.mxu0 0.0
        %1182 = vmatpush1.xpose.msra.mxu0 0.0
        %1183 = vmatprep.subr.mxu0 0.0
        %1184 = vmatpush1.xpose.msra.mxu0 0.0
        %1185 = vmatprep.subr.mxu0 0.0
        %1186 = vmatpush1.xpose.msra.mxu0 0.0
        %1187 = vmatprep.subr.mxu0 0.0
        %1188 = vmatpush1.xpose.msra.mxu0 0.0
        %1189 = vmatprep.subr.mxu0 0.0
        %1190 = vmatpush1.xpose.msra.mxu0 0.0
        %1191 = vmatprep.subr.mxu0 0.0
        %1192 = vmatpush1.xpose.msra.mxu0 0.0
        %1193 = vmatprep.subr.mxu0 0.0
        %1194 = vmatpush1.xpose.msra.mxu0 0.0
        %1195 = vmatprep.subr.mxu0 0.0
        %1196 = vmatpush1.xpose.msra.mxu0 0.0
        %1197 = vmatprep.subr.mxu0 0.0
        %1198 = vmatpush1.xpose.msra.mxu0 0.0
        %1199 = vmatprep.subr.mxu0 0.0
        %1200 = vmatpush1.xpose.msra.mxu0 0.0
        %1201 = vmatprep.subr.mxu0 0.0
        %1202 = vmatpush1.xpose.msra.mxu0 0.0
        %1203 = vmatprep.subr.mxu0 0.0
        %1204 = vmatpush1.xpose.msra.mxu0 0.0
        %1205 = vmatprep.subr.mxu0 0.0
        %1206 = vmatpush1.xpose.msra.mxu0 0.0
        %1207 = vmatprep.subr.mxu0 0.0
        %1208 = vmatpush1.xpose.msra.mxu0 0.0
        %1209 = vmatprep.subr.mxu0 0.0
        %1210 = vmatpush1.xpose.msra.mxu0 0.0
        %1211 = vmatprep.subr.mxu0 0.0
        %1212 = vmatpush1.xpose.msra.mxu0 0.0
        %1213 = vmatprep.subr.mxu0 0.0
        %1214 = vmatpush1.xpose.msra.mxu0 0.0
        %1215 = vmatprep.subr.mxu0 0.0
        %1216 = vmatpush1.xpose.msra.mxu0 0.0
        %1217 = vmatprep.subr.mxu0 0.0
        %1218 = vmatpush1.xpose.msra.mxu0 0.0
        %1219 = vmatprep.subr.mxu0 0.0
        %1220 = vmatpush1.xpose.msra.mxu0 0.0
        %1221 = vmatprep.subr.mxu0 0.0
        %1222 = vmatpush1.xpose.msra.mxu0 0.0
        %1223 = vmatprep.subr.mxu0 0.0
        %1224 = vmatpush1.xpose.msra.mxu0 0.0
        %1225 = vmatprep.subr.mxu0 0.0
        %1226 = vmatpush1.xpose.msra.mxu0 0.0
        %1227 = vmatprep.subr.mxu0 0.0
        %1228 = vmatpush1.xpose.msra.mxu0 0.0
        %1229 = vmatprep.subr.mxu0 0.0
        %1230 = vmatpush1.xpose.msra.mxu0 0.0
        %1231 = vmatprep.subr.mxu0 0.0
        %1232 = vmatpush1.xpose.msra.mxu0 0.0
        %1233 = vmatprep.subr.mxu0 0.0
        %1234 = vmatpush1.xpose.msra.mxu0 0.0
        %1235 = vmatprep.subr.mxu0 0.0
        %1236 = vmatpush1.xpose.msra.mxu0 0.0
        %1237 = vmatprep.mubr.f32.mxu0 0.0
        %1238 = vmatmul.mubr.f32.gmra.mrb[0].mxu0 %v1169
        %v1239 = vpop.f32.mrb[0].mxu0
        %v1240 = vadd.f32 0.0, %v1239
        %v1241 = vpop.f32.mrb[0].mxu0
        %1242 = vdwg.mxu0
        %v1243 = vmul.f32 %v1240, 0.35355338
        %v1244 = vadd.f32 %v1243, %v692
        %s1245 = scalar_lea.vmem [#allocation2], 16
        %v1246 = vld [vmem:[%s1245] sm:$0xff]
        %v1247 = vsel %vm612, %v1244, -inf
        %1248 = vmax.xlane.f32.xlu0 %v1247
        %v1249 = vpop.xlane.xlu0 %1248
        %v1250 = vmax.f32 %v1246, %v1249
        %v1251 = vsub.f32 %v1246, %v1250
        %v1252 = vmul.f32 %v1251, 1.442695
        %v1253 = vpow.pop %v1252
        %1255 = vset.pattern.permute.xlu0 0
        %1256 = vperm.xlu0 %1255, %v1250
        %v1257 = vpop.permute.xlu0 %1256
        %v1259 = vsub.f32 %v1244, %v1257
        %v1260 = vmul.f32 %v1259, 1.442695
        %v1261 = vpow.pop %v1260
        %s1262 = scalar_lea.vmem [#allocation3], 16
        %v1263 = vld [vmem:[%s1262] sm:$0xff]
        %v1264 = vmul.f32 %v1253, %v1263
        %v1265 = vsel %vm612, %v1261, 0.0
        %1266 = vadd.xlane.f32.xlu0 %v1265
        %v1267 = vpop.xlane.xlu0 %1266
        %v1268 = vadd.f32 %v1264, %v1267
        %1269 = vst.msk [vmem:[%s1262] sm:$0xff] %vm717, %v1268
        %s1270 = scalar_lea.vmem [#allocation4], 16
        %v1271 = vld [vmem:[%s1270] sm:$0xff]
        %1273 = vset.pattern.permute.xlu0 0
        %1274 = vperm.xlu0 %1273, %v1253
        %v1275 = vpop.permute.xlu0 %1274
        %v1277 = vmul.f32 %v1275, %v1271
        %v1286 = vrot.slane %v1118, 7
        %v1287 = vsel %vm570, %v1286, %v1117
        %v1288 = vrot.slane %v1119, 6
        %v1289 = vsel %vm573, %v1288, %v1287
        %v1290 = vrot.slane %v1120, 5
        %v1291 = vsel %vm576, %v1290, %v1289
        %v1292 = vrot.slane %v1121, 4
        %v1293 = vsel %vm579, %v1292, %v1291
        %v1294 = vrot.slane %v1122, 3
        %v1295 = vsel %vm582, %v1294, %v1293
        %v1296 = vrot.slane %v1123, 2
        %v1297 = vsel %vm585, %v1296, %v1295
        %v1298 = vrot.slane %v1124, 1
        %v1299 = vsel %vm588, %v1298, %v1297
        %v1302 = vsel %vm612, %v1261, 0
        %1304 = vmatprep.subr.mxu0 0.0
        %1305 = vmatpush1.msra.mxu0 %v1299
        %1306 = vmatprep.subr.mxu0 0.0
        %1307 = vmatpush1.msra.mxu0 0.0
        %1308 = vmatprep.subr.mxu0 0.0
        %1309 = vmatpush1.msra.mxu0 0.0
        %1310 = vmatprep.subr.mxu0 0.0
        %1311 = vmatpush1.msra.mxu0 0.0
        %1312 = vmatprep.subr.mxu0 0.0
        %1313 = vmatpush1.msra.mxu0 0.0
        %1314 = vmatprep.subr.mxu0 0.0
        %1315 = vmatpush1.msra.mxu0 0.0
        %1316 = vmatprep.subr.mxu0 0.0
        %1317 = vmatpush1.msra.mxu0 0.0
        %1318 = vmatprep.subr.mxu0 0.0
        %1319 = vmatpush1.msra.mxu0 0.0
        %1320 = vmatprep.subr.mxu0 0.0
        %1321 = vmatpush1.msra.mxu0 0.0
        %1322 = vmatprep.subr.mxu0 0.0
        %1323 = vmatpush1.msra.mxu0 0.0
        %1324 = vmatprep.subr.mxu0 0.0
        %1325 = vmatpush1.msra.mxu0 0.0
        %1326 = vmatprep.subr.mxu0 0.0
        %1327 = vmatpush1.msra.mxu0 0.0
        %1328 = vmatprep.subr.mxu0 0.0
        %1329 = vmatpush1.msra.mxu0 0.0
        %1330 = vmatprep.subr.mxu0 0.0
        %1331 = vmatpush1.msra.mxu0 0.0
        %1332 = vmatprep.subr.mxu0 0.0
        %1333 = vmatpush1.msra.mxu0 0.0
        %1334 = vmatprep.subr.mxu0 0.0
        %1335 = vmatpush1.msra.mxu0 0.0
        %1336 = vmatprep.subr.mxu0 0.0
        %1337 = vmatpush1.msra.mxu0 0.0
        %1338 = vmatprep.subr.mxu0 0.0
        %1339 = vmatpush1.msra.mxu0 0.0
        %1340 = vmatprep.subr.mxu0 0.0
        %1341 = vmatpush1.msra.mxu0 0.0
        %1342 = vmatprep.subr.mxu0 0.0
        %1343 = vmatpush1.msra.mxu0 0.0
        %1344 = vmatprep.subr.mxu0 0.0
        %1345 = vmatpush1.msra.mxu0 0.0
        %1346 = vmatprep.subr.mxu0 0.0
        %1347 = vmatpush1.msra.mxu0 0.0
        %1348 = vmatprep.subr.mxu0 0.0
        %1349 = vmatpush1.msra.mxu0 0.0
        %1350 = vmatprep.subr.mxu0 0.0
        %1351 = vmatpush1.msra.mxu0 0.0
        %1352 = vmatprep.subr.mxu0 0.0
        %1353 = vmatpush1.msra.mxu0 0.0
        %1354 = vmatprep.subr.mxu0 0.0
        %1355 = vmatpush1.msra.mxu0 0.0
        %1356 = vmatprep.subr.mxu0 0.0
        %1357 = vmatpush1.msra.mxu0 0.0
        %1358 = vmatprep.subr.mxu0 0.0
        %1359 = vmatpush1.msra.mxu0 0.0
        %1360 = vmatprep.subr.mxu0 0.0
        %1361 = vmatpush1.msra.mxu0 0.0
        %1362 = vmatprep.subr.mxu0 0.0
        %1363 = vmatpush1.msra.mxu0 0.0
        %1364 = vmatprep.subr.mxu0 0.0
        %1365 = vmatpush1.msra.mxu0 0.0
        %1366 = vmatprep.subr.mxu0 0.0
        %1367 = vmatpush1.msra.mxu0 0.0
        %1368 = vmatprep.mubr.f32.mxu0 0.0
        %1369 = vmatmul.mubr.f32.gmra.mrb[0].mxu0 %v1302
        %v1370 = vpop.f32.mrb[0].mxu0
        %v1371 = vadd.f32 0.0, %v1370
        %v1372 = vpop.f32.mrb[0].mxu0
        %1373 = vdwg.mxu0
        %v1374 = vadd.f32 %v1277, %v1371
        %1375 = vst.msk [vmem:[%s1270] sm:$0xff] %vm612, %v1374
        %1376 = vst.msk [vmem:[%s1245] sm:$0xff] %vm717, %v1250
        %v1377 = vld [vmem:[%s449 + $0x3] sm:$0x1]
        %v1378 = vld [vmem:[%s449 + $0x7] sm:$0x1]
        %v1379 = vld [vmem:[%s449 + $0xb] sm:$0x1]
        %v1380 = vld [vmem:[%s449 + $0xf] sm:$0x1]
        %v1381 = vld [vmem:[%s449 + $0x13] sm:$0x1]
        %v1382 = vld [vmem:[%s449 + $0x17] sm:$0x1]
        %v1383 = vld [vmem:[%s449 + $0x1b] sm:$0x1]
        %v1384 = vld [vmem:[%s449 + $0x1f] sm:$0x1]
        %v1385 = vld [vmem:[%s456 + $0x3] sm:$0x1]
        %v1386 = vld [vmem:[%s456 + $0x7] sm:$0x1]
        %v1387 = vld [vmem:[%s456 + $0xb] sm:$0x1]
        %v1388 = vld [vmem:[%s456 + $0xf] sm:$0x1]
        %v1389 = vld [vmem:[%s456 + $0x13] sm:$0x1]
        %v1390 = vld [vmem:[%s456 + $0x17] sm:$0x1]
        %v1391 = vld [vmem:[%s456 + $0x1b] sm:$0x1]
        %v1392 = vld [vmem:[%s456 + $0x1f] sm:$0x1]
        %v1393 = vld [vmem:[%s463 + $0x3] sm:$0x1]
        %v1394 = vld [vmem:[%s463 + $0x7] sm:$0x1]
        %v1395 = vld [vmem:[%s463 + $0xb] sm:$0x1]
        %v1396 = vld [vmem:[%s463 + $0xf] sm:$0x1]
        %v1397 = vld [vmem:[%s463 + $0x13] sm:$0x1]
        %v1398 = vld [vmem:[%s463 + $0x17] sm:$0x1]
        %v1399 = vld [vmem:[%s463 + $0x1b] sm:$0x1]
        %v1400 = vld [vmem:[%s463 + $0x1f] sm:$0x1]
        %v1409 = vrot.slane %v1378, 7
        %v1410 = vsel %vm570, %v1409, %v1377
        %v1411 = vrot.slane %v1379, 6
        %v1412 = vsel %vm573, %v1411, %v1410
        %v1413 = vrot.slane %v1380, 5
        %v1414 = vsel %vm576, %v1413, %v1412
        %v1415 = vrot.slane %v1381, 4
        %v1416 = vsel %vm579, %v1415, %v1414
        %v1417 = vrot.slane %v1382, 3
        %v1418 = vsel %vm582, %v1417, %v1416
        %v1419 = vrot.slane %v1383, 2
        %v1420 = vsel %vm585, %v1419, %v1418
        %v1421 = vrot.slane %v1384, 1
        %v1422 = vsel %vm588, %v1421, %v1420
        %v1431 = vrot.slane %v1386, 7
        %v1432 = vsel %vm570, %v1431, %v1385
        %v1433 = vrot.slane %v1387, 6
        %v1434 = vsel %vm573, %v1433, %v1432
        %v1435 = vrot.slane %v1388, 5
        %v1436 = vsel %vm576, %v1435, %v1434
        %v1437 = vrot.slane %v1389, 4
        %v1438 = vsel %vm579, %v1437, %v1436
        %v1439 = vrot.slane %v1390, 3
        %v1440 = vsel %vm582, %v1439, %v1438
        %v1441 = vrot.slane %v1391, 2
        %v1442 = vsel %vm585, %v1441, %v1440
        %v1443 = vrot.slane %v1392, 1
        %v1444 = vsel %vm588, %v1443, %v1442
        %v1445 = vsel %vm612, %v1422, 0
        %v1447 = vsel %vm612, %v1444, 0
        %1449 = vmatprep.subr.mxu0 0.0
        %1450 = vmatpush1.xpose.msra.mxu0 %v1447
        %1451 = vmatprep.subr.mxu0 0.0
        %1452 = vmatpush1.xpose.msra.mxu0 0.0
        %1453 = vmatprep.subr.mxu0 0.0
        %1454 = vmatpush1.xpose.msra.mxu0 0.0
        %1455 = vmatprep.subr.mxu0 0.0
        %1456 = vmatpush1.xpose.msra.mxu0 0.0
        %1457 = vmatprep.subr.mxu0 0.0
        %1458 = vmatpush1.xpose.msra.mxu0 0.0
        %1459 = vmatprep.subr.mxu0 0.0
        %1460 = vmatpush1.xpose.msra.mxu0 0.0
        %1461 = vmatprep.subr.mxu0 0.0
        %1462 = vmatpush1.xpose.msra.mxu0 0.0
        %1463 = vmatprep.subr.mxu0 0.0
        %1464 = vmatpush1.xpose.msra.mxu0 0.0
        %1465 = vmatprep.subr.mxu0 0.0
        %1466 = vmatpush1.xpose.msra.mxu0 0.0
        %1467 = vmatprep.subr.mxu0 0.0
        %1468 = vmatpush1.xpose.msra.mxu0 0.0
        %1469 = vmatprep.subr.mxu0 0.0
        %1470 = vmatpush1.xpose.msra.mxu0 0.0
        %1471 = vmatprep.subr.mxu0 0.0
        %1472 = vmatpush1.xpose.msra.mxu0 0.0
        %1473 = vmatprep.subr.mxu0 0.0
        %1474 = vmatpush1.xpose.msra.mxu0 0.0
        %1475 = vmatprep.subr.mxu0 0.0
        %1476 = vmatpush1.xpose.msra.mxu0 0.0
        %1477 = vmatprep.subr.mxu0 0.0
        %1478 = vmatpush1.xpose.msra.mxu0 0.0
        %1479 = vmatprep.subr.mxu0 0.0
        %1480 = vmatpush1.xpose.msra.mxu0 0.0
        %1481 = vmatprep.subr.mxu0 0.0
        %1482 = vmatpush1.xpose.msra.mxu0 0.0
        %1483 = vmatprep.subr.mxu0 0.0
        %1484 = vmatpush1.xpose.msra.mxu0 0.0
        %1485 = vmatprep.subr.mxu0 0.0
        %1486 = vmatpush1.xpose.msra.mxu0 0.0
        %1487 = vmatprep.subr.mxu0 0.0
        %1488 = vmatpush1.xpose.msra.mxu0 0.0
        %1489 = vmatprep.subr.mxu0 0.0
        %1490 = vmatpush1.xpose.msra.mxu0 0.0
        %1491 = vmatprep.subr.mxu0 0.0
        %1492 = vmatpush1.xpose.msra.mxu0 0.0
        %1493 = vmatprep.subr.mxu0 0.0
        %1494 = vmatpush1.xpose.msra.mxu0 0.0
        %1495 = vmatprep.subr.mxu0 0.0
        %1496 = vmatpush1.xpose.msra.mxu0 0.0
        %1497 = vmatprep.subr.mxu0 0.0
        %1498 = vmatpush1.xpose.msra.mxu0 0.0
        %1499 = vmatprep.subr.mxu0 0.0
        %1500 = vmatpush1.xpose.msra.mxu0 0.0
        %1501 = vmatprep.subr.mxu0 0.0
        %1502 = vmatpush1.xpose.msra.mxu0 0.0
        %1503 = vmatprep.subr.mxu0 0.0
        %1504 = vmatpush1.xpose.msra.mxu0 0.0
        %1505 = vmatprep.subr.mxu0 0.0
        %1506 = vmatpush1.xpose.msra.mxu0 0.0
        %1507 = vmatprep.subr.mxu0 0.0
        %1508 = vmatpush1.xpose.msra.mxu0 0.0
        %1509 = vmatprep.subr.mxu0 0.0
        %1510 = vmatpush1.xpose.msra.mxu0 0.0
        %1511 = vmatprep.subr.mxu0 0.0
        %1512 = vmatpush1.xpose.msra.mxu0 0.0
        %1513 = vmatprep.mubr.f32.mxu0 0.0
        %1514 = vmatmul.mubr.f32.gmra.mrb[0].mxu0 %v1445
        %v1515 = vpop.f32.mrb[0].mxu0
        %v1516 = vadd.f32 0.0, %v1515
        %v1517 = vpop.f32.mrb[0].mxu0
        %1518 = vdwg.mxu0
        %v1519 = vmul.f32 %v1516, 0.35355338
        %v1520 = vadd.f32 %v1519, %v692
        %s1521 = scalar_lea.vmem [#allocation2], 24
        %v1522 = vld [vmem:[%s1521] sm:$0xff]
        %v1523 = vsel %vm612, %v1520, -inf
        %1524 = vmax.xlane.f32.xlu0 %v1523
        %v1525 = vpop.xlane.xlu0 %1524
        %v1526 = vmax.f32 %v1522, %v1525
        %v1527 = vsub.f32 %v1522, %v1526
        %v1528 = vmul.f32 %v1527, 1.442695
        %v1529 = vpow.pop %v1528
        %1531 = vset.pattern.permute.xlu0 0
        %1532 = vperm.xlu0 %1531, %v1526
        %v1533 = vpop.permute.xlu0 %1532
        %v1535 = vsub.f32 %v1520, %v1533
        %v1536 = vmul.f32 %v1535, 1.442695
        %v1537 = vpow.pop %v1536
        %s1538 = scalar_lea.vmem [#allocation3], 24
        %v1539 = vld [vmem:[%s1538] sm:$0xff]
        %v1540 = vmul.f32 %v1529, %v1539
        %v1541 = vsel %vm612, %v1537, 0.0
        %1542 = vadd.xlane.f32.xlu0 %v1541
        %v1543 = vpop.xlane.xlu0 %1542
        %v1544 = vadd.f32 %v1540, %v1543
        %1545 = vst.msk [vmem:[%s1538] sm:$0xff] %vm717, %v1544
        %s1546 = scalar_lea.vmem [#allocation4], 24
        %v1547 = vld [vmem:[%s1546] sm:$0xff]
        %1549 = vset.pattern.permute.xlu0 0
        %1550 = vperm.xlu0 %1549, %v1529
        %v1551 = vpop.permute.xlu0 %1550
        %v1553 = vmul.f32 %v1551, %v1547
        %v1562 = vrot.slane %v1394, 7
        %v1563 = vsel %vm570, %v1562, %v1393
        %v1564 = vrot.slane %v1395, 6
        %v1565 = vsel %vm573, %v1564, %v1563
        %v1566 = vrot.slane %v1396, 5
        %v1567 = vsel %vm576, %v1566, %v1565
        %v1568 = vrot.slane %v1397, 4
        %v1569 = vsel %vm579, %v1568, %v1567
        %v1570 = vrot.slane %v1398, 3
        %v1571 = vsel %vm582, %v1570, %v1569
        %v1572 = vrot.slane %v1399, 2
        %v1573 = vsel %vm585, %v1572, %v1571
        %v1574 = vrot.slane %v1400, 1
        %v1575 = vsel %vm588, %v1574, %v1573
        %v1578 = vsel %vm612, %v1537, 0
        %1580 = vmatprep.subr.mxu0 0.0
        %1581 = vmatpush1.msra.mxu0 %v1575
        %1582 = vmatprep.subr.mxu0 0.0
        %1583 = vmatpush1.msra.mxu0 0.0
        %1584 = vmatprep.subr.mxu0 0.0
        %1585 = vmatpush1.msra.mxu0 0.0
        %1586 = vmatprep.subr.mxu0 0.0
        %1587 = vmatpush1.msra.mxu0 0.0
        %1588 = vmatprep.subr.mxu0 0.0
        %1589 = vmatpush1.msra.mxu0 0.0
        %1590 = vmatprep.subr.mxu0 0.0
        %1591 = vmatpush1.msra.mxu0 0.0
        %1592 = vmatprep.subr.mxu0 0.0
        %1593 = vmatpush1.msra.mxu0 0.0
        %1594 = vmatprep.subr.mxu0 0.0
        %1595 = vmatpush1.msra.mxu0 0.0
        %1596 = vmatprep.subr.mxu0 0.0
        %1597 = vmatpush1.msra.mxu0 0.0
        %1598 = vmatprep.subr.mxu0 0.0
        %1599 = vmatpush1.msra.mxu0 0.0
        %1600 = vmatprep.subr.mxu0 0.0
        %1601 = vmatpush1.msra.mxu0 0.0
        %1602 = vmatprep.subr.mxu0 0.0
        %1603 = vmatpush1.msra.mxu0 0.0
        %1604 = vmatprep.subr.mxu0 0.0
        %1605 = vmatpush1.msra.mxu0 0.0
        %1606 = vmatprep.subr.mxu0 0.0
        %1607 = vmatpush1.msra.mxu0 0.0
        %1608 = vmatprep.subr.mxu0 0.0
        %1609 = vmatpush1.msra.mxu0 0.0
        %1610 = vmatprep.subr.mxu0 0.0
        %1611 = vmatpush1.msra.mxu0 0.0
        %1612 = vmatprep.subr.mxu0 0.0
        %1613 = vmatpush1.msra.mxu0 0.0
        %1614 = vmatprep.subr.mxu0 0.0
        %1615 = vmatpush1.msra.mxu0 0.0
        %1616 = vmatprep.subr.mxu0 0.0
        %1617 = vmatpush1.msra.mxu0 0.0
        %1618 = vmatprep.subr.mxu0 0.0
        %1619 = vmatpush1.msra.mxu0 0.0
        %1620 = vmatprep.subr.mxu0 0.0
        %1621 = vmatpush1.msra.mxu0 0.0
        %1622 = vmatprep.subr.mxu0 0.0
        %1623 = vmatpush1.msra.mxu0 0.0
        %1624 = vmatprep.subr.mxu0 0.0
        %1625 = vmatpush1.msra.mxu0 0.0
        %1626 = vmatprep.subr.mxu0 0.0
        %1627 = vmatpush1.msra.mxu0 0.0
        %1628 = vmatprep.subr.mxu0 0.0
        %1629 = vmatpush1.msra.mxu0 0.0
        %1630 = vmatprep.subr.mxu0 0.0
        %1631 = vmatpush1.msra.mxu0 0.0
        %1632 = vmatprep.subr.mxu0 0.0
        %1633 = vmatpush1.msra.mxu0 0.0
        %1634 = vmatprep.subr.mxu0 0.0
        %1635 = vmatpush1.msra.mxu0 0.0
        %1636 = vmatprep.subr.mxu0 0.0
        %1637 = vmatpush1.msra.mxu0 0.0
        %1638 = vmatprep.subr.mxu0 0.0
        %1639 = vmatpush1.msra.mxu0 0.0
        %1640 = vmatprep.subr.mxu0 0.0
        %1641 = vmatpush1.msra.mxu0 0.0
        %1642 = vmatprep.subr.mxu0 0.0
        %1643 = vmatpush1.msra.mxu0 0.0
        %1644 = vmatprep.mubr.f32.mxu0 0.0
        %1645 = vmatmul.mubr.f32.gmra.mrb[0].mxu0 %v1578
        %v1646 = vpop.f32.mrb[0].mxu0
        %v1647 = vadd.f32 0.0, %v1646
        %v1648 = vpop.f32.mrb[0].mxu0
        %1649 = vdwg.mxu0
        %v1650 = vadd.f32 %v1553, %v1647
        %1651 = vst.msk [vmem:[%s1546] sm:$0xff] %vm612, %v1650
        %1652 = vst.msk [vmem:[%s1521] sm:$0xff] %vm717, %v1526
        // Predicated region
        $region164: #{transformer_forward.11} parent=146 // pred_check
          %p1653 = pneg %p518
        $region165: #{transformer_forward.11} parent=146 // pred_check_branch
          %1655 = sbr.rel (%p1653) target = $region167
        $region166: #{transformer_forward.11} parent=146 // pred_region
          %v1656 = vld [vmem:[#allocation3] sm:$0xff]
          %v1657 = vrcp.pop %v1656
          %v1658 = vld [vmem:[#allocation4] sm:$0xff]
          %1660 = vset.pattern.permute.xlu0 0
          %1661 = vperm.xlu0 %1660, %v1657
          %v1662 = vpop.permute.xlu0 %1661
          %v1664 = vmul.f32 %v1658, %v1662
          %1665 = vst.msk [vmem:[%s517] sm:$0xff] %vm612, %v1664
          %v1666 = vld [vmem:[%s986] sm:$0xff]
          %v1667 = vrcp.pop %v1666
          %v1668 = vld [vmem:[%s994] sm:$0xff]
          %1670 = vset.pattern.permute.xlu0 0
          %1671 = vperm.xlu0 %1670, %v1667
          %v1672 = vpop.permute.xlu0 %1671
          %v1674 = vmul.f32 %v1668, %v1672
          %1676 = vrot.lane.b32.xlu0 %v1674, 8
          %v1677 = vpop.permute.xlu0 %1676
          %vm1679 = vcmask 130112
          %1680 = vst.msk [vmem:[%s517] sm:$0xff] %vm1679, %v1677
          %v1681 = vld [vmem:[%s1262] sm:$0xff]
          %v1682 = vrcp.pop %v1681
          %v1683 = vld [vmem:[%s1270] sm:$0xff]
          %1685 = vset.pattern.permute.xlu0 0
          %1686 = vperm.xlu0 %1685, %v1682
          %v1687 = vpop.permute.xlu0 %1686
          %v1689 = vmul.f32 %v1683, %v1687
          %1691 = vrot.lane.b32.xlu0 %v1689, 16
          %v1692 = vpop.permute.xlu0 %1691
          %vm1694 = vcmask 195712
          %1695 = vst.msk [vmem:[%s517] sm:$0xff] %vm1694, %v1692
          %v1696 = vld [vmem:[%s1538] sm:$0xff]
          %v1697 = vrcp.pop %v1696
          %v1698 = vld [vmem:[%s1546] sm:$0xff]
          %1700 = vset.pattern.permute.xlu0 0
          %1701 = vperm.xlu0 %1700, %v1697
          %v1702 = vpop.permute.xlu0 %1701
          %v1704 = vmul.f32 %v1698, %v1702
          %1706 = vrot.lane.b32.xlu0 %v1704, 24
          %v1707 = vpop.permute.xlu0 %1706
          %vm1709 = vcmask 261312
          %1710 = vst.msk [vmem:[%s517] sm:$0xff] %vm1709, %v1707
        $region167: #{transformer_forward.11} parent=146 // pred_fallthru
          _
        %p1711 = scmp.lt.s32.totalorder %s20, 1
        %s1712 = scalar_select %p1711, %s20, 1
        %p1713 = scmp.lt.s32.totalorder %s21, 0
        %s1714 = scalar_select %p1713, %s21, 0
        %s1715 = sadd.s32 %s1714, %s1712
        %s1716 = smul.addr %s1715, 8
        %s1717 = scalar_lea.vmem %s4, %s1716
        // Predicated region
        $region168: #{transformer_forward.11} parent=146 // pred_check
          %p1718 = pneg %p166
        $region169: #{transformer_forward.11} parent=146 // pred_check_branch
          %1720 = sbr.rel (%p1718) target = $region171
        $region170: #{transformer_forward.11} parent=146 // pred_region
          _
        $region171: #{transformer_forward.11} parent=146 // pred_fallthru
          _
      $region147: #{transformer_forward.11} parent=5 // pred_fallthru
        _
      %p1721 = scmp.le.s32.totalorder 2, %s10
      // Predicated region
      $region172: #{transformer_forward.11} parent=5 // pred_check
        %p1722 = pneg %p1721
      $region173: #{transformer_forward.11} parent=5 // pred_check_branch
        %1724 = sbr.rel (%p1722) target = $region175
      $region174: #{transformer_forward.11} parent=5 // pred_region
        %s1725 = ssub.s32 %s10, 2
        // Predicated region
        $region176: #{transformer_forward.11} parent=174 // pred_check
          %p1726 = pneg %p172
        $region177: #{transformer_forward.11} parent=174 // pred_check_branch
          %1728 = sbr.rel (%p1726) target = $region179
        $region178: #{transformer_forward.11} parent=174 // pred_region
          %p1729 = scmp.lt.s32.totalorder %s23, 1
          %s1730 = scalar_select %p1729, %s23, 1
          %p1731 = scmp.lt.s32.totalorder %s24, 0
          %s1732 = scalar_select %p1731, %s24, 0
          %s1733 = sadd.s32 %s1732, %s1730
          %s1734 = smul.addr %s1733, 8
          %s1735 = scalar_lea.vmem %s4, %s1734
        $region179: #{transformer_forward.11} parent=174 // pred_fallthru
          _
      $region175: #{transformer_forward.11} parent=5 // pred_fallthru
        _
    $region6: #{transformer_forward.11} parent=1 // loop_footer
      %s14 = sadd.s32 1, %s10
    $region7: #{transformer_forward.11} parent=1 // loop_footer_branch
      %9 = sbr.rel target = $region3
    $region8: #{transformer_forward.11} parent=1 // loop_exit
      _

</llo_original>
